<compile_context>
chip_gen: v6e
topology: v6e:2x2x1
jax: 0.10.0
libtpu: 0.0.40
codegen_flags: <defaults>
</compile_context>

<pallas_src>
import functools

import jax
import jax.numpy as jnp
from jax import lax
from jax.experimental import pallas as pl
from jax.experimental.pallas import tpu as pltpu


_LANE = 128
_BN_EPS = 1e-5


def _round_up(c, m=_LANE):
    return ((c + m - 1) // m) * m


def _vmem_bytes_estimate(th, wdim, cin_p, cout_p, w_itemsize, x_itemsize=4):
    """Rough VMEM footprint of one pass-A grid step (tile sizing / vmem limit)."""
    slab = 2 * (th + 2) * (wdim + 2) * cin_p * x_itemsize   # double-buffered halo slab
    wts = 9 * cin_p * cout_p * w_itemsize + 8 * cout_p      # fused weights + bias
    ztile = th * wdim * cout_p * 4                          # one output tile (f32)
    return slab + wts + 2 * ztile + 3 * ztile               # out double-buffer + temps


def _pick_tile_rows(h, wdim, cin_p, cout_p, w_itemsize, budget_bytes=40 << 20):
    """Largest row tile dividing H whose working set fits the VMEM budget.

    Budget defaults to 40 MiB so the same tiling is safe on v7x (64 MiB
    physical VMEM per TensorCore) as well as v5e/v6e (128 MiB)."""
    best = 1
    for th in range(1, h + 1):
        if h % th:
            continue
        if _vmem_bytes_estimate(th, wdim, cin_p, cout_p, w_itemsize) <= budget_bytes:
            best = th
    return best


# ----------------------------------------------------------------------------
# Pass A: fused (3x3 ∘ 1x1) conv + bias, tiled over (batch, row-tiles), with
# per-tile BatchNorm partial statistics.  Input halo slabs are manually DMA'd
# from HBM into a double-buffered VMEM scratch with one-tile-ahead prefetch.
# ----------------------------------------------------------------------------
def _make_conv_stats_kernel(th, wdim, n_tiles, cin_p, cout_p):
    def kernel(x_hbm, w_ref, b_ref, z_ref, stats_ref, slab, sem):
        n = pl.program_id(0)
        t = pl.program_id(1)
        slot = t % 2

        def start_fetch(row_tile, buf):
            # rows [row_tile*th, row_tile*th + th + 2) of padded image n.
            pltpu.make_async_copy(
                x_hbm.at[n, pl.ds(row_tile * th, th + 2)],
                slab.at[buf],
                sem.at[buf],
            ).start()

        # Prime the pipeline on the first row tile of each image.
        @pl.when(t == 0)
        def _():
            start_fetch(0, 0)

        # Wait for the current slab (descriptor only needs dst shape + sem).
        pltpu.make_async_copy(
            x_hbm.at[n, pl.ds(0, th + 2)], slab.at[slot], sem.at[slot]
        ).wait()

        # Prefetch the next row tile of this image while we compute.
        @pl.when(t + 1 < n_tiles)
        def _():
            start_fetch(t + 1, 1 - slot)

        # Fused conv: 9 shifted channel matmuls straight into (M, Cout_p).
        cur = slab.at[slot]
        acc = jnp.zeros((th * wdim, cout_p), jnp.float32)
        for dy in range(3):
            for dx in range(3):
                patch = cur[dy:dy + th, dx:dx + wdim, :].reshape(th * wdim, cin_p)
                acc = acc + jnp.dot(patch.astype(w_ref.dtype), w_ref[dy, dx],
                                    preferred_element_type=jnp.float32)
        z = acc + b_ref[...]                                   # (M, Cout_p) f32

        z_ref[...] = z.reshape(1, th, wdim, cout_p)
        zsum = jnp.sum(z, axis=0, keepdims=True)               # (1, Cout_p)
        zssq = jnp.sum(z * z, axis=0, keepdims=True)           # (1, Cout_p)
        stats_ref[...] = jnp.concatenate([zsum, zssq], axis=0
                                         ).reshape(1, 1, 2, cout_p)

    return kernel


def _conv_stats_call(xpad, w, b, tile_rows):
    n, hp, wp, cin_p = xpad.shape
    h, wd = hp - 2, wp - 2
    cout_p = w.shape[-1]
    n_tiles = h // tile_rows

    est = _vmem_bytes_estimate(tile_rows, wd, cin_p, cout_p,
                               jnp.dtype(w.dtype).itemsize,
                               jnp.dtype(xpad.dtype).itemsize)
    vmem_limit = int(max(32 << 20, min(est + (8 << 20), 48 << 20)))

    kernel = _make_conv_stats_kernel(tile_rows, wd, n_tiles, cin_p, cout_p)
    return pl.pallas_call(
        kernel,
        out_shape=(
            jax.ShapeDtypeStruct((n, h, wd, cout_p), jnp.float32),
            jax.ShapeDtypeStruct((n, n_tiles, 2, cout_p), jnp.float32),
        ),
        grid_spec=pltpu.PrefetchScalarGridSpec(
            num_scalar_prefetch=0,
            grid=(n, n_tiles),
            in_specs=[
                pl.BlockSpec(memory_space=pl.ANY),                  # padded x (HBM)
                pl.BlockSpec(memory_space=pltpu.MemorySpace.VMEM),  # fused weights
                pl.BlockSpec(memory_space=pltpu.MemorySpace.VMEM),  # fused bias
            ],
            out_specs=[
                pl.BlockSpec((1, tile_rows, wd, cout_p), lambda i, j: (i, j, 0, 0)),
                pl.BlockSpec((1, 1, 2, cout_p), lambda i, j: (i, j, 0, 0)),
            ],
            scratch_shapes=[
                pltpu.VMEM((2, tile_rows + 2, wp, cin_p), xpad.dtype),
                pltpu.SemaphoreType.DMA((2,)),
            ],
        ),
        compiler_params=pltpu.CompilerParams(
            dimension_semantics=("parallel", "arbitrary"),
            vmem_limit_bytes=vmem_limit),
    )(xpad, w, b)


# ----------------------------------------------------------------------------
# Pass B: per-tile BatchNorm normalize + ReLU (scale/shift precomputed).
# ----------------------------------------------------------------------------
def _bn_relu_kernel(z_ref, scale_ref, shift_ref, o_ref):
    o_ref[...] = jnp.maximum(z_ref[...] * scale_ref[...] + shift_ref[...], 0.0)


def _bn_relu_call(z, scale, shift, tile_rows):
    n, h, wd, cp = z.shape
    n_tiles = h // tile_rows
    return pl.pallas_call(
        _bn_relu_kernel,
        out_shape=jax.ShapeDtypeStruct((n, h, wd, cp), jnp.float32),
        grid_spec=pltpu.PrefetchScalarGridSpec(
            num_scalar_prefetch=0,
            grid=(n, n_tiles),
            in_specs=[
                pl.BlockSpec((1, tile_rows, wd, cp), lambda i, j: (i, j, 0, 0)),
                pl.BlockSpec(memory_space=pltpu.MemorySpace.VMEM),
                pl.BlockSpec(memory_space=pltpu.MemorySpace.VMEM),
            ],
            out_specs=pl.BlockSpec((1, tile_rows, wd, cp),
                                   lambda i, j: (i, j, 0, 0)),
        ),
        compiler_params=pltpu.CompilerParams(
            dimension_semantics=("parallel", "parallel")),
    )(z, scale, shift)


# ----------------------------------------------------------------------------
# One stage: conv(+stats) pass, finalize BN stats in JAX, normalize+ReLU pass.
# ----------------------------------------------------------------------------
def _stage(x, p, tile_rows):
    """x: (N, H, W, Cin_p) f32, channel-padded; returns (N, H, W, Cout_p) f32."""
    n, h, wd, cin_p = x.shape
    assert cin_p == p["w"].shape[2], (cin_p, p["w"].shape)
    # TODO(synk): fold the 1-px spatial halo into the kernel's slab DMA
    # (zero-fill border rows/cols of the VMEM slab) to skip this extra HBM pass.
    xpad = jnp.pad(x, ((0, 0), (1, 1), (1, 1), (0, 0)))

    z, stats = _conv_stats_call(xpad, p["w"], p["b"], tile_rows)

    # Finalize BatchNorm batch statistics (biased variance, over full N*H*W)
    # from the per-tile partials; tiny (2, Cout_p) reduction in plain JAX f32.
    m = float(n * h * wd)
    tot = jnp.sum(stats, axis=(0, 1))                   # (2, Cout_p)
    mu = tot[0] / m
    var = jnp.maximum(tot[1] / m - mu * mu, 0.0)
    scale = p["gamma"] * lax.rsqrt(var + _BN_EPS)
    shift = p["beta"] - mu * scale
    cp = scale.shape[0]
    return _bn_relu_call(z, scale.reshape(1, cp), shift.reshape(1, cp), tile_rows)


# ----------------------------------------------------------------------------
# Parameter construction (deterministic, synthetic).
# ----------------------------------------------------------------------------
def _grouped_to_dense(w_grouped, in_ch, groups):
    """PyTorch grouped conv weight (out, in/groups, 3, 3) -> dense (out, in, 3, 3)."""
    out_ch = w_grouped.shape[0]
    cpg_in = in_ch // groups
    cpg_out = out_ch // groups
    w_dense = jnp.zeros((out_ch, in_ch, 3, 3), w_grouped.dtype)
    for g in range(groups):
        w_dense = w_dense.at[g * cpg_out:(g + 1) * cpg_out,
                             g * cpg_in:(g + 1) * cpg_in].set(
                                 w_grouped[g * cpg_out:(g + 1) * cpg_out])
    return w_dense


def make_stage_params(key, in_ch, out_ch, channels_per_seg=128,
                      compute_dtype=jnp.float32):
    """One depthwise_pointwise_conv + BN + ReLU stage.

    compute_dtype: dtype of the fused conv weights / MXU operands.  Use
    jnp.bfloat16 on v6e/v7x for ~2x MXU throughput (accumulation and BN
    statistics stay f32); f32 default keeps the self-check tight.
    """
    if in_ch == 3 and channels_per_seg != 1:
        C = 3
    else:
        C = min(in_ch, channels_per_seg)
    groups = in_ch // C

    k = jax.random.split(key, 6)
    w_dw = 0.1 * jax.random.normal(k[0], (in_ch, in_ch // groups, 3, 3), jnp.float32)
    b_dw = 0.1 * jax.random.normal(k[1], (in_ch,), jnp.float32)
    w_pw = 0.1 * jax.random.normal(k[2], (out_ch, in_ch, 1, 1), jnp.float32)
    b_pw = 0.1 * jax.random.normal(k[3], (out_ch,), jnp.float32)
    gamma = 1.0 + 0.1 * jax.random.normal(k[4], (out_ch,), jnp.float32)
    beta = 0.1 * jax.random.normal(k[5], (out_ch,), jnp.float32)

    # grouped 3x3 -> dense block-diagonal (exact), then fold the 1x1 into it.
    # TODO(synk): for in_ch > 128 (groups > 1) a per-group grid axis would avoid
    # densifying the block-diagonal 3x3 weight; not needed at these widths.
    w_dw_dense = _grouped_to_dense(w_dw, in_ch, groups)          # (in, in, 3, 3) OIHW
    w3 = jnp.transpose(w_dw_dense, (2, 3, 1, 0))                 # (3, 3, in, in) HWIO
    w1 = jnp.transpose(w_pw[:, :, 0, 0], (1, 0))                 # (in, out)
    w_fused = jnp.einsum("hwio,on->hwin", w3, w1)                # (3, 3, in, out)
    b_fused = b_dw @ w1 + b_pw                                   # (out,)

    # Pad channels to multiples of 128 (lane-dense stores, MXU-friendly K).
    cin_p, cout_p = _round_up(in_ch), _round_up(out_ch)
    wf = jnp.zeros((3, 3, cin_p, cout_p), jnp.float32)
    wf = wf.at[:, :, :in_ch, :out_ch].set(w_fused)
    bf = jnp.zeros((cout_p,), jnp.float32).at[:out_ch].set(b_fused)
    gamma_p = jnp.ones((cout_p,), jnp.float32).at[:out_ch].set(gamma)
    beta_p = jnp.zeros((cout_p,), jnp.float32).at[:out_ch].set(beta)

    return {
        # kernel-side (padded, fused) parameters
        "w": wf.astype(compute_dtype),
        "b": bf.reshape(1, cout_p),
        "gamma": gamma_p,
        "beta": beta_p,
        # reference-side (PyTorch-layout) parameters
        "_w_dw_dense": w_dw_dense, "_b_dw": b_dw,
        "_w_pw": w_pw, "_b_pw": b_pw, "_gamma": gamma, "_beta": beta,
    }


# ----------------------------------------------------------------------------
# DoubleConv forward (Pallas) and pure-JAX reference.
# ----------------------------------------------------------------------------
@functools.partial(jax.jit, static_argnames=("tile_rows",))
def double_conv_pallas(x_nchw, p1, p2, tile_rows=None):
    n, cin, h, wd = x_nchw.shape
    cin_p = p1["w"].shape[2]
    cout = p2["_b_pw"].shape[0]

    if tile_rows is None:
        tile_rows = _pick_tile_rows(
            h, wd,
            max(p1["w"].shape[2], p2["w"].shape[2]),
            max(p1["w"].shape[3], p2["w"].shape[3]),
            jnp.dtype(p1["w"].dtype).itemsize)
    if h % tile_rows:
        raise ValueError(f"tile_rows={tile_rows} must divide H={h}")

    x = jnp.transpose(x_nchw, (0, 2, 3, 1))                        # NCHW -> NHWC
    x = jnp.pad(x, ((0, 0), (0, 0), (0, 0), (0, cin_p - cin)))     # channel pad
    # TODO(synk): for small late-UNet shapes, fuse both stages into a single
    # pallas_call (intermediate kept in VMEM) to skip one HBM round trip.
    for p in (p1, p2):
        x = _stage(x, p, tile_rows)
    return jnp.transpose(x[..., :cout], (0, 3, 1, 2))              # NHWC -> NCHW


def _ref_stage(x_nchw, p):
    dn = ("NCHW", "OIHW", "NCHW")
    y = lax.conv_general_dilated(x_nchw, p["_w_dw_dense"], (1, 1),
                                 ((1, 1), (1, 1)), dimension_numbers=dn)
    y = y + p["_b_dw"][None, :, None, None]
    y = lax.conv_general_dilated(y, p["_w_pw"], (1, 1),
                                 ((0, 0), (0, 0)), dimension_numbers=dn)
    y = y + p["_b_pw"][None, :, None, None]
    mu = y.mean(axis=(0, 2, 3), keepdims=True)
    var = ((y - mu) ** 2).mean(axis=(0, 2, 3), keepdims=True)
    y = (y - mu) / jnp.sqrt(var + _BN_EPS)
    y = y * p["_gamma"][None, :, None, None] + p["_beta"][None, :, None, None]
    return jnp.maximum(y, 0.0)


def double_conv_ref(x_nchw, p1, p2):
    return _ref_stage(_ref_stage(x_nchw, p1), p2)


# ----------------------------------------------------------------------------
if __name__ == "__main__":
    key = jax.random.PRNGKey(0)
    k_x, k_p1, k_p2 = jax.random.split(key, 3)

    batch, in_channels, out_channels, spatial = 2, 4, 8, 16
    mid_channels = out_channels  # DoubleConv default

    x = jax.random.normal(k_x, (batch, in_channels, spatial, spatial), jnp.float32)
    p1 = make_stage_params(k_p1, in_channels, mid_channels)
    p2 = make_stage_params(k_p2, mid_channels, out_channels)

    # tile_rows=8 -> 2 row tiles per image, exercising the halo-slab pipeline
    # and the cross-tile BatchNorm partial-stat reduction.
    out = double_conv_pallas(x, p1, p2, tile_rows=8)
    out = jax.block_until_ready(out)

    ref = jax.block_until_ready(double_conv_ref(x, p1, p2))
    assert out.shape == (batch, out_channels, spatial, spatial), out.shape
    max_err = float(jnp.max(jnp.abs(out - ref)))
    assert jnp.allclose(out, ref, atol=5e-4, rtol=5e-4), max_err

    print("KERNEL_OK")
</pallas_src>

<mosaic_0001>
module attributes {stable_mosaic.version = 11 : i64} {
  func.func @kernel(%arg0: i32, %arg1: i32, %arg2: memref<2x18x18x128xf32, #tpu.memory_space<any>>, %arg3: memref<3x3x128x128xf32, #tpu.memory_space<vmem>>, %arg4: memref<1x128xf32, #tpu.memory_space<vmem>>, %arg5: memref<1x8x16x128xf32, #tpu.memory_space<vmem>>, %arg6: memref<1x1x2x128xf32, #tpu.memory_space<vmem>>, %arg7: memref<2x10x18x128xf32, #tpu.memory_space<vmem>>, %arg8: memref<2x!tpu.dma_semaphore, #tpu.memory_space<semaphore_mem>>) attributes {dimension_semantics = [#tpu.dimension_semantics<parallel>, #tpu.dimension_semantics<arbitrary>], iteration_bounds = array<i64: 2, 2>, scalar_prefetch = 0 : i64, scratch_operands = 2 : i64, tpu.core_type = #tpu.core_type<tc>, window_params = [{}, {pipeline_mode = #tpu.pipeline_mode<synchronous>, transform_indices = @transform_1, window_bounds = array<i64: 3, 3, 128, 128>}, {pipeline_mode = #tpu.pipeline_mode<synchronous>, transform_indices = @transform_2, window_bounds = array<i64: 1, 128>}, {transform_indices = @transform_3, window_bounds = array<i64: 1, 8, 16, 128>}, {transform_indices = @transform_4, window_bounds = array<i64: 1, 1, 2, 128>}]} {
    %c2_i32 = arith.constant 2 : i32
    %c0_i32 = arith.constant 0 : i32
    %0 = arith.cmpi eq, %c2_i32, %c0_i32 : i32
    %c1_i32 = arith.constant 1 : i32
    %1 = arith.select %0, %c1_i32, %c2_i32 : i32
    %2 = arith.remsi %arg1, %1 : i32
    %c0_i32_0 = arith.constant 0 : i32
    %3 = arith.cmpi ne, %2, %c0_i32_0 : i32
    %c0_i32_1 = arith.constant 0 : i32
    %4 = arith.cmpi slt, %2, %c0_i32_1 : i32
    %c0_i32_2 = arith.constant 0 : i32
    %5 = arith.cmpi slt, %1, %c0_i32_2 : i32
    %6 = arith.xori %4, %5 : i1
    %7 = arith.andi %6, %3 : i1
    %8 = arith.addi %2, %1 : i32
    %9 = arith.select %7, %8, %2 : i32
    %c0_i32_3 = arith.constant 0 : i32
    %10 = arith.cmpi eq, %arg1, %c0_i32_3 : i32
    %11 = arith.extui %10 : i1 to i32
    %c0_i32_4 = arith.constant 0 : i32
    %12 = arith.cmpi ne, %11, %c0_i32_4 : i32
    scf.if %12 {
      %c0_i32_122 = arith.constant 0 : i32
      %c0_i32_123 = arith.constant 0 : i32
      %c0_i32_124 = arith.constant 0 : i32
      %c0_i32_125 = arith.constant 0 : i32
      %c0_i32_126 = arith.constant 0 : i32
      %109 = tpu.memref_slice %arg2[%arg0, %c0_i32_124, %c0_i32_125, %c0_i32_126] : memref<2x18x18x128xf32, #tpu.memory_space<any>> -> memref<1x10x18x128xf32, #tpu.memory_space<any>>
      %110 = tpu.memref_squeeze %109 : memref<1x10x18x128xf32, #tpu.memory_space<any>> -> memref<10x18x128xf32, #tpu.memory_space<any>>
      %c0_i32_127 = arith.constant 0 : i32
      %c0_i32_128 = arith.constant 0 : i32
      %c0_i32_129 = arith.constant 0 : i32
      %111 = tpu.memref_slice %arg7[%c0_i32_122, %c0_i32_127, %c0_i32_128, %c0_i32_129] : memref<2x10x18x128xf32, #tpu.memory_space<vmem>> -> memref<1x10x18x128xf32, #tpu.memory_space<vmem>>
      %112 = tpu.memref_squeeze %111 : memref<1x10x18x128xf32, #tpu.memory_space<vmem>> -> memref<10x18x128xf32, #tpu.memory_space<vmem>>
      %113 = tpu.memref_slice %arg8[%c0_i32_123] : memref<2x!tpu.dma_semaphore, #tpu.memory_space<semaphore_mem>> -> memref<1x!tpu.dma_semaphore, #tpu.memory_space<semaphore_mem>>
      %114 = tpu.memref_squeeze %113 : memref<1x!tpu.dma_semaphore, #tpu.memory_space<semaphore_mem>> -> memref<!tpu.dma_semaphore, #tpu.memory_space<semaphore_mem>>
      tpu.enqueue_dma source(%110 : memref<10x18x128xf32, #tpu.memory_space<any>>) target(%112 : memref<10x18x128xf32, #tpu.memory_space<vmem>>) target_semaphore(%114 : memref<!tpu.dma_semaphore, #tpu.memory_space<semaphore_mem>>)
    } else {
    }
    %c0_i32_5 = arith.constant 0 : i32
    %c0_i32_6 = arith.constant 0 : i32
    %c0_i32_7 = arith.constant 0 : i32
    %13 = tpu.memref_slice %arg2[%arg0, %c0_i32_5, %c0_i32_6, %c0_i32_7] : memref<2x18x18x128xf32, #tpu.memory_space<any>> -> memref<1x10x18x128xf32, #tpu.memory_space<any>>
    %14 = tpu.memref_squeeze %13 : memref<1x10x18x128xf32, #tpu.memory_space<any>> -> memref<10x18x128xf32, #tpu.memory_space<any>>
    %c0_i32_8 = arith.constant 0 : i32
    %c0_i32_9 = arith.constant 0 : i32
    %c0_i32_10 = arith.constant 0 : i32
    %15 = tpu.memref_slice %arg7[%9, %c0_i32_8, %c0_i32_9, %c0_i32_10] : memref<2x10x18x128xf32, #tpu.memory_space<vmem>> -> memref<1x10x18x128xf32, #tpu.memory_space<vmem>>
    %16 = tpu.memref_squeeze %15 : memref<1x10x18x128xf32, #tpu.memory_space<vmem>> -> memref<10x18x128xf32, #tpu.memory_space<vmem>>
    %17 = tpu.memref_slice %arg8[%9] : memref<2x!tpu.dma_semaphore, #tpu.memory_space<semaphore_mem>> -> memref<1x!tpu.dma_semaphore, #tpu.memory_space<semaphore_mem>>
    %18 = tpu.memref_squeeze %17 : memref<1x!tpu.dma_semaphore, #tpu.memory_space<semaphore_mem>> -> memref<!tpu.dma_semaphore, #tpu.memory_space<semaphore_mem>>
    tpu.wait_dma2 semaphore(%18 : memref<!tpu.dma_semaphore, #tpu.memory_space<semaphore_mem>>) src(%14 : memref<10x18x128xf32, #tpu.memory_space<any>>) dst(%16 : memref<10x18x128xf32, #tpu.memory_space<vmem>>)
    %c1_i32_11 = arith.constant 1 : i32
    %19 = arith.addi %arg1, %c1_i32_11 : i32
    %c2_i32_12 = arith.constant 2 : i32
    %20 = arith.cmpi slt, %19, %c2_i32_12 : i32
    %21 = arith.extui %20 : i1 to i32
    %c0_i32_13 = arith.constant 0 : i32
    %22 = arith.cmpi ne, %21, %c0_i32_13 : i32
    scf.if %22 {
      %c1_i32_122 = arith.constant 1 : i32
      %109 = arith.addi %arg1, %c1_i32_122 : i32
      %c1_i32_123 = arith.constant 1 : i32
      %110 = arith.subi %c1_i32_123, %9 : i32
      %c8_i32 = arith.constant 8 : i32
      %111 = arith.muli %109, %c8_i32 : i32
      %c0_i32_124 = arith.constant 0 : i32
      %c0_i32_125 = arith.constant 0 : i32
      %112 = tpu.memref_slice %arg2[%arg0, %111, %c0_i32_124, %c0_i32_125] : memref<2x18x18x128xf32, #tpu.memory_space<any>> -> memref<1x10x18x128xf32, #tpu.memory_space<any>>
      %113 = tpu.memref_squeeze %112 : memref<1x10x18x128xf32, #tpu.memory_space<any>> -> memref<10x18x128xf32, #tpu.memory_space<any>>
      %c0_i32_126 = arith.constant 0 : i32
      %c0_i32_127 = arith.constant 0 : i32
      %c0_i32_128 = arith.constant 0 : i32
      %114 = tpu.memref_slice %arg7[%110, %c0_i32_126, %c0_i32_127, %c0_i32_128] : memref<2x10x18x128xf32, #tpu.memory_space<vmem>> -> memref<1x10x18x128xf32, #tpu.memory_space<vmem>>
      %115 = tpu.memref_squeeze %114 : memref<1x10x18x128xf32, #tpu.memory_space<vmem>> -> memref<10x18x128xf32, #tpu.memory_space<vmem>>
      %116 = tpu.memref_slice %arg8[%110] : memref<2x!tpu.dma_semaphore, #tpu.memory_space<semaphore_mem>> -> memref<1x!tpu.dma_semaphore, #tpu.memory_space<semaphore_mem>>
      %117 = tpu.memref_squeeze %116 : memref<1x!tpu.dma_semaphore, #tpu.memory_space<semaphore_mem>> -> memref<!tpu.dma_semaphore, #tpu.memory_space<semaphore_mem>>
      tpu.enqueue_dma source(%113 : memref<10x18x128xf32, #tpu.memory_space<any>>) target(%115 : memref<10x18x128xf32, #tpu.memory_space<vmem>>) target_semaphore(%117 : memref<!tpu.dma_semaphore, #tpu.memory_space<semaphore_mem>>)
    } else {
    }
    %cst = arith.constant 0.000000e+00 : f32
    %23 = vector.broadcast %cst : f32 to vector<128x128xf32>
    %c0_i32_14 = arith.constant 0 : i32
    %c0_i32_15 = arith.constant 0 : i32
    %c0_i32_16 = arith.constant 0 : i32
    %24 = tpu.memref_slice %arg7[%9, %c0_i32_14, %c0_i32_15, %c0_i32_16] : memref<2x10x18x128xf32, #tpu.memory_space<vmem>> -> memref<1x10x18x128xf32, #tpu.memory_space<vmem>>
    %25 = tpu.memref_squeeze %24 : memref<1x10x18x128xf32, #tpu.memory_space<vmem>> -> memref<10x18x128xf32, #tpu.memory_space<vmem>>
    %c0 = arith.constant 0 : index
    %c0_17 = arith.constant 0 : index
    %c0_18 = arith.constant 0 : index
    %26 = vector.load %25[%c0, %c0_17, %c0_18] : memref<10x18x128xf32, #tpu.memory_space<vmem>>, vector<8x16x128xf32>
    %27 = vector.shape_cast %26 : vector<8x16x128xf32> to vector<128x128xf32>
    %c0_19 = arith.constant 0 : index
    %c0_20 = arith.constant 0 : index
    %c0_21 = arith.constant 0 : index
    %c0_22 = arith.constant 0 : index
    %28 = vector.load %arg3[%c0_19, %c0_20, %c0_21, %c0_22] : memref<3x3x128x128xf32, #tpu.memory_space<vmem>>, vector<1x1x128x128xf32>
    %29 = vector.shape_cast %28 : vector<1x1x128x128xf32> to vector<128x128xf32>
    %cst_23 = arith.constant dense<0.000000e+00> : vector<128x128xf32>
    %30 = tpu.matmul %27, %29, %cst_23 {dimension_numbers = #tpu.dot_dimension_numbers<[1], [0], [0], [1], [0, 0, 1, 1], [], []>} : vector<128x128xf32>, vector<128x128xf32>, vector<128x128xf32> -> vector<128x128xf32>
    %31 = arith.addf %23, %30 : vector<128x128xf32>
    %c0_i32_24 = arith.constant 0 : i32
    %c0_i32_25 = arith.constant 0 : i32
    %c0_i32_26 = arith.constant 0 : i32
    %32 = tpu.memref_slice %arg7[%9, %c0_i32_24, %c0_i32_25, %c0_i32_26] : memref<2x10x18x128xf32, #tpu.memory_space<vmem>> -> memref<1x10x18x128xf32, #tpu.memory_space<vmem>>
    %33 = tpu.memref_squeeze %32 : memref<1x10x18x128xf32, #tpu.memory_space<vmem>> -> memref<10x18x128xf32, #tpu.memory_space<vmem>>
    %c0_27 = arith.constant 0 : index
    %c1 = arith.constant 1 : index
    %c0_28 = arith.constant 0 : index
    %34 = vector.load %33[%c0_27, %c1, %c0_28] : memref<10x18x128xf32, #tpu.memory_space<vmem>>, vector<8x16x128xf32>
    %35 = vector.shape_cast %34 : vector<8x16x128xf32> to vector<128x128xf32>
    %c0_29 = arith.constant 0 : index
    %c1_30 = arith.constant 1 : index
    %c0_31 = arith.constant 0 : index
    %c0_32 = arith.constant 0 : index
    %36 = vector.load %arg3[%c0_29, %c1_30, %c0_31, %c0_32] : memref<3x3x128x128xf32, #tpu.memory_space<vmem>>, vector<1x1x128x128xf32>
    %37 = vector.shape_cast %36 : vector<1x1x128x128xf32> to vector<128x128xf32>
    %cst_33 = arith.constant dense<0.000000e+00> : vector<128x128xf32>
    %38 = tpu.matmul %35, %37, %cst_33 {dimension_numbers = #tpu.dot_dimension_numbers<[1], [0], [0], [1], [0, 0, 1, 1], [], []>} : vector<128x128xf32>, vector<128x128xf32>, vector<128x128xf32> -> vector<128x128xf32>
    %39 = arith.addf %31, %38 : vector<128x128xf32>
    %c0_i32_34 = arith.constant 0 : i32
    %c0_i32_35 = arith.constant 0 : i32
    %c0_i32_36 = arith.constant 0 : i32
    %40 = tpu.memref_slice %arg7[%9, %c0_i32_34, %c0_i32_35, %c0_i32_36] : memref<2x10x18x128xf32, #tpu.memory_space<vmem>> -> memref<1x10x18x128xf32, #tpu.memory_space<vmem>>
    %41 = tpu.memref_squeeze %40 : memref<1x10x18x128xf32, #tpu.memory_space<vmem>> -> memref<10x18x128xf32, #tpu.memory_space<vmem>>
    %c0_37 = arith.constant 0 : index
    %c2 = arith.constant 2 : index
    %c0_38 = arith.constant 0 : index
    %42 = vector.load %41[%c0_37, %c2, %c0_38] : memref<10x18x128xf32, #tpu.memory_space<vmem>>, vector<8x16x128xf32>
    %43 = vector.shape_cast %42 : vector<8x16x128xf32> to vector<128x128xf32>
    %c0_39 = arith.constant 0 : index
    %c2_40 = arith.constant 2 : index
    %c0_41 = arith.constant 0 : index
    %c0_42 = arith.constant 0 : index
    %44 = vector.load %arg3[%c0_39, %c2_40, %c0_41, %c0_42] : memref<3x3x128x128xf32, #tpu.memory_space<vmem>>, vector<1x1x128x128xf32>
    %45 = vector.shape_cast %44 : vector<1x1x128x128xf32> to vector<128x128xf32>
    %cst_43 = arith.constant dense<0.000000e+00> : vector<128x128xf32>
    %46 = tpu.matmul %43, %45, %cst_43 {dimension_numbers = #tpu.dot_dimension_numbers<[1], [0], [0], [1], [0, 0, 1, 1], [], []>} : vector<128x128xf32>, vector<128x128xf32>, vector<128x128xf32> -> vector<128x128xf32>
    %47 = arith.addf %39, %46 : vector<128x128xf32>
    %c0_i32_44 = arith.constant 0 : i32
    %c0_i32_45 = arith.constant 0 : i32
    %c0_i32_46 = arith.constant 0 : i32
    %48 = tpu.memref_slice %arg7[%9, %c0_i32_44, %c0_i32_45, %c0_i32_46] : memref<2x10x18x128xf32, #tpu.memory_space<vmem>> -> memref<1x10x18x128xf32, #tpu.memory_space<vmem>>
    %49 = tpu.memref_squeeze %48 : memref<1x10x18x128xf32, #tpu.memory_space<vmem>> -> memref<10x18x128xf32, #tpu.memory_space<vmem>>
    %c1_47 = arith.constant 1 : index
    %c0_48 = arith.constant 0 : index
    %c0_49 = arith.constant 0 : index
    %50 = vector.load %49[%c1_47, %c0_48, %c0_49] : memref<10x18x128xf32, #tpu.memory_space<vmem>>, vector<8x16x128xf32>
    %51 = vector.shape_cast %50 : vector<8x16x128xf32> to vector<128x128xf32>
    %c1_50 = arith.constant 1 : index
    %c0_51 = arith.constant 0 : index
    %c0_52 = arith.constant 0 : index
    %c0_53 = arith.constant 0 : index
    %52 = vector.load %arg3[%c1_50, %c0_51, %c0_52, %c0_53] : memref<3x3x128x128xf32, #tpu.memory_space<vmem>>, vector<1x1x128x128xf32>
    %53 = vector.shape_cast %52 : vector<1x1x128x128xf32> to vector<128x128xf32>
    %cst_54 = arith.constant dense<0.000000e+00> : vector<128x128xf32>
    %54 = tpu.matmul %51, %53, %cst_54 {dimension_numbers = #tpu.dot_dimension_numbers<[1], [0], [0], [1], [0, 0, 1, 1], [], []>} : vector<128x128xf32>, vector<128x128xf32>, vector<128x128xf32> -> vector<128x128xf32>
    %55 = arith.addf %47, %54 : vector<128x128xf32>
    %c0_i32_55 = arith.constant 0 : i32
    %c0_i32_56 = arith.constant 0 : i32
    %c0_i32_57 = arith.constant 0 : i32
    %56 = tpu.memref_slice %arg7[%9, %c0_i32_55, %c0_i32_56, %c0_i32_57] : memref<2x10x18x128xf32, #tpu.memory_space<vmem>> -> memref<1x10x18x128xf32, #tpu.memory_space<vmem>>
    %57 = tpu.memref_squeeze %56 : memref<1x10x18x128xf32, #tpu.memory_space<vmem>> -> memref<10x18x128xf32, #tpu.memory_space<vmem>>
    %c1_58 = arith.constant 1 : index
    %c1_59 = arith.constant 1 : index
    %c0_60 = arith.constant 0 : index
    %58 = vector.load %57[%c1_58, %c1_59, %c0_60] : memref<10x18x128xf32, #tpu.memory_space<vmem>>, vector<8x16x128xf32>
    %59 = vector.shape_cast %58 : vector<8x16x128xf32> to vector<128x128xf32>
    %c1_61 = arith.constant 1 : index
    %c1_62 = arith.constant 1 : index
    %c0_63 = arith.constant 0 : index
    %c0_64 = arith.constant 0 : index
    %60 = vector.load %arg3[%c1_61, %c1_62, %c0_63, %c0_64] : memref<3x3x128x128xf32, #tpu.memory_space<vmem>>, vector<1x1x128x128xf32>
    %61 = vector.shape_cast %60 : vector<1x1x128x128xf32> to vector<128x128xf32>
    %cst_65 = arith.constant dense<0.000000e+00> : vector<128x128xf32>
    %62 = tpu.matmul %59, %61, %cst_65 {dimension_numbers = #tpu.dot_dimension_numbers<[1], [0], [0], [1], [0, 0, 1, 1], [], []>} : vector<128x128xf32>, vector<128x128xf32>, vector<128x128xf32> -> vector<128x128xf32>
    %63 = arith.addf %55, %62 : vector<128x128xf32>
    %c0_i32_66 = arith.constant 0 : i32
    %c0_i32_67 = arith.constant 0 : i32
    %c0_i32_68 = arith.constant 0 : i32
    %64 = tpu.memref_slice %arg7[%9, %c0_i32_66, %c0_i32_67, %c0_i32_68] : memref<2x10x18x128xf32, #tpu.memory_space<vmem>> -> memref<1x10x18x128xf32, #tpu.memory_space<vmem>>
    %65 = tpu.memref_squeeze %64 : memref<1x10x18x128xf32, #tpu.memory_space<vmem>> -> memref<10x18x128xf32, #tpu.memory_space<vmem>>
    %c1_69 = arith.constant 1 : index
    %c2_70 = arith.constant 2 : index
    %c0_71 = arith.constant 0 : index
    %66 = vector.load %65[%c1_69, %c2_70, %c0_71] : memref<10x18x128xf32, #tpu.memory_space<vmem>>, vector<8x16x128xf32>
    %67 = vector.shape_cast %66 : vector<8x16x128xf32> to vector<128x128xf32>
    %c1_72 = arith.constant 1 : index
    %c2_73 = arith.constant 2 : index
    %c0_74 = arith.constant 0 : index
    %c0_75 = arith.constant 0 : index
    %68 = vector.load %arg3[%c1_72, %c2_73, %c0_74, %c0_75] : memref<3x3x128x128xf32, #tpu.memory_space<vmem>>, vector<1x1x128x128xf32>
    %69 = vector.shape_cast %68 : vector<1x1x128x128xf32> to vector<128x128xf32>
    %cst_76 = arith.constant dense<0.000000e+00> : vector<128x128xf32>
    %70 = tpu.matmul %67, %69, %cst_76 {dimension_numbers = #tpu.dot_dimension_numbers<[1], [0], [0], [1], [0, 0, 1, 1], [], []>} : vector<128x128xf32>, vector<128x128xf32>, vector<128x128xf32> -> vector<128x128xf32>
    %71 = arith.addf %63, %70 : vector<128x128xf32>
    %c0_i32_77 = arith.constant 0 : i32
    %c0_i32_78 = arith.constant 0 : i32
    %c0_i32_79 = arith.constant 0 : i32
    %72 = tpu.memref_slice %arg7[%9, %c0_i32_77, %c0_i32_78, %c0_i32_79] : memref<2x10x18x128xf32, #tpu.memory_space<vmem>> -> memref<1x10x18x128xf32, #tpu.memory_space<vmem>>
    %73 = tpu.memref_squeeze %72 : memref<1x10x18x128xf32, #tpu.memory_space<vmem>> -> memref<10x18x128xf32, #tpu.memory_space<vmem>>
    %c2_80 = arith.constant 2 : index
    %c0_81 = arith.constant 0 : index
    %c0_82 = arith.constant 0 : index
    %74 = vector.load %73[%c2_80, %c0_81, %c0_82] : memref<10x18x128xf32, #tpu.memory_space<vmem>>, vector<8x16x128xf32>
    %75 = vector.shape_cast %74 : vector<8x16x128xf32> to vector<128x128xf32>
    %c2_83 = arith.constant 2 : index
    %c0_84 = arith.constant 0 : index
    %c0_85 = arith.constant 0 : index
    %c0_86 = arith.constant 0 : index
    %76 = vector.load %arg3[%c2_83, %c0_84, %c0_85, %c0_86] : memref<3x3x128x128xf32, #tpu.memory_space<vmem>>, vector<1x1x128x128xf32>
    %77 = vector.shape_cast %76 : vector<1x1x128x128xf32> to vector<128x128xf32>
    %cst_87 = arith.constant dense<0.000000e+00> : vector<128x128xf32>
    %78 = tpu.matmul %75, %77, %cst_87 {dimension_numbers = #tpu.dot_dimension_numbers<[1], [0], [0], [1], [0, 0, 1, 1], [], []>} : vector<128x128xf32>, vector<128x128xf32>, vector<128x128xf32> -> vector<128x128xf32>
    %79 = arith.addf %71, %78 : vector<128x128xf32>
    %c0_i32_88 = arith.constant 0 : i32
    %c0_i32_89 = arith.constant 0 : i32
    %c0_i32_90 = arith.constant 0 : i32
    %80 = tpu.memref_slice %arg7[%9, %c0_i32_88, %c0_i32_89, %c0_i32_90] : memref<2x10x18x128xf32, #tpu.memory_space<vmem>> -> memref<1x10x18x128xf32, #tpu.memory_space<vmem>>
    %81 = tpu.memref_squeeze %80 : memref<1x10x18x128xf32, #tpu.memory_space<vmem>> -> memref<10x18x128xf32, #tpu.memory_space<vmem>>
    %c2_91 = arith.constant 2 : index
    %c1_92 = arith.constant 1 : index
    %c0_93 = arith.constant 0 : index
    %82 = vector.load %81[%c2_91, %c1_92, %c0_93] : memref<10x18x128xf32, #tpu.memory_space<vmem>>, vector<8x16x128xf32>
    %83 = vector.shape_cast %82 : vector<8x16x128xf32> to vector<128x128xf32>
    %c2_94 = arith.constant 2 : index
    %c1_95 = arith.constant 1 : index
    %c0_96 = arith.constant 0 : index
    %c0_97 = arith.constant 0 : index
    %84 = vector.load %arg3[%c2_94, %c1_95, %c0_96, %c0_97] : memref<3x3x128x128xf32, #tpu.memory_space<vmem>>, vector<1x1x128x128xf32>
    %85 = vector.shape_cast %84 : vector<1x1x128x128xf32> to vector<128x128xf32>
    %cst_98 = arith.constant dense<0.000000e+00> : vector<128x128xf32>
    %86 = tpu.matmul %83, %85, %cst_98 {dimension_numbers = #tpu.dot_dimension_numbers<[1], [0], [0], [1], [0, 0, 1, 1], [], []>} : vector<128x128xf32>, vector<128x128xf32>, vector<128x128xf32> -> vector<128x128xf32>
    %87 = arith.addf %79, %86 : vector<128x128xf32>
    %c0_i32_99 = arith.constant 0 : i32
    %c0_i32_100 = arith.constant 0 : i32
    %c0_i32_101 = arith.constant 0 : i32
    %88 = tpu.memref_slice %arg7[%9, %c0_i32_99, %c0_i32_100, %c0_i32_101] : memref<2x10x18x128xf32, #tpu.memory_space<vmem>> -> memref<1x10x18x128xf32, #tpu.memory_space<vmem>>
    %89 = tpu.memref_squeeze %88 : memref<1x10x18x128xf32, #tpu.memory_space<vmem>> -> memref<10x18x128xf32, #tpu.memory_space<vmem>>
    %c2_102 = arith.constant 2 : index
    %c2_103 = arith.constant 2 : index
    %c0_104 = arith.constant 0 : index
    %90 = vector.load %89[%c2_102, %c2_103, %c0_104] : memref<10x18x128xf32, #tpu.memory_space<vmem>>, vector<8x16x128xf32>
    %91 = vector.shape_cast %90 : vector<8x16x128xf32> to vector<128x128xf32>
    %c2_105 = arith.constant 2 : index
    %c2_106 = arith.constant 2 : index
    %c0_107 = arith.constant 0 : index
    %c0_108 = arith.constant 0 : index
    %92 = vector.load %arg3[%c2_105, %c2_106, %c0_107, %c0_108] : memref<3x3x128x128xf32, #tpu.memory_space<vmem>>, vector<1x1x128x128xf32>
    %93 = vector.shape_cast %92 : vector<1x1x128x128xf32> to vector<128x128xf32>
    %cst_109 = arith.constant dense<0.000000e+00> : vector<128x128xf32>
    %94 = tpu.matmul %91, %93, %cst_109 {dimension_numbers = #tpu.dot_dimension_numbers<[1], [0], [0], [1], [0, 0, 1, 1], [], []>} : vector<128x128xf32>, vector<128x128xf32>, vector<128x128xf32> -> vector<128x128xf32>
    %95 = arith.addf %87, %94 : vector<128x128xf32>
    %c0_110 = arith.constant 0 : index
    %c0_111 = arith.constant 0 : index
    %96 = vector.load %arg4[%c0_110, %c0_111] : memref<1x128xf32, #tpu.memory_space<vmem>>, vector<1x128xf32>
    %97 = vector.broadcast %96 : vector<1x128xf32> to vector<128x128xf32>
    %98 = arith.addf %95, %97 : vector<128x128xf32>
    %99 = vector.shape_cast %98 : vector<128x128xf32> to vector<1x8x16x128xf32>
    %c0_112 = arith.constant 0 : index
    %c0_113 = arith.constant 0 : index
    %c0_114 = arith.constant 0 : index
    %c0_115 = arith.constant 0 : index
    %100 = vector.load %arg5[%c0_112, %c0_113, %c0_114, %c0_115] : memref<1x8x16x128xf32, #tpu.memory_space<vmem>>, vector<1x8x16x128xf32>
    tpu.vector_store %arg5[%c0_112, %c0_113, %c0_114, %c0_115], %99 {strides = array<i32>} : memref<1x8x16x128xf32, #tpu.memory_space<vmem>>, vector<1x8x16x128xf32>,
    %cst_116 = arith.constant dense<0.000000e+00> : vector<128xf32>
    %101 = vector.multi_reduction <add>, %98, %cst_116 [0] : vector<128x128xf32> to vector<128xf32>
    %102 = vector.shape_cast %101 : vector<128xf32> to vector<1x128xf32>
    %103 = arith.mulf %98, %98 : vector<128x128xf32>
    %cst_117 = arith.constant dense<0.000000e+00> : vector<128xf32>
    %104 = vector.multi_reduction <add>, %103, %cst_117 [0] : vector<128x128xf32> to vector<128xf32>
    %105 = vector.shape_cast %104 : vector<128xf32> to vector<1x128xf32>
    %106 = tpu.concatenate %102, %105 in 0 : vector<1x128xf32>, vector<1x128xf32> -> vector<2x128xf32>
    %107 = vector.shape_cast %106 : vector<2x128xf32> to vector<1x1x2x128xf32>
    %c0_118 = arith.constant 0 : index
    %c0_119 = arith.constant 0 : index
    %c0_120 = arith.constant 0 : index
    %c0_121 = arith.constant 0 : index
    %108 = vector.load %arg6[%c0_118, %c0_119, %c0_120, %c0_121] : memref<1x1x2x128xf32, #tpu.memory_space<vmem>>, vector<1x1x2x128xf32>
    tpu.vector_store %arg6[%c0_118, %c0_119, %c0_120, %c0_121], %107 {strides = array<i32>} : memref<1x1x2x128xf32, #tpu.memory_space<vmem>>, vector<1x1x2x128xf32>,
    return
  }
  func.func @transform_1(%arg0: i32, %arg1: i32) -> (i32, i32, i32, i32) {
    %c0_i32 = arith.constant 0 : i32
    %c0_i32_0 = arith.constant 0 : i32
    %c0_i32_1 = arith.constant 0 : i32
    %c0_i32_2 = arith.constant 0 : i32
    %c0_i32_3 = arith.constant 0 : i32
    return %c0_i32, %c0_i32_0, %c0_i32_1, %c0_i32_2 : i32, i32, i32, i32
  }
  func.func @transform_2(%arg0: i32, %arg1: i32) -> (i32, i32) {
    %c0_i32 = arith.constant 0 : i32
    %c0_i32_0 = arith.constant 0 : i32
    %c0_i32_1 = arith.constant 0 : i32
    return %c0_i32, %c0_i32_0 : i32, i32
  }
  func.func @transform_3(%arg0: i32, %arg1: i32) -> (i32, i32, i32, i32) {
    %c0_i32 = arith.constant 0 : i32
    %c0_i32_0 = arith.constant 0 : i32
    %c0_i32_1 = arith.constant 0 : i32
    return %arg0, %arg1, %c0_i32, %c0_i32_0 : i32, i32, i32, i32
  }
  func.func @transform_4(%arg0: i32, %arg1: i32) -> (i32, i32, i32, i32) {
    %c0_i32 = arith.constant 0 : i32
    %c0_i32_0 = arith.constant 0 : i32
    %c0_i32_1 = arith.constant 0 : i32
    return %arg0, %arg1, %c0_i32, %c0_i32_0 : i32, i32, i32, i32
  }
}

module attributes {stable_mosaic.version = 11 : i64} {
  func.func @_bn_relu_kernel(%arg0: i32, %arg1: i32, %arg2: memref<1x8x16x128xf32, #tpu.memory_space<vmem>>, %arg3: memref<1x128xf32, #tpu.memory_space<vmem>>, %arg4: memref<1x128xf32, #tpu.memory_space<vmem>>, %arg5: memref<1x8x16x128xf32, #tpu.memory_space<vmem>>) attributes {dimension_semantics = [#tpu.dimension_semantics<parallel>, #tpu.dimension_semantics<parallel>], iteration_bounds = array<i64: 2, 2>, scalar_prefetch = 0 : i64, scratch_operands = 0 : i64, tpu.core_type = #tpu.core_type<tc>, window_params = [{transform_indices = @transform_0, window_bounds = array<i64: 1, 8, 16, 128>}, {pipeline_mode = #tpu.pipeline_mode<synchronous>, transform_indices = @transform_1, window_bounds = array<i64: 1, 128>}, {pipeline_mode = #tpu.pipeline_mode<synchronous>, transform_indices = @transform_2, window_bounds = array<i64: 1, 128>}, {transform_indices = @transform_3, window_bounds = array<i64: 1, 8, 16, 128>}]} {
    %c0 = arith.constant 0 : index
    %c0_0 = arith.constant 0 : index
    %c0_1 = arith.constant 0 : index
    %c0_2 = arith.constant 0 : index
    %0 = vector.load %arg2[%c0, %c0_0, %c0_1, %c0_2] : memref<1x8x16x128xf32, #tpu.memory_space<vmem>>, vector<1x8x16x128xf32>
    %c0_3 = arith.constant 0 : index
    %c0_4 = arith.constant 0 : index
    %1 = vector.load %arg3[%c0_3, %c0_4] : memref<1x128xf32, #tpu.memory_space<vmem>>, vector<1x128xf32>
    %2 = vector.shape_cast %1 : vector<1x128xf32> to vector<1x1x1x128xf32>
    %3 = vector.broadcast %2 : vector<1x1x1x128xf32> to vector<1x8x16x128xf32>
    %4 = arith.mulf %0, %3 : vector<1x8x16x128xf32>
    %c0_5 = arith.constant 0 : index
    %c0_6 = arith.constant 0 : index
    %5 = vector.load %arg4[%c0_5, %c0_6] : memref<1x128xf32, #tpu.memory_space<vmem>>, vector<1x128xf32>
    %6 = vector.shape_cast %5 : vector<1x128xf32> to vector<1x1x1x128xf32>
    %7 = vector.broadcast %6 : vector<1x1x1x128xf32> to vector<1x8x16x128xf32>
    %8 = arith.addf %4, %7 : vector<1x8x16x128xf32>
    %cst = arith.constant 0.000000e+00 : f32
    %9 = vector.broadcast %cst : f32 to vector<1x8x16x128xf32>
    %10 = arith.maximumf %8, %9 : vector<1x8x16x128xf32>
    %c0_7 = arith.constant 0 : index
    %c0_8 = arith.constant 0 : index
    %c0_9 = arith.constant 0 : index
    %c0_10 = arith.constant 0 : index
    %11 = vector.load %arg5[%c0_7, %c0_8, %c0_9, %c0_10] : memref<1x8x16x128xf32, #tpu.memory_space<vmem>>, vector<1x8x16x128xf32>
    tpu.vector_store %arg5[%c0_7, %c0_8, %c0_9, %c0_10], %10 {strides = array<i32>} : memref<1x8x16x128xf32, #tpu.memory_space<vmem>>, vector<1x8x16x128xf32>,
    return
  }
  func.func @transform_0(%arg0: i32, %arg1: i32) -> (i32, i32, i32, i32) {
    %c0_i32 = arith.constant 0 : i32
    %c0_i32_0 = arith.constant 0 : i32
    %c0_i32_1 = arith.constant 0 : i32
    return %arg0, %arg1, %c0_i32, %c0_i32_0 : i32, i32, i32, i32
  }
  func.func @transform_1(%arg0: i32, %arg1: i32) -> (i32, i32) {
    %c0_i32 = arith.constant 0 : i32
    %c0_i32_0 = arith.constant 0 : i32
    %c0_i32_1 = arith.constant 0 : i32
    return %c0_i32, %c0_i32_0 : i32, i32
  }
  func.func @transform_2(%arg0: i32, %arg1: i32) -> (i32, i32) {
    %c0_i32 = arith.constant 0 : i32
    %c0_i32_0 = arith.constant 0 : i32
    %c0_i32_1 = arith.constant 0 : i32
    return %c0_i32, %c0_i32_0 : i32, i32
  }
  func.func @transform_3(%arg0: i32, %arg1: i32) -> (i32, i32, i32, i32) {
    %c0_i32 = arith.constant 0 : i32
    %c0_i32_0 = arith.constant 0 : i32
    %c0_i32_1 = arith.constant 0 : i32
    return %arg0, %arg1, %c0_i32, %c0_i32_0 : i32, i32, i32, i32
  }
}

</mosaic_0001>

<llo_original>
// kernel: double_conv_pallas.5
$region0: #{double_conv_pallas.5}
  #allocation0 [shape = 'u32[]', space=smem, size = 0x4, offset = 0x4, fixed_abs, tag = 'smem constant byte address 0x4 - core index']
  #allocation1 [shape = 'u32[144,128]{1,0:T(1,128)}', space=vmem, size = 0x12000, scoped, tag = 'internal scratch']
  %s0 = inlined_call_operand.vmem [shape: f32[2,16,16,128], index: 0, kind: input, shape index: {}]
  %s1 = inlined_call_operand.vmem [shape: f32[1,128], index: 1, kind: input, shape index: {}]
  %s2 = inlined_call_operand.vmem [shape: f32[1,128], index: 2, kind: input, shape index: {}]
  %s3 = inlined_call_operand.vmem [shape: f32[2,16,16,128], index: 3, kind: output, shape index: {}]
  %s4 = sld [smem:[#allocation0]]
  $region45: #{double_conv_pallas.5} parent=0
    _
  %s6 = ssub.s32 1, %s4
  %s7 = scalar_select 0, %s6, %s4
  loop: start=0, step=1, limit=6
  $region2: #{double_conv_pallas.5} parent=0 // loop_pre_header
    _
  $region3: #{double_conv_pallas.5} parent=0 // loop_header
    %s9 = sphi 0, %s13
    %p10 = scmp.ge.s32.totalorder %s9, 6
    %s16 = sphi 0, %s28
    %s17 = sphi 0, %s24
    %s18 = sphi 0, %s16
    %s19 = sphi 0, %s17
    %s20 = sphi 0, %s18
    %s21 = sphi 0, %s19
    %s33 = sphi 0, %s35
    %s36 = sphi 0, %s33
    %s37 = sphi 0, %s36
    %s53 = sphi 0, %s37
    %s57 = sphi 0, %s57
    %s59 = sphi 0, %s57
    %s60 = sphi 0, %s59
    %s74 = sphi 0, %s60
    %s78 = sphi 0, %s78
    %s80 = sphi 0, %s78
    %s81 = sphi 0, %s80
    %s95 = sphi 0, %s81
    %s103 = sphi 0, %s105
    %s106 = sphi 0, %s103
    %s107 = sphi 0, %s106
    %s123 = sphi 0, %s107
  $region4: #{double_conv_pallas.5} parent=0 // loop_header_branch
    %12 = sbr.rel (%p10) target = $region8
  $region5: #{double_conv_pallas.5} parent=0 // loop_body
    %s14 = ssub.s32 %s9, 1
    %s15 = ssub.s32 %s9, 2
    %s22 = sadd.s32 1, %s17
    %p23 = scmp.ge.s32.totalorder %s22, 2
    %s24 = scalar_select %p23, 0, %s22
    %s25 = sadd.s32 1, %s16
    %s26 = scalar_select %p23, %s25, %s16
    %p27 = scmp.ge.s32.totalorder %s26, 2
    %s28 = scalar_select %p27, 0, %s26
    %s29 = ssub.s32 %s16, %s28
    %s30 = ssub.s32 %s17, %s24
    %s31 = sor.u32 %s29, %s30
    %p32 = scmp.eq.s32.totalorder %s31, 0
    %s34 = sadd.s32 %s33, 1
    %s35 = scalar_select %p32, %s33, %s34
    %p38 = pneg %p32
    %p39 = scmp.eq.s32.totalorder %s9, 3
    %p40 = por %p38, %p39
    %p41 = scmp.ne.s32.totalorder %s33, %s36
    %p42 = scmp.eq.s32.totalorder %s9, 0
    %p43 = por %p41, %p42
    %p44 = scmp.ne.s32.totalorder %s33, %s36
    %p45 = scmp.eq.s32.totalorder %s14, 3
    %p46 = por %p44, %p45
    %p47 = scmp.ne.s32.totalorder %s36, %s37
    %p48 = scmp.eq.s32.totalorder %s14, 0
    %p49 = por %p47, %p48
    %p50 = scmp.ne.s32.totalorder %s36, %s37
    %p51 = scmp.eq.s32.totalorder %s15, 3
    %p52 = por %p50, %p51
    %p54 = scmp.ne.s32.totalorder %s37, %s53
    %p55 = scmp.eq.s32.totalorder %s15, 0
    %p56 = por %p54, %p55
    %s58 = sadd.s32 %s57, 1
    %p61 = scmp.eq.s32.totalorder %s9, 3
    %p62 = scmp.ne.s32.totalorder %s57, %s59
    %p63 = scmp.eq.s32.totalorder %s9, 0
    %p64 = por %p62, %p63
    %p65 = scmp.ne.s32.totalorder %s57, %s59
    %p66 = scmp.eq.s32.totalorder %s14, 3
    %p67 = por %p65, %p66
    %p68 = scmp.ne.s32.totalorder %s59, %s60
    %p69 = scmp.eq.s32.totalorder %s14, 0
    %p70 = por %p68, %p69
    %p71 = scmp.ne.s32.totalorder %s59, %s60
    %p72 = scmp.eq.s32.totalorder %s15, 3
    %p73 = por %p71, %p72
    %p75 = scmp.ne.s32.totalorder %s60, %s74
    %p76 = scmp.eq.s32.totalorder %s15, 0
    %p77 = por %p75, %p76
    %s79 = sadd.s32 %s78, 1
    %p82 = scmp.eq.s32.totalorder %s9, 3
    %p83 = scmp.ne.s32.totalorder %s78, %s80
    %p84 = scmp.eq.s32.totalorder %s9, 0
    %p85 = por %p83, %p84
    %p86 = scmp.ne.s32.totalorder %s78, %s80
    %p87 = scmp.eq.s32.totalorder %s14, 3
    %p88 = por %p86, %p87
    %p89 = scmp.ne.s32.totalorder %s80, %s81
    %p90 = scmp.eq.s32.totalorder %s14, 0
    %p91 = por %p89, %p90
    %p92 = scmp.ne.s32.totalorder %s80, %s81
    %p93 = scmp.eq.s32.totalorder %s15, 3
    %p94 = por %p92, %p93
    %p96 = scmp.ne.s32.totalorder %s81, %s95
    %p97 = scmp.eq.s32.totalorder %s15, 0
    %p98 = por %p96, %p97
    %s99 = ssub.s32 %s16, %s28
    %s100 = ssub.s32 %s17, %s24
    %s101 = sor.u32 %s99, %s100
    %p102 = scmp.eq.s32.totalorder %s101, 0
    %s104 = sadd.s32 %s103, 1
    %s105 = scalar_select %p102, %s103, %s104
    %p108 = pneg %p102
    %p109 = scmp.eq.s32.totalorder %s9, 3
    %p110 = por %p108, %p109
    %p111 = scmp.ne.s32.totalorder %s103, %s106
    %p112 = scmp.eq.s32.totalorder %s9, 0
    %p113 = por %p111, %p112
    %p114 = scmp.ne.s32.totalorder %s103, %s106
    %p115 = scmp.eq.s32.totalorder %s14, 3
    %p116 = por %p114, %p115
    %p117 = scmp.ne.s32.totalorder %s106, %s107
    %p118 = scmp.eq.s32.totalorder %s14, 0
    %p119 = por %p117, %p118
    %p120 = scmp.ne.s32.totalorder %s106, %s107
    %p121 = scmp.eq.s32.totalorder %s15, 3
    %p122 = por %p120, %p121
    %p124 = scmp.ne.s32.totalorder %s107, %s123
    %p125 = scmp.eq.s32.totalorder %s15, 0
    %p126 = por %p124, %p125
    %p127 = scmp.le.s32.totalorder 1, %s9
    %p128 = scmp.lt.s32.totalorder %s9, 5
    %p129 = pnand %p127, %p128
    %p130 = pneg %p129
    // Predicated region
    $region9: #{double_conv_pallas.5} parent=5 // pred_check
      _
    $region10: #{double_conv_pallas.5} parent=5 // pred_check_branch
      %132 = sbr.rel (%p129) target = $region12
    $region11: #{double_conv_pallas.5} parent=5 // pred_region
      %s133 = ssub.s32 %s9, 1
      // Predicated region
      $region13: #{double_conv_pallas.5} parent=11 // pred_check
        %p134 = pneg %p70
      $region14: #{double_conv_pallas.5} parent=11 // pred_check_branch
        %136 = sbr.rel (%p134) target = $region16
      $region15: #{double_conv_pallas.5} parent=11 // pred_region
        _
      $region16: #{double_conv_pallas.5} parent=11 // pred_fallthru
        _
      // Predicated region
      $region17: #{double_conv_pallas.5} parent=11 // pred_check
        %p137 = pneg %p91
      $region18: #{double_conv_pallas.5} parent=11 // pred_check_branch
        %139 = sbr.rel (%p137) target = $region20
      $region19: #{double_conv_pallas.5} parent=11 // pred_region
        _
      $region20: #{double_conv_pallas.5} parent=11 // pred_fallthru
        _
    $region12: #{double_conv_pallas.5} parent=5 // pred_fallthru
      _
    %p140 = scmp.lt.s32.totalorder %s9, 4
    // Predicated region
    $region21: #{double_conv_pallas.5} parent=5 // pred_check
      %p141 = pneg %p140
    $region22: #{double_conv_pallas.5} parent=5 // pred_check_branch
      %143 = sbr.rel (%p141) target = $region24
    $region23: #{double_conv_pallas.5} parent=5 // pred_region
      // Predicated region
      $region25: #{double_conv_pallas.5} parent=23 // pred_check
        %p144 = pneg %p43
      $region26: #{double_conv_pallas.5} parent=23 // pred_check_branch
        %146 = sbr.rel (%p144) target = $region28
      $region27: #{double_conv_pallas.5} parent=23 // pred_region
        %s147 = smul.u32 8, %s17
        %p148 = scmp.lt.s32.totalorder %s16, 1
        %s149 = scalar_select %p148, %s16, 1
        %p150 = scmp.lt.s32.totalorder %s147, 15
        %s151 = scalar_select %p150, %s147, 15
        %s152 = smul.addr %s151, 2
        %s153 = smul.addr %s149, 32
        %s154 = sadd.s32 %s152, %s153
        %s155 = smul.addr %s154, 8
        %s156 = scalar_lea.vmem %s0, %s155
        %s157 = smul.u32 8, %s17
      $region28: #{double_conv_pallas.5} parent=23 // pred_fallthru
        _
    $region24: #{double_conv_pallas.5} parent=5 // pred_fallthru
      _
    %p158 = scmp.le.s32.totalorder 1, %s9
    %p159 = scmp.lt.s32.totalorder %s9, 5
    %p160 = pnand %p158, %p159
    %p161 = pneg %p160
    // Predicated region
    $region29: #{double_conv_pallas.5} parent=5 // pred_check
      _
    $region30: #{double_conv_pallas.5} parent=5 // pred_check_branch
      %163 = sbr.rel (%p160) target = $region32
    $region31: #{double_conv_pallas.5} parent=5 // pred_region
      %s164 = ssub.s32 %s9, 1
      %s165 = smul.u32 8, %s19
      %p166 = scmp.lt.s32.totalorder %s18, 1
      %s167 = scalar_select %p166, %s18, 1
      %p168 = scmp.lt.s32.totalorder %s165, 15
      %s169 = scalar_select %p168, %s165, 15
      %s170 = smul.addr %s169, 2
      %s171 = smul.addr %s167, 32
      %s172 = sadd.s32 %s170, %s171
      %s173 = smul.addr %s172, 8
      %s174 = scalar_lea.vmem %s0, %s173
      %p175 = pneg %p49
      %p176 = pneg %p46
      %p177 = pneg %p70
      %p178 = pneg %p67
      %p179 = pneg %p91
      %p180 = pneg %p88
      %p181 = pneg %p119
      %p182 = pneg %p116
      %s183 = smul.u32 8, %s19
      %p184 = scmp.lt.s32.totalorder %s18, 1
      %s185 = scalar_select %p184, %s18, 1
      %p186 = scmp.lt.s32.totalorder %s183, 15
      %s187 = scalar_select %p186, %s183, 15
      %s188 = smul.addr %s187, 2
      %s189 = smul.addr %s185, 32
      %s190 = sadd.s32 %s188, %s189
      %s191 = smul.addr %s190, 8
      %s192 = scalar_lea.vmem %s3, %s191
      %s193 = smul.u32 8, %s19
      %p194 = scmp.lt.s32.totalorder %s18, 1
      %s195 = scalar_select %p194, %s18, 1
      %p196 = scmp.lt.s32.totalorder %s193, 15
      %s197 = scalar_select %p196, %s193, 15
      %s198 = smul.addr %s197, 2
      %s199 = smul.addr %s195, 32
      %s200 = sadd.s32 %s198, %s199
      %s201 = smul.addr %s200, 8
      %s202 = scalar_lea.vmem %s0, %s201
      %s203 = smul.u32 8, %s19
      %s204 = smul.u32 8, %s19
      %p205 = scmp.lt.s32.totalorder %s18, 1
      %s206 = scalar_select %p205, %s18, 1
      %p207 = scmp.lt.s32.totalorder %s204, 15
      %s208 = scalar_select %p207, %s204, 15
      %s209 = smul.addr %s208, 2
      %s210 = smul.addr %s206, 32
      %s211 = sadd.s32 %s209, %s210
      %s212 = smul.addr %s211, 8
      %s213 = scalar_lea.vmem %s3, %s212
      %s214 = smul.u32 8, %s19
      %v215 = vld [vmem:[%s202] sm:$0xff]
      %v216 = vld [vmem:[%s202 + $0x8] sm:$0xff]
      %v217 = vld [vmem:[%s202 + $0x10] sm:$0xff]
      %v218 = vld [vmem:[%s202 + $0x18] sm:$0xff]
      %v219 = vld [vmem:[%s202 + $0x20] sm:$0xff]
      %v220 = vld [vmem:[%s202 + $0x28] sm:$0xff]
      %v221 = vld [vmem:[%s202 + $0x30] sm:$0xff]
      %v222 = vld [vmem:[%s202 + $0x38] sm:$0xff]
      %v223 = vld [vmem:[%s202 + $0x40] sm:$0xff]
      %v224 = vld [vmem:[%s202 + $0x48] sm:$0xff]
      %v225 = vld [vmem:[%s202 + $0x50] sm:$0xff]
      %v226 = vld [vmem:[%s202 + $0x58] sm:$0xff]
      %v227 = vld [vmem:[%s202 + $0x60] sm:$0xff]
      %v228 = vld [vmem:[%s202 + $0x68] sm:$0xff]
      %v229 = vld [vmem:[%s202 + $0x70] sm:$0xff]
      %v230 = vld [vmem:[%s202 + $0x78] sm:$0xff]
      %v231 = vld [vmem:[%s1] sm:$0x1]
      %v233 = vlaneseq
      %v234 = vshrl.u32 %v233, 7
      %v235 = vsub.s32 0, %v234
      %v236 = vrot.slane %v231, %v235
      %v238 = vmul.f32 %v215, %v236
      %v239 = vmul.f32 %v216, %v236
      %v240 = vmul.f32 %v217, %v236
      %v241 = vmul.f32 %v218, %v236
      %v242 = vmul.f32 %v219, %v236
      %v243 = vmul.f32 %v220, %v236
      %v244 = vmul.f32 %v221, %v236
      %v245 = vmul.f32 %v222, %v236
      %v246 = vmul.f32 %v223, %v236
      %v247 = vmul.f32 %v224, %v236
      %v248 = vmul.f32 %v225, %v236
      %v249 = vmul.f32 %v226, %v236
      %v250 = vmul.f32 %v227, %v236
      %v251 = vmul.f32 %v228, %v236
      %v252 = vmul.f32 %v229, %v236
      %v253 = vmul.f32 %v230, %v236
      %v254 = vld [vmem:[%s2] sm:$0x1]
      %v256 = vlaneseq
      %v257 = vshrl.u32 %v256, 7
      %v258 = vsub.s32 0, %v257
      %v259 = vrot.slane %v254, %v258
      %v261 = vadd.f32 %v238, %v259
      %v262 = vadd.f32 %v239, %v259
      %v263 = vadd.f32 %v240, %v259
      %v264 = vadd.f32 %v241, %v259
      %v265 = vadd.f32 %v242, %v259
      %v266 = vadd.f32 %v243, %v259
      %v267 = vadd.f32 %v244, %v259
      %v268 = vadd.f32 %v245, %v259
      %v269 = vadd.f32 %v246, %v259
      %v270 = vadd.f32 %v247, %v259
      %v271 = vadd.f32 %v248, %v259
      %v272 = vadd.f32 %v249, %v259
      %v273 = vadd.f32 %v250, %v259
      %v274 = vadd.f32 %v251, %v259
      %v275 = vadd.f32 %v252, %v259
      %v276 = vadd.f32 %v253, %v259
      %v277 = vmax.f32 %v261, 0.0
      %v278 = vmax.f32 %v262, 0.0
      %v279 = vmax.f32 %v263, 0.0
      %v280 = vmax.f32 %v264, 0.0
      %v281 = vmax.f32 %v265, 0.0
      %v282 = vmax.f32 %v266, 0.0
      %v283 = vmax.f32 %v267, 0.0
      %v284 = vmax.f32 %v268, 0.0
      %v285 = vmax.f32 %v269, 0.0
      %v286 = vmax.f32 %v270, 0.0
      %v287 = vmax.f32 %v271, 0.0
      %v288 = vmax.f32 %v272, 0.0
      %v289 = vmax.f32 %v273, 0.0
      %v290 = vmax.f32 %v274, 0.0
      %v291 = vmax.f32 %v275, 0.0
      %v292 = vmax.f32 %v276, 0.0
      %293 = vst [vmem:[%s213] sm:$0xff] %v277
      %294 = vst [vmem:[%s213 + $0x8] sm:$0xff] %v278
      %295 = vst [vmem:[%s213 + $0x10] sm:$0xff] %v279
      %296 = vst [vmem:[%s213 + $0x18] sm:$0xff] %v280
      %297 = vst [vmem:[%s213 + $0x20] sm:$0xff] %v281
      %298 = vst [vmem:[%s213 + $0x28] sm:$0xff] %v282
      %299 = vst [vmem:[%s213 + $0x30] sm:$0xff] %v283
      %300 = vst [vmem:[%s213 + $0x38] sm:$0xff] %v284
      %301 = vst [vmem:[%s213 + $0x40] sm:$0xff] %v285
      %302 = vst [vmem:[%s213 + $0x48] sm:$0xff] %v286
      %303 = vst [vmem:[%s213 + $0x50] sm:$0xff] %v287
      %304 = vst [vmem:[%s213 + $0x58] sm:$0xff] %v288
      %305 = vst [vmem:[%s213 + $0x60] sm:$0xff] %v289
      %306 = vst [vmem:[%s213 + $0x68] sm:$0xff] %v290
      %307 = vst [vmem:[%s213 + $0x70] sm:$0xff] %v291
      %308 = vst [vmem:[%s213 + $0x78] sm:$0xff] %v292
      %s309 = smul.u32 8, %s19
      %p310 = scmp.lt.s32.totalorder %s18, 1
      %s311 = scalar_select %p310, %s18, 1
      %p312 = scmp.lt.s32.totalorder %s309, 15
      %s313 = scalar_select %p312, %s309, 15
      %s314 = smul.addr %s313, 2
      %s315 = smul.addr %s311, 32
      %s316 = sadd.s32 %s314, %s315
      %s317 = smul.addr %s316, 8
      %s318 = scalar_lea.vmem %s3, %s317
      // Predicated region
      $region33: #{double_conv_pallas.5} parent=31 // pred_check
        %p319 = pneg %p116
      $region34: #{double_conv_pallas.5} parent=31 // pred_check_branch
        %321 = sbr.rel (%p319) target = $region36
      $region35: #{double_conv_pallas.5} parent=31 // pred_region
        %s322 = smul.u32 8, %s19
      $region36: #{double_conv_pallas.5} parent=31 // pred_fallthru
        _
    $region32: #{double_conv_pallas.5} parent=5 // pred_fallthru
      _
    %p323 = scmp.le.s32.totalorder 2, %s9
    // Predicated region
    $region37: #{double_conv_pallas.5} parent=5 // pred_check
      %p324 = pneg %p323
    $region38: #{double_conv_pallas.5} parent=5 // pred_check_branch
      %326 = sbr.rel (%p324) target = $region40
    $region39: #{double_conv_pallas.5} parent=5 // pred_region
      %s327 = ssub.s32 %s9, 2
      // Predicated region
      $region41: #{double_conv_pallas.5} parent=39 // pred_check
        %p328 = pneg %p122
      $region42: #{double_conv_pallas.5} parent=39 // pred_check_branch
        %330 = sbr.rel (%p328) target = $region44
      $region43: #{double_conv_pallas.5} parent=39 // pred_region
        %s331 = smul.u32 8, %s21
        %p332 = scmp.lt.s32.totalorder %s20, 1
        %s333 = scalar_select %p332, %s20, 1
        %p334 = scmp.lt.s32.totalorder %s331, 15
        %s335 = scalar_select %p334, %s331, 15
        %s336 = smul.addr %s335, 2
        %s337 = smul.addr %s333, 32
        %s338 = sadd.s32 %s336, %s337
        %s339 = smul.addr %s338, 8
        %s340 = scalar_lea.vmem %s3, %s339
      $region44: #{double_conv_pallas.5} parent=39 // pred_fallthru
        _
    $region40: #{double_conv_pallas.5} parent=5 // pred_fallthru
      _
  $region6: #{double_conv_pallas.5} parent=0 // loop_footer
    %s13 = sadd.s32 1, %s9
  $region7: #{double_conv_pallas.5} parent=0 // loop_footer_branch
    %8 = sbr.rel target = $region3
  $region8: #{double_conv_pallas.5} parent=0 // loop_exit
    _

// kernel: double_conv_pallas.4
$region0: #{double_conv_pallas.4}
  #allocation0 [shape = 'u32[]', space=smem, size = 0x4, offset = 0x4, fixed_abs, tag = 'smem constant byte address 0x4 - core index']
  #allocation1 [shape = 'u32[144,128]{1,0:T(1,128)}', space=vmem, size = 0x12000, scoped, tag = 'internal scratch']
  #allocation2 [shape = 'f32[2,10,18,128]{3,2,1,0:T(8,128)}', space=vmem, size = 0x3c000, scoped, tag = 'scratch operand']
  #allocation3 [shape = 's32[2]{0}', space=sflag, size = 0x8, scoped, tag = 'scratch operand']
  #allocation4 [shape = 's32[]', space=sflag, size = 0x4, offset = 0, fixed_abs, tag = 'sflag constant byte address 0x0 - dummy sync flag']
  #allocation5 [shape = 's32[]', space=sflag, size = 0x4, offset = 0, fixed_abs, tag = 'sflag constant byte address 0x0 - dummy sync flag']
  %s0 = inlined_call_operand.vmem [shape: f32[2,18,18,128], index: 0, kind: input, shape index: {}]
  %s1 = inlined_call_operand.vmem [shape: f32[3,3,128,128], index: 1, kind: input, shape index: {}]
  %s2 = inlined_call_operand.vmem [shape: f32[1,128], index: 2, kind: input, shape index: {}]
  %s3 = inlined_call_operand.vmem [shape: f32[2,16,16,128], index: 3, kind: output, shape index: {0}]
  %s4 = inlined_call_operand.vmem [shape: f32[2,2,2,128], index: 4, kind: output, shape index: {1}]
  %5 = xla_tuple %s3, %s4
  %s6 = sld [smem:[#allocation0]]
  $region131: #{double_conv_pallas.4} parent=0
    _
  %s8 = ssub.s32 1, %s6
  %s9 = scalar_select 0, %s8, %s6
  loop: start=0, step=1, limit=6
  $region2: #{double_conv_pallas.4} parent=0 // loop_pre_header
    _
  $region3: #{double_conv_pallas.4} parent=0 // loop_header
    %s11 = sphi 0, %s15
    %p12 = scmp.ge.s32.totalorder %s11, 6
    %s18 = sphi 0, %s30
    %s19 = sphi 0, %s26
    %s20 = sphi 0, %s18
    %s21 = sphi 0, %s19
    %s22 = sphi 0, %s20
    %s23 = sphi 0, %s21
    %s31 = sphi 0, %s31
    %s33 = sphi 0, %s31
    %s34 = sphi 0, %s33
    %s48 = sphi 0, %s34
    %s52 = sphi 0, %s52
    %s54 = sphi 0, %s52
    %s55 = sphi 0, %s54
    %s69 = sphi 0, %s55
    %s77 = sphi 0, %s79
    %s80 = sphi 0, %s77
    %s81 = sphi 0, %s80
    %s97 = sphi 0, %s81
    %s105 = sphi 0, %s107
    %s108 = sphi 0, %s105
    %s109 = sphi 0, %s108
    %s125 = sphi 0, %s109
  $region4: #{double_conv_pallas.4} parent=0 // loop_header_branch
    %14 = sbr.rel (%p12) target = $region8
  $region5: #{double_conv_pallas.4} parent=0 // loop_body
    %s16 = ssub.s32 %s11, 1
    %s17 = ssub.s32 %s11, 2
    %s24 = sadd.s32 1, %s19
    %p25 = scmp.ge.s32.totalorder %s24, 2
    %s26 = scalar_select %p25, 0, %s24
    %s27 = sadd.s32 1, %s18
    %s28 = scalar_select %p25, %s27, %s18
    %p29 = scmp.ge.s32.totalorder %s28, 2
    %s30 = scalar_select %p29, 0, %s28
    %s32 = sadd.s32 %s31, 1
    %p35 = scmp.eq.s32.totalorder %s11, 3
    %p36 = scmp.ne.s32.totalorder %s31, %s33
    %p37 = scmp.eq.s32.totalorder %s11, 0
    %p38 = por %p36, %p37
    %p39 = scmp.ne.s32.totalorder %s31, %s33
    %p40 = scmp.eq.s32.totalorder %s16, 3
    %p41 = por %p39, %p40
    %p42 = scmp.ne.s32.totalorder %s33, %s34
    %p43 = scmp.eq.s32.totalorder %s16, 0
    %p44 = por %p42, %p43
    %p45 = scmp.ne.s32.totalorder %s33, %s34
    %p46 = scmp.eq.s32.totalorder %s17, 3
    %p47 = por %p45, %p46
    %p49 = scmp.ne.s32.totalorder %s34, %s48
    %p50 = scmp.eq.s32.totalorder %s17, 0
    %p51 = por %p49, %p50
    %s53 = sadd.s32 %s52, 1
    %p56 = scmp.eq.s32.totalorder %s11, 3
    %p57 = scmp.ne.s32.totalorder %s52, %s54
    %p58 = scmp.eq.s32.totalorder %s11, 0
    %p59 = por %p57, %p58
    %p60 = scmp.ne.s32.totalorder %s52, %s54
    %p61 = scmp.eq.s32.totalorder %s16, 3
    %p62 = por %p60, %p61
    %p63 = scmp.ne.s32.totalorder %s54, %s55
    %p64 = scmp.eq.s32.totalorder %s16, 0
    %p65 = por %p63, %p64
    %p66 = scmp.ne.s32.totalorder %s54, %s55
    %p67 = scmp.eq.s32.totalorder %s17, 3
    %p68 = por %p66, %p67
    %p70 = scmp.ne.s32.totalorder %s55, %s69
    %p71 = scmp.eq.s32.totalorder %s17, 0
    %p72 = por %p70, %p71
    %s73 = ssub.s32 %s18, %s30
    %s74 = ssub.s32 %s19, %s26
    %s75 = sor.u32 %s73, %s74
    %p76 = scmp.eq.s32.totalorder %s75, 0
    %s78 = sadd.s32 %s77, 1
    %s79 = scalar_select %p76, %s77, %s78
    %p82 = pneg %p76
    %p83 = scmp.eq.s32.totalorder %s11, 3
    %p84 = por %p82, %p83
    %p85 = scmp.ne.s32.totalorder %s77, %s80
    %p86 = scmp.eq.s32.totalorder %s11, 0
    %p87 = por %p85, %p86
    %p88 = scmp.ne.s32.totalorder %s77, %s80
    %p89 = scmp.eq.s32.totalorder %s16, 3
    %p90 = por %p88, %p89
    %p91 = scmp.ne.s32.totalorder %s80, %s81
    %p92 = scmp.eq.s32.totalorder %s16, 0
    %p93 = por %p91, %p92
    %p94 = scmp.ne.s32.totalorder %s80, %s81
    %p95 = scmp.eq.s32.totalorder %s17, 3
    %p96 = por %p94, %p95
    %p98 = scmp.ne.s32.totalorder %s81, %s97
    %p99 = scmp.eq.s32.totalorder %s17, 0
    %p100 = por %p98, %p99
    %s101 = ssub.s32 %s18, %s30
    %s102 = ssub.s32 %s19, %s26
    %s103 = sor.u32 %s101, %s102
    %p104 = scmp.eq.s32.totalorder %s103, 0
    %s106 = sadd.s32 %s105, 1
    %s107 = scalar_select %p104, %s105, %s106
    %p110 = pneg %p104
    %p111 = scmp.eq.s32.totalorder %s11, 3
    %p112 = por %p110, %p111
    %p113 = scmp.ne.s32.totalorder %s105, %s108
    %p114 = scmp.eq.s32.totalorder %s11, 0
    %p115 = por %p113, %p114
    %p116 = scmp.ne.s32.totalorder %s105, %s108
    %p117 = scmp.eq.s32.totalorder %s16, 3
    %p118 = por %p116, %p117
    %p119 = scmp.ne.s32.totalorder %s108, %s109
    %p120 = scmp.eq.s32.totalorder %s16, 0
    %p121 = por %p119, %p120
    %p122 = scmp.ne.s32.totalorder %s108, %s109
    %p123 = scmp.eq.s32.totalorder %s17, 3
    %p124 = por %p122, %p123
    %p126 = scmp.ne.s32.totalorder %s109, %s125
    %p127 = scmp.eq.s32.totalorder %s17, 0
    %p128 = por %p126, %p127
    %p129 = scmp.le.s32.totalorder 1, %s11
    %p130 = scmp.lt.s32.totalorder %s11, 5
    %p131 = pnand %p129, %p130
    %p132 = pneg %p131
    // Predicated region
    $region9: #{double_conv_pallas.4} parent=5 // pred_check
      _
    $region10: #{double_conv_pallas.4} parent=5 // pred_check_branch
      %134 = sbr.rel (%p131) target = $region12
    $region11: #{double_conv_pallas.4} parent=5 // pred_region
      %s135 = ssub.s32 %s11, 1
      // Predicated region
      $region13: #{double_conv_pallas.4} parent=11 // pred_check
        %p136 = pneg %p44
      $region14: #{double_conv_pallas.4} parent=11 // pred_check_branch
        %138 = sbr.rel (%p136) target = $region16
      $region15: #{double_conv_pallas.4} parent=11 // pred_region
        _
      $region16: #{double_conv_pallas.4} parent=11 // pred_fallthru
        _
      // Predicated region
      $region17: #{double_conv_pallas.4} parent=11 // pred_check
        %p139 = pneg %p65
      $region18: #{double_conv_pallas.4} parent=11 // pred_check_branch
        %141 = sbr.rel (%p139) target = $region20
      $region19: #{double_conv_pallas.4} parent=11 // pred_region
        _
      $region20: #{double_conv_pallas.4} parent=11 // pred_fallthru
        _
    $region12: #{double_conv_pallas.4} parent=5 // pred_fallthru
      _
    %p142 = scmp.lt.s32.totalorder %s11, 4
    // Predicated region
    $region21: #{double_conv_pallas.4} parent=5 // pred_check
      %p143 = pneg %p142
    $region22: #{double_conv_pallas.4} parent=5 // pred_check_branch
      %145 = sbr.rel (%p143) target = $region24
    $region23: #{double_conv_pallas.4} parent=5 // pred_region
      _
    $region24: #{double_conv_pallas.4} parent=5 // pred_fallthru
      _
    %p146 = scmp.le.s32.totalorder 1, %s11
    %p147 = scmp.lt.s32.totalorder %s11, 5
    %p148 = pnand %p146, %p147
    %p149 = pneg %p148
    // Predicated region
    $region25: #{double_conv_pallas.4} parent=5 // pred_check
      _
    $region26: #{double_conv_pallas.4} parent=5 // pred_check_branch
      %151 = sbr.rel (%p148) target = $region28
    $region27: #{double_conv_pallas.4} parent=5 // pred_region
      %s152 = ssub.s32 %s11, 1
      %p153 = pneg %p44
      %p154 = pneg %p41
      %p155 = pneg %p65
      %p156 = pneg %p62
      %p157 = pneg %p93
      %p158 = pneg %p90
      %s159 = smul.u32 8, %s21
      %p160 = scmp.lt.s32.totalorder %s20, 1
      %s161 = scalar_select %p160, %s20, 1
      %p162 = scmp.lt.s32.totalorder %s159, 15
      %s163 = scalar_select %p162, %s159, 15
      %s164 = smul.addr %s163, 2
      %s165 = smul.addr %s161, 32
      %s166 = sadd.s32 %s164, %s165
      %s167 = smul.addr %s166, 8
      %s168 = scalar_lea.vmem %s3, %s167
      %p169 = pneg %p121
      %p170 = pneg %p118
      %p171 = scmp.lt.s32.totalorder %s20, 1
      %s172 = scalar_select %p171, %s20, 1
      %p173 = scmp.lt.s32.totalorder %s21, 1
      %s174 = scalar_select %p173, %s21, 1
      %s175 = smul.addr %s172, 2
      %s176 = sadd.s32 %s174, %s175
      %s177 = smul.addr %s176, 2
      %s178 = scalar_lea.vmem %s4, %s177
      %s179 = smul.u32 8, %s21
      %p180 = scmp.lt.s32.totalorder %s20, 1
      %s181 = scalar_select %p180, %s20, 1
      %p182 = scmp.lt.s32.totalorder %s179, 15
      %s183 = scalar_select %p182, %s179, 15
      %s184 = smul.addr %s183, 2
      %s185 = smul.addr %s181, 32
      %s186 = sadd.s32 %s184, %s185
      %s187 = smul.addr %s186, 8
      %s188 = scalar_lea.vmem %s3, %s187
      %s189 = smul.u32 8, %s21
      %p190 = scmp.lt.s32.totalorder %s20, 1
      %s191 = scalar_select %p190, %s20, 1
      %p192 = scmp.lt.s32.totalorder %s21, 1
      %s193 = scalar_select %p192, %s21, 1
      %s194 = smul.addr %s191, 2
      %s195 = sadd.s32 %s193, %s194
      %s196 = smul.addr %s195, 2
      %s197 = scalar_lea.vmem %s4, %s196
      %p198 = scmp.lt.s32.totalorder %s21, 0
      %s199 = ssub.s32 0, %s21
      %s200 = scalar_select %p198, %s199, %s21
      %s201 = sand.u32 %s200, 1
      %s202 = ssub.s32 0, %s201
      %s203 = scalar_select %p198, %s202, %s201
      %p204 = scmp.ne.s32.totalorder %s203, 0
      %p205 = scmp.lt.s32.totalorder %s203, 0
      %p206 = pnand %p205, %p204
      %p207 = pneg %p206
      %s208 = sadd.s32 %s203, 2
      %s209 = scalar_select %p207, %s208, %s203
      %p210 = scmp.eq.s32.totalorder %s21, 0
      // Predicated region
      $region29: #{double_conv_pallas.4} parent=27 // pred_check
        %p211 = pneg %p210
      $region30: #{double_conv_pallas.4} parent=27 // pred_check_branch
        %213 = sbr.rel (%p211) target = $region32
      $region31: #{double_conv_pallas.4} parent=27 // pred_region
        %s214 = smul.u32 %s20, 432
        %s215 = scalar_lea.vmem %s0, %s214
        %p217 = scmp.lt.u32.totalorder 18, 8
        %p218 = pneg %p217
        // Predicated region
        $region33: #{double_conv_pallas.4} parent=31 // pred_check
          _
        $region34: #{double_conv_pallas.4} parent=31 // pred_check_branch
          %220 = sbr.rel (%p217) target = $region36
        $region35: #{double_conv_pallas.4} parent=31 // pred_region
          %s254 = sand.u32 18, 7
          %p255 = scmp.eq.s32.totalorder %s254, 0
          %p256 = pneg %p255
          // Predicated region
          $region48: #{double_conv_pallas.4} parent=35 // pred_check
            _
          $region49: #{double_conv_pallas.4} parent=35 // pred_check_branch
            %258 = sbr.rel (%p255) target = $region51
          $region50: #{double_conv_pallas.4} parent=35 // pred_region
            %s259 = sand.u32 18, 7
            %s260 = ssub.s32 18, %s259
            %s261 = scalar_lea.vmem %s215, %s260
            %s262 = ssub.s32 18, %s259
            %s263 = scalar_lea.vmem [#allocation2], %s262
            loop: start=0, step=1, limit=1
            $region52: #{double_conv_pallas.4} parent=50 // loop_pre_header
              _
            $region53: #{double_conv_pallas.4} parent=50 // loop_header
              %s265 = sphi 0, %s269
              %p266 = scmp.ge.s32.totalorder %s265, 1
              %s270 = sphi %s215, %s215
              %s271 = sphi [#allocation2], [#allocation2]
            $region54: #{double_conv_pallas.4} parent=50 // loop_header_branch
              %268 = sbr.rel (%p266) target = $region58
            $region55: #{double_conv_pallas.4} parent=50 // loop_body
              %v272 = vld [vmem:[%s270] sm:$0xff]
              %273 = vst [vmem:[%s271] sm:$0xff] %v272
              %v274 = vld [vmem:[%s270 + $0x8] sm:$0xff]
              %275 = vst [vmem:[%s271 + $0x8] sm:$0xff] %v274
              %v276 = vld [vmem:[%s270 + $0x18] sm:$0xff]
              %277 = vst [vmem:[%s271 + $0x18] sm:$0xff] %v276
              %v278 = vld [vmem:[%s270 + $0x20] sm:$0xff]
              %279 = vst [vmem:[%s271 + $0x20] sm:$0xff] %v278
              %v280 = vld [vmem:[%s270 + $0x30] sm:$0xff]
              %281 = vst [vmem:[%s271 + $0x30] sm:$0xff] %v280
              %v282 = vld [vmem:[%s270 + $0x38] sm:$0xff]
              %283 = vst [vmem:[%s271 + $0x38] sm:$0xff] %v282
              %v284 = vld [vmem:[%s270 + $0x48] sm:$0xff]
              %285 = vst [vmem:[%s271 + $0x48] sm:$0xff] %v284
              %v286 = vld [vmem:[%s270 + $0x50] sm:$0xff]
              %287 = vst [vmem:[%s271 + $0x50] sm:$0xff] %v286
              %v288 = vld [vmem:[%s270 + $0x60] sm:$0xff]
              %289 = vst [vmem:[%s271 + $0x60] sm:$0xff] %v288
              %v290 = vld [vmem:[%s270 + $0x68] sm:$0xff]
              %291 = vst [vmem:[%s271 + $0x68] sm:$0xff] %v290
              %v292 = vld [vmem:[%s270 + $0x78] sm:$0xff]
              %293 = vst [vmem:[%s271 + $0x78] sm:$0xff] %v292
              %v294 = vld [vmem:[%s270 + $0x80] sm:$0xff]
              %295 = vst [vmem:[%s271 + $0x80] sm:$0xff] %v294
              %v296 = vld [vmem:[%s270 + $0x90] sm:$0xff]
              %297 = vst [vmem:[%s271 + $0x90] sm:$0xff] %v296
              %v298 = vld [vmem:[%s270 + $0x98] sm:$0xff]
              %299 = vst [vmem:[%s271 + $0x98] sm:$0xff] %v298
              %v300 = vld [vmem:[%s270 + $0xa8] sm:$0xff]
              %301 = vst [vmem:[%s271 + $0xa8] sm:$0xff] %v300
              %v302 = vld [vmem:[%s270 + $0xb0] sm:$0xff]
              %303 = vst [vmem:[%s271 + $0xb0] sm:$0xff] %v302
              %v304 = vld [vmem:[%s270 + $0xc0] sm:$0xff]
              %305 = vst [vmem:[%s271 + $0xc0] sm:$0xff] %v304
              %v306 = vld [vmem:[%s270 + $0xc8] sm:$0xff]
              %307 = vst [vmem:[%s271 + $0xc8] sm:$0xff] %v306
              %v308 = vld [vmem:[%s270 + $0xd8] sm:$0xff]
              %309 = vst [vmem:[%s271 + $0xd8] sm:$0xff] %v308
              %v310 = vld [vmem:[%s270 + $0xe0] sm:$0xff]
              %311 = vst [vmem:[%s271 + $0xe0] sm:$0xff] %v310
            $region56: #{double_conv_pallas.4} parent=50 // loop_footer
              %s269 = sadd.s32 1, %s265
            $region57: #{double_conv_pallas.4} parent=50 // loop_footer_branch
              %264 = sbr.rel target = $region53
            $region58: #{double_conv_pallas.4} parent=50 // loop_exit
              _
            %s312 = sshll.u32 1, %s259
            %s313 = ssub.s32 %s312, 1
            loop: start=0, step=1, limit=1
            $region59: #{double_conv_pallas.4} parent=50 // loop_pre_header
              _
            $region60: #{double_conv_pallas.4} parent=50 // loop_header
              %s315 = sphi 0, %s319
              %p316 = scmp.ge.s32.totalorder %s315, 1
              %s320 = sphi %s261, %s261
              %s321 = sphi %s263, %s263
            $region61: #{double_conv_pallas.4} parent=50 // loop_header_branch
              %318 = sbr.rel (%p316) target = $region65
            $region62: #{double_conv_pallas.4} parent=50 // loop_body
              %v322 = vld [vmem:[%s320] sm:%s313]
              %323 = vst [vmem:[%s321] sm:%s313] %v322
              %v324 = vld [vmem:[%s320 + $0x18] sm:%s313]
              %325 = vst [vmem:[%s321 + $0x18] sm:%s313] %v324
              %v326 = vld [vmem:[%s320 + $0x30] sm:%s313]
              %327 = vst [vmem:[%s321 + $0x30] sm:%s313] %v326
              %v328 = vld [vmem:[%s320 + $0x48] sm:%s313]
              %329 = vst [vmem:[%s321 + $0x48] sm:%s313] %v328
              %v330 = vld [vmem:[%s320 + $0x60] sm:%s313]
              %331 = vst [vmem:[%s321 + $0x60] sm:%s313] %v330
              %v332 = vld [vmem:[%s320 + $0x78] sm:%s313]
              %333 = vst [vmem:[%s321 + $0x78] sm:%s313] %v332
              %v334 = vld [vmem:[%s320 + $0x90] sm:%s313]
              %335 = vst [vmem:[%s321 + $0x90] sm:%s313] %v334
              %v336 = vld [vmem:[%s320 + $0xa8] sm:%s313]
              %337 = vst [vmem:[%s321 + $0xa8] sm:%s313] %v336
              %v338 = vld [vmem:[%s320 + $0xc0] sm:%s313]
              %339 = vst [vmem:[%s321 + $0xc0] sm:%s313] %v338
              %v340 = vld [vmem:[%s320 + $0xd8] sm:%s313]
              %341 = vst [vmem:[%s321 + $0xd8] sm:%s313] %v340
            $region63: #{double_conv_pallas.4} parent=50 // loop_footer
              %s319 = sadd.s32 1, %s315
            $region64: #{double_conv_pallas.4} parent=50 // loop_footer_branch
              %314 = sbr.rel target = $region60
            $region65: #{double_conv_pallas.4} parent=50 // loop_exit
              _
          $region51: #{double_conv_pallas.4} parent=35 // pred_fallthru
            _
        $region36: #{double_conv_pallas.4} parent=31 // pred_fallthru
          _
        // Predicated region
        $region37: #{double_conv_pallas.4} parent=31 // pred_check
          %p221 = pneg %p217
        $region38: #{double_conv_pallas.4} parent=31 // pred_check_branch
          %223 = sbr.rel (%p221) target = $region40
        $region39: #{double_conv_pallas.4} parent=31 // pred_region
          %s224 = sshll.u32 1, 18
          %s225 = ssub.s32 %s224, 1
          loop: start=0, step=1, limit=1
          $region41: #{double_conv_pallas.4} parent=39 // loop_pre_header
            _
          $region42: #{double_conv_pallas.4} parent=39 // loop_header
            %s227 = sphi 0, %s231
            %p228 = scmp.ge.s32.totalorder %s227, 1
            %s232 = sphi %s215, %s215
            %s233 = sphi [#allocation2], [#allocation2]
          $region43: #{double_conv_pallas.4} parent=39 // loop_header_branch
            %230 = sbr.rel (%p228) target = $region47
          $region44: #{double_conv_pallas.4} parent=39 // loop_body
            %v234 = vld [vmem:[%s232] sm:%s225]
            %235 = vst [vmem:[%s233] sm:%s225] %v234
            %v236 = vld [vmem:[%s232 + $0x18] sm:%s225]
            %237 = vst [vmem:[%s233 + $0x18] sm:%s225] %v236
            %v238 = vld [vmem:[%s232 + $0x30] sm:%s225]
            %239 = vst [vmem:[%s233 + $0x30] sm:%s225] %v238
            %v240 = vld [vmem:[%s232 + $0x48] sm:%s225]
            %241 = vst [vmem:[%s233 + $0x48] sm:%s225] %v240
            %v242 = vld [vmem:[%s232 + $0x60] sm:%s225]
            %243 = vst [vmem:[%s233 + $0x60] sm:%s225] %v242
            %v244 = vld [vmem:[%s232 + $0x78] sm:%s225]
            %245 = vst [vmem:[%s233 + $0x78] sm:%s225] %v244
            %v246 = vld [vmem:[%s232 + $0x90] sm:%s225]
            %247 = vst [vmem:[%s233 + $0x90] sm:%s225] %v246
            %v248 = vld [vmem:[%s232 + $0xa8] sm:%s225]
            %249 = vst [vmem:[%s233 + $0xa8] sm:%s225] %v248
            %v250 = vld [vmem:[%s232 + $0xc0] sm:%s225]
            %251 = vst [vmem:[%s233 + $0xc0] sm:%s225] %v250
            %v252 = vld [vmem:[%s232 + $0xd8] sm:%s225]
            %253 = vst [vmem:[%s233 + $0xd8] sm:%s225] %v252
          $region45: #{double_conv_pallas.4} parent=39 // loop_footer
            %s231 = sadd.s32 1, %s227
          $region46: #{double_conv_pallas.4} parent=39 // loop_footer_branch
            %226 = sbr.rel target = $region42
          $region47: #{double_conv_pallas.4} parent=39 // loop_exit
            _
        $region40: #{double_conv_pallas.4} parent=31 // pred_fallthru
          _
        // Predicated region
        $region66: #{double_conv_pallas.4} parent=31 // pred_check
          _
        $region67: #{double_conv_pallas.4} parent=31 // pred_check_branch
          %344 = sbr.rel (0) target = $region69
        $region68: #{double_conv_pallas.4} parent=31 // pred_region
          %345 = vsyncadd [#allocation3], 2880
        $region69: #{double_conv_pallas.4} parent=31 // pred_fallthru
          _
      $region32: #{double_conv_pallas.4} parent=27 // pred_fallthru
        _
      %s346 = smul.u32 %s209, 240
      %s347 = scalar_lea.vmem [#allocation2], %s346
      %s348 = scalar_lea.sflag [#allocation3], %s209
      %s349 = smul.u32 10, 18
      %s350 = smul.u32 %s349, 1
      %s351 = sshll.u32 %s350, 4
      %352 = dma.done %s348, %s351
      %s353 = sadd.s32 %s21, 1
      %p354 = scmp.lt.s32.totalorder %s353, 2
      // Predicated region
      $region70: #{double_conv_pallas.4} parent=27 // pred_check
        %p355 = pneg %p354
      $region71: #{double_conv_pallas.4} parent=27 // pred_check_branch
        %357 = sbr.rel (%p355) target = $region73
      $region72: #{double_conv_pallas.4} parent=27 // pred_region
        %s358 = ssub.s32 1, %s209
        %s359 = smul.u32 %s353, 8
        %s360 = smul.u32 %s359, 24
        %s361 = smul.u32 %s20, 432
        %s362 = sadd.s32 %s360, %s361
        %s363 = scalar_lea.vmem %s0, %s362
        %s364 = smul.u32 %s358, 240
        %s365 = scalar_lea.vmem [#allocation2], %s364
        %s366 = scalar_lea.sflag [#allocation3], %s358
        %p368 = scmp.lt.u32.totalorder 18, 8
        %p369 = pneg %p368
        // Predicated region
        $region74: #{double_conv_pallas.4} parent=72 // pred_check
          _
        $region75: #{double_conv_pallas.4} parent=72 // pred_check_branch
          %371 = sbr.rel (%p368) target = $region77
        $region76: #{double_conv_pallas.4} parent=72 // pred_region
          %s405 = sand.u32 18, 7
          %p406 = scmp.eq.s32.totalorder %s405, 0
          %p407 = pneg %p406
          // Predicated region
          $region89: #{double_conv_pallas.4} parent=76 // pred_check
            _
          $region90: #{double_conv_pallas.4} parent=76 // pred_check_branch
            %409 = sbr.rel (%p406) target = $region92
          $region91: #{double_conv_pallas.4} parent=76 // pred_region
            %s410 = sand.u32 18, 7
            %s411 = ssub.s32 18, %s410
            %s412 = scalar_lea.vmem %s363, %s411
            %s413 = ssub.s32 18, %s410
            %s414 = scalar_lea.vmem %s365, %s413 [#allocation2]
            loop: start=0, step=1, limit=1
            $region93: #{double_conv_pallas.4} parent=91 // loop_pre_header
              _
            $region94: #{double_conv_pallas.4} parent=91 // loop_header
              %s416 = sphi 0, %s420
              %p417 = scmp.ge.s32.totalorder %s416, 1
              %s421 = sphi %s363, %s363
              %s422 = sphi %s365, %s365
            $region95: #{double_conv_pallas.4} parent=91 // loop_header_branch
              %419 = sbr.rel (%p417) target = $region99
            $region96: #{double_conv_pallas.4} parent=91 // loop_body
              %v423 = vld [vmem:[%s421] sm:$0xff]
              %424 = vst [vmem:[%s422] sm:$0xff] %v423
              %v425 = vld [vmem:[%s421 + $0x8] sm:$0xff]
              %426 = vst [vmem:[%s422 + $0x8] sm:$0xff] %v425
              %v427 = vld [vmem:[%s421 + $0x18] sm:$0xff]
              %428 = vst [vmem:[%s422 + $0x18] sm:$0xff] %v427
              %v429 = vld [vmem:[%s421 + $0x20] sm:$0xff]
              %430 = vst [vmem:[%s422 + $0x20] sm:$0xff] %v429
              %v431 = vld [vmem:[%s421 + $0x30] sm:$0xff]
              %432 = vst [vmem:[%s422 + $0x30] sm:$0xff] %v431
              %v433 = vld [vmem:[%s421 + $0x38] sm:$0xff]
              %434 = vst [vmem:[%s422 + $0x38] sm:$0xff] %v433
              %v435 = vld [vmem:[%s421 + $0x48] sm:$0xff]
              %436 = vst [vmem:[%s422 + $0x48] sm:$0xff] %v435
              %v437 = vld [vmem:[%s421 + $0x50] sm:$0xff]
              %438 = vst [vmem:[%s422 + $0x50] sm:$0xff] %v437
              %v439 = vld [vmem:[%s421 + $0x60] sm:$0xff]
              %440 = vst [vmem:[%s422 + $0x60] sm:$0xff] %v439
              %v441 = vld [vmem:[%s421 + $0x68] sm:$0xff]
              %442 = vst [vmem:[%s422 + $0x68] sm:$0xff] %v441
              %v443 = vld [vmem:[%s421 + $0x78] sm:$0xff]
              %444 = vst [vmem:[%s422 + $0x78] sm:$0xff] %v443
              %v445 = vld [vmem:[%s421 + $0x80] sm:$0xff]
              %446 = vst [vmem:[%s422 + $0x80] sm:$0xff] %v445
              %v447 = vld [vmem:[%s421 + $0x90] sm:$0xff]
              %448 = vst [vmem:[%s422 + $0x90] sm:$0xff] %v447
              %v449 = vld [vmem:[%s421 + $0x98] sm:$0xff]
              %450 = vst [vmem:[%s422 + $0x98] sm:$0xff] %v449
              %v451 = vld [vmem:[%s421 + $0xa8] sm:$0xff]
              %452 = vst [vmem:[%s422 + $0xa8] sm:$0xff] %v451
              %v453 = vld [vmem:[%s421 + $0xb0] sm:$0xff]
              %454 = vst [vmem:[%s422 + $0xb0] sm:$0xff] %v453
              %v455 = vld [vmem:[%s421 + $0xc0] sm:$0xff]
              %456 = vst [vmem:[%s422 + $0xc0] sm:$0xff] %v455
              %v457 = vld [vmem:[%s421 + $0xc8] sm:$0xff]
              %458 = vst [vmem:[%s422 + $0xc8] sm:$0xff] %v457
              %v459 = vld [vmem:[%s421 + $0xd8] sm:$0xff]
              %460 = vst [vmem:[%s422 + $0xd8] sm:$0xff] %v459
              %v461 = vld [vmem:[%s421 + $0xe0] sm:$0xff]
              %462 = vst [vmem:[%s422 + $0xe0] sm:$0xff] %v461
            $region97: #{double_conv_pallas.4} parent=91 // loop_footer
              %s420 = sadd.s32 1, %s416
            $region98: #{double_conv_pallas.4} parent=91 // loop_footer_branch
              %415 = sbr.rel target = $region94
            $region99: #{double_conv_pallas.4} parent=91 // loop_exit
              _
            %s463 = sshll.u32 1, %s410
            %s464 = ssub.s32 %s463, 1
            loop: start=0, step=1, limit=1
            $region100: #{double_conv_pallas.4} parent=91 // loop_pre_header
              _
            $region101: #{double_conv_pallas.4} parent=91 // loop_header
              %s466 = sphi 0, %s470
              %p467 = scmp.ge.s32.totalorder %s466, 1
              %s471 = sphi %s412, %s412
              %s472 = sphi %s414, %s414
            $region102: #{double_conv_pallas.4} parent=91 // loop_header_branch
              %469 = sbr.rel (%p467) target = $region106
            $region103: #{double_conv_pallas.4} parent=91 // loop_body
              %v473 = vld [vmem:[%s471] sm:%s464]
              %474 = vst [vmem:[%s472] sm:%s464] %v473
              %v475 = vld [vmem:[%s471 + $0x18] sm:%s464]
              %476 = vst [vmem:[%s472 + $0x18] sm:%s464] %v475
              %v477 = vld [vmem:[%s471 + $0x30] sm:%s464]
              %478 = vst [vmem:[%s472 + $0x30] sm:%s464] %v477
              %v479 = vld [vmem:[%s471 + $0x48] sm:%s464]
              %480 = vst [vmem:[%s472 + $0x48] sm:%s464] %v479
              %v481 = vld [vmem:[%s471 + $0x60] sm:%s464]
              %482 = vst [vmem:[%s472 + $0x60] sm:%s464] %v481
              %v483 = vld [vmem:[%s471 + $0x78] sm:%s464]
              %484 = vst [vmem:[%s472 + $0x78] sm:%s464] %v483
              %v485 = vld [vmem:[%s471 + $0x90] sm:%s464]
              %486 = vst [vmem:[%s472 + $0x90] sm:%s464] %v485
              %v487 = vld [vmem:[%s471 + $0xa8] sm:%s464]
              %488 = vst [vmem:[%s472 + $0xa8] sm:%s464] %v487
              %v489 = vld [vmem:[%s471 + $0xc0] sm:%s464]
              %490 = vst [vmem:[%s472 + $0xc0] sm:%s464] %v489
              %v491 = vld [vmem:[%s471 + $0xd8] sm:%s464]
              %492 = vst [vmem:[%s472 + $0xd8] sm:%s464] %v491
            $region104: #{double_conv_pallas.4} parent=91 // loop_footer
              %s470 = sadd.s32 1, %s466
            $region105: #{double_conv_pallas.4} parent=91 // loop_footer_branch
              %465 = sbr.rel target = $region101
            $region106: #{double_conv_pallas.4} parent=91 // loop_exit
              _
          $region92: #{double_conv_pallas.4} parent=76 // pred_fallthru
            _
        $region77: #{double_conv_pallas.4} parent=72 // pred_fallthru
          _
        // Predicated region
        $region78: #{double_conv_pallas.4} parent=72 // pred_check
          %p372 = pneg %p368
        $region79: #{double_conv_pallas.4} parent=72 // pred_check_branch
          %374 = sbr.rel (%p372) target = $region81
        $region80: #{double_conv_pallas.4} parent=72 // pred_region
          %s375 = sshll.u32 1, 18
          %s376 = ssub.s32 %s375, 1
          loop: start=0, step=1, limit=1
          $region82: #{double_conv_pallas.4} parent=80 // loop_pre_header
            _
          $region83: #{double_conv_pallas.4} parent=80 // loop_header
            %s378 = sphi 0, %s382
            %p379 = scmp.ge.s32.totalorder %s378, 1
            %s383 = sphi %s363, %s363
            %s384 = sphi %s365, %s365
          $region84: #{double_conv_pallas.4} parent=80 // loop_header_branch
            %381 = sbr.rel (%p379) target = $region88
          $region85: #{double_conv_pallas.4} parent=80 // loop_body
            %v385 = vld [vmem:[%s383] sm:%s376]
            %386 = vst [vmem:[%s384] sm:%s376] %v385
            %v387 = vld [vmem:[%s383 + $0x18] sm:%s376]
            %388 = vst [vmem:[%s384 + $0x18] sm:%s376] %v387
            %v389 = vld [vmem:[%s383 + $0x30] sm:%s376]
            %390 = vst [vmem:[%s384 + $0x30] sm:%s376] %v389
            %v391 = vld [vmem:[%s383 + $0x48] sm:%s376]
            %392 = vst [vmem:[%s384 + $0x48] sm:%s376] %v391
            %v393 = vld [vmem:[%s383 + $0x60] sm:%s376]
            %394 = vst [vmem:[%s384 + $0x60] sm:%s376] %v393
            %v395 = vld [vmem:[%s383 + $0x78] sm:%s376]
            %396 = vst [vmem:[%s384 + $0x78] sm:%s376] %v395
            %v397 = vld [vmem:[%s383 + $0x90] sm:%s376]
            %398 = vst [vmem:[%s384 + $0x90] sm:%s376] %v397
            %v399 = vld [vmem:[%s383 + $0xa8] sm:%s376]
            %400 = vst [vmem:[%s384 + $0xa8] sm:%s376] %v399
            %v401 = vld [vmem:[%s383 + $0xc0] sm:%s376]
            %402 = vst [vmem:[%s384 + $0xc0] sm:%s376] %v401
            %v403 = vld [vmem:[%s383 + $0xd8] sm:%s376]
            %404 = vst [vmem:[%s384 + $0xd8] sm:%s376] %v403
          $region86: #{double_conv_pallas.4} parent=80 // loop_footer
            %s382 = sadd.s32 1, %s378
          $region87: #{double_conv_pallas.4} parent=80 // loop_footer_branch
            %377 = sbr.rel target = $region83
          $region88: #{double_conv_pallas.4} parent=80 // loop_exit
            _
        $region81: #{double_conv_pallas.4} parent=72 // pred_fallthru
          _
        // Predicated region
        $region107: #{double_conv_pallas.4} parent=72 // pred_check
          _
        $region108: #{double_conv_pallas.4} parent=72 // pred_check_branch
          %495 = sbr.rel (0) target = $region110
        $region109: #{double_conv_pallas.4} parent=72 // pred_region
          %496 = vsyncadd %s366, 2880
        $region110: #{double_conv_pallas.4} parent=72 // pred_fallthru
          _
      $region73: #{double_conv_pallas.4} parent=27 // pred_fallthru
        _
      %v497 = vld [vmem:[%s347] sm:$0xff]
      %v498 = vld [vmem:[%s347 + $0x8] sm:$0xff]
      %v499 = vld [vmem:[%s347 + $0x18] sm:$0xff]
      %v500 = vld [vmem:[%s347 + $0x20] sm:$0xff]
      %v501 = vld [vmem:[%s347 + $0x30] sm:$0xff]
      %v502 = vld [vmem:[%s347 + $0x38] sm:$0xff]
      %v503 = vld [vmem:[%s347 + $0x48] sm:$0xff]
      %v504 = vld [vmem:[%s347 + $0x50] sm:$0xff]
      %v505 = vld [vmem:[%s347 + $0x60] sm:$0xff]
      %v506 = vld [vmem:[%s347 + $0x68] sm:$0xff]
      %v507 = vld [vmem:[%s347 + $0x78] sm:$0xff]
      %v508 = vld [vmem:[%s347 + $0x80] sm:$0xff]
      %v509 = vld [vmem:[%s347 + $0x90] sm:$0xff]
      %v510 = vld [vmem:[%s347 + $0x98] sm:$0xff]
      %v511 = vld [vmem:[%s347 + $0xa8] sm:$0xff]
      %v512 = vld [vmem:[%s347 + $0xb0] sm:$0xff]
      %v513 = vld [vmem:[%s1] sm:$0xff]
      %v514 = vld [vmem:[%s1 + $0x8] sm:$0xff]
      %v515 = vld [vmem:[%s1 + $0x10] sm:$0xff]
      %v516 = vld [vmem:[%s1 + $0x18] sm:$0xff]
      %v517 = vld [vmem:[%s1 + $0x20] sm:$0xff]
      %v518 = vld [vmem:[%s1 + $0x28] sm:$0xff]
      %v519 = vld [vmem:[%s1 + $0x30] sm:$0xff]
      %v520 = vld [vmem:[%s1 + $0x38] sm:$0xff]
      %v521 = vld [vmem:[%s1 + $0x40] sm:$0xff]
      %v522 = vld [vmem:[%s1 + $0x48] sm:$0xff]
      %v523 = vld [vmem:[%s1 + $0x50] sm:$0xff]
      %v524 = vld [vmem:[%s1 + $0x58] sm:$0xff]
      %v525 = vld [vmem:[%s1 + $0x60] sm:$0xff]
      %v526 = vld [vmem:[%s1 + $0x68] sm:$0xff]
      %v527 = vld [vmem:[%s1 + $0x70] sm:$0xff]
      %v528 = vld [vmem:[%s1 + $0x78] sm:$0xff]
      %v529 = vld [vmem:[%s347 + $0x1] sm:$0xff]
      %v530 = vld [vmem:[%s347 + $0x9] sm:$0xff]
      %v531 = vld [vmem:[%s347 + $0x19] sm:$0xff]
      %v532 = vld [vmem:[%s347 + $0x21] sm:$0xff]
      %v533 = vld [vmem:[%s347 + $0x31] sm:$0xff]
      %v534 = vld [vmem:[%s347 + $0x39] sm:$0xff]
      %v535 = vld [vmem:[%s347 + $0x49] sm:$0xff]
      %v536 = vld [vmem:[%s347 + $0x51] sm:$0xff]
      %v537 = vld [vmem:[%s347 + $0x61] sm:$0xff]
      %v538 = vld [vmem:[%s347 + $0x69] sm:$0xff]
      %v539 = vld [vmem:[%s347 + $0x79] sm:$0xff]
      %v540 = vld [vmem:[%s347 + $0x81] sm:$0xff]
      %v541 = vld [vmem:[%s347 + $0x91] sm:$0xff]
      %v542 = vld [vmem:[%s347 + $0x99] sm:$0xff]
      %v543 = vld [vmem:[%s347 + $0xa9] sm:$0xff]
      %v544 = vld [vmem:[%s347 + $0xb1] sm:$0xff]
      %s545 = scalar_lea.vmem %s1, 128
      %v546 = vld [vmem:[%s545] sm:$0xff]
      %v547 = vld [vmem:[%s545 + $0x8] sm:$0xff]
      %v548 = vld [vmem:[%s545 + $0x10] sm:$0xff]
      %v549 = vld [vmem:[%s545 + $0x18] sm:$0xff]
      %v550 = vld [vmem:[%s545 + $0x20] sm:$0xff]
      %v551 = vld [vmem:[%s545 + $0x28] sm:$0xff]
      %v552 = vld [vmem:[%s545 + $0x30] sm:$0xff]
      %v553 = vld [vmem:[%s545 + $0x38] sm:$0xff]
      %v554 = vld [vmem:[%s545 + $0x40] sm:$0xff]
      %v555 = vld [vmem:[%s545 + $0x48] sm:$0xff]
      %v556 = vld [vmem:[%s545 + $0x50] sm:$0xff]
      %v557 = vld [vmem:[%s545 + $0x58] sm:$0xff]
      %v558 = vld [vmem:[%s545 + $0x60] sm:$0xff]
      %v559 = vld [vmem:[%s545 + $0x68] sm:$0xff]
      %v560 = vld [vmem:[%s545 + $0x70] sm:$0xff]
      %v561 = vld [vmem:[%s545 + $0x78] sm:$0xff]
      %562 = vmatprep.subr.mxu0 0.0
      %563 = vmatpush1.msra.mxu0 %v561
      %564 = vmatprep.subr.mxu0 0.0
      %565 = vmatpush1.msra.mxu0 %v560
      %566 = vmatprep.subr.mxu0 0.0
      %567 = vmatpush1.msra.mxu0 %v559
      %568 = vmatprep.subr.mxu0 0.0
      %569 = vmatpush1.msra.mxu0 %v558
      %570 = vmatprep.subr.mxu0 0.0
      %571 = vmatpush1.msra.mxu0 %v557
      %572 = vmatprep.subr.mxu0 0.0
      %573 = vmatpush1.msra.mxu0 %v556
      %574 = vmatprep.subr.mxu0 0.0
      %575 = vmatpush1.msra.mxu0 %v555
      %576 = vmatprep.subr.mxu0 0.0
      %577 = vmatpush1.msra.mxu0 %v554
      %578 = vmatprep.subr.mxu0 0.0
      %579 = vmatpush1.msra.mxu0 %v553
      %580 = vmatprep.subr.mxu0 0.0
      %581 = vmatpush1.msra.mxu0 %v552
      %582 = vmatprep.subr.mxu0 0.0
      %583 = vmatpush1.msra.mxu0 %v551
      %584 = vmatprep.subr.mxu0 0.0
      %585 = vmatpush1.msra.mxu0 %v550
      %586 = vmatprep.subr.mxu0 0.0
      %587 = vmatpush1.msra.mxu0 %v549
      %588 = vmatprep.subr.mxu0 0.0
      %589 = vmatpush1.msra.mxu0 %v548
      %590 = vmatprep.subr.mxu0 0.0
      %591 = vmatpush1.msra.mxu0 %v547
      %592 = vmatprep.subr.mxu0 0.0
      %593 = vmatpush1.msra.mxu0 %v546
      %594 = vmatprep.subr.mxu0 0.0
      %595 = vmatpush2.msra.mxu0 0.0
      %596 = vmatprep.subr.mxu0 0.0
      %597 = vmatpush2.msra.mxu0 0.0
      %598 = vmatprep.subr.mxu0 0.0
      %599 = vmatpush2.msra.mxu0 0.0
      %600 = vmatprep.subr.mxu0 0.0
      %601 = vmatpush2.msra.mxu0 0.0
      %602 = vmatprep.subr.mxu0 0.0
      %603 = vmatpush2.msra.mxu0 0.0
      %604 = vmatprep.subr.mxu0 0.0
      %605 = vmatpush2.msra.mxu0 0.0
      %606 = vmatprep.subr.mxu0 0.0
      %607 = vmatpush2.msra.mxu0 0.0
      %608 = vmatprep.subr.mxu0 0.0
      %609 = vmatpush2.msra.mxu0 0.0
      %610 = vmatprep.subr.mxu0 0.0
      %611 = vmatpush2.msra.mxu0 0.0
      %612 = vmatprep.subr.mxu0 0.0
      %613 = vmatpush2.msra.mxu0 0.0
      %614 = vmatprep.subr.mxu0 0.0
      %615 = vmatpush2.msra.mxu0 0.0
      %616 = vmatprep.subr.mxu0 0.0
      %617 = vmatpush2.msra.mxu0 0.0
      %618 = vmatprep.subr.mxu0 0.0
      %619 = vmatpush2.msra.mxu0 0.0
      %620 = vmatprep.subr.mxu0 0.0
      %621 = vmatpush2.msra.mxu0 0.0
      %622 = vmatprep.subr.mxu0 0.0
      %623 = vmatpush2.msra.mxu0 0.0
      %624 = vmatprep.subr.mxu0 0.0
      %625 = vmatpush2.msra.mxu0 0.0
      %626 = vmatprep.mubr.f32.mxu0 0.0
      %627 = vmatmul.mubr.f32.gmra.mxu0 %v529
      %v628 = vpop.f32.mrf.mxu0
      %v629 = vadd.f32 0.0, %v628
      %v630 = vpop.f32.mrf.mxu0
      %631 = vmatprep.mubr.f32.mxu0 0.0
      %632 = vmatmul.mubr.f32.gmra.mxu0 %v530
      %v633 = vpop.f32.mrf.mxu0
      %v634 = vadd.f32 0.0, %v633
      %v635 = vpop.f32.mrf.mxu0
      %636 = vmatprep.mubr.f32.mxu0 0.0
      %637 = vmatmul.mubr.f32.gmra.mxu0 %v531
      %v638 = vpop.f32.mrf.mxu0
      %v639 = vadd.f32 0.0, %v638
      %v640 = vpop.f32.mrf.mxu0
      %641 = vmatprep.mubr.f32.mxu0 0.0
      %642 = vmatmul.mubr.f32.gmra.mxu0 %v532
      %v643 = vpop.f32.mrf.mxu0
      %v644 = vadd.f32 0.0, %v643
      %v645 = vpop.f32.mrf.mxu0
      %646 = vmatprep.mubr.f32.mxu0 0.0
      %647 = vmatmul.mubr.f32.gmra.mxu0 %v533
      %v648 = vpop.f32.mrf.mxu0
      %v649 = vadd.f32 0.0, %v648
      %v650 = vpop.f32.mrf.mxu0
      %651 = vmatprep.mubr.f32.mxu0 0.0
      %652 = vmatmul.mubr.f32.gmra.mxu0 %v534
      %v653 = vpop.f32.mrf.mxu0
      %v654 = vadd.f32 0.0, %v653
      %v655 = vpop.f32.mrf.mxu0
      %656 = vmatprep.mubr.f32.mxu0 0.0
      %657 = vmatmul.mubr.f32.gmra.mxu0 %v535
      %v658 = vpop.f32.mrf.mxu0
      %v659 = vadd.f32 0.0, %v658
      %v660 = vpop.f32.mrf.mxu0
      %661 = vmatprep.mubr.f32.mxu0 0.0
      %662 = vmatmul.mubr.f32.gmra.mxu0 %v536
      %v663 = vpop.f32.mrf.mxu0
      %v664 = vadd.f32 0.0, %v663
      %v665 = vpop.f32.mrf.mxu0
      %666 = vmatprep.mubr.f32.mxu0 0.0
      %667 = vmatmul.mubr.f32.gmra.mxu0 %v537
      %v668 = vpop.f32.mrf.mxu0
      %v669 = vadd.f32 0.0, %v668
      %v670 = vpop.f32.mrf.mxu0
      %671 = vmatprep.mubr.f32.mxu0 0.0
      %672 = vmatmul.mubr.f32.gmra.mxu0 %v538
      %v673 = vpop.f32.mrf.mxu0
      %v674 = vadd.f32 0.0, %v673
      %v675 = vpop.f32.mrf.mxu0
      %676 = vmatprep.mubr.f32.mxu0 0.0
      %677 = vmatmul.mubr.f32.gmra.mxu0 %v539
      %v678 = vpop.f32.mrf.mxu0
      %v679 = vadd.f32 0.0, %v678
      %v680 = vpop.f32.mrf.mxu0
      %681 = vmatprep.mubr.f32.mxu0 0.0
      %682 = vmatmul.mubr.f32.gmra.mxu0 %v540
      %v683 = vpop.f32.mrf.mxu0
      %v684 = vadd.f32 0.0, %v683
      %v685 = vpop.f32.mrf.mxu0
      %686 = vmatprep.mubr.f32.mxu0 0.0
      %687 = vmatmul.mubr.f32.gmra.mxu0 %v541
      %v688 = vpop.f32.mrf.mxu0
      %v689 = vadd.f32 0.0, %v688
      %v690 = vpop.f32.mrf.mxu0
      %691 = vmatprep.mubr.f32.mxu0 0.0
      %692 = vmatmul.mubr.f32.gmra.mxu0 %v542
      %v693 = vpop.f32.mrf.mxu0
      %v694 = vadd.f32 0.0, %v693
      %v695 = vpop.f32.mrf.mxu0
      %696 = vmatprep.mubr.f32.mxu0 0.0
      %697 = vmatmul.mubr.f32.gmra.mxu0 %v543
      %v698 = vpop.f32.mrf.mxu0
      %v699 = vadd.f32 0.0, %v698
      %v700 = vpop.f32.mrf.mxu0
      %701 = vmatprep.mubr.f32.mxu0 0.0
      %702 = vmatmul.mubr.f32.gmra.mxu0 %v544
      %v703 = vpop.f32.mrf.mxu0
      %v704 = vadd.f32 0.0, %v703
      %v705 = vpop.f32.mrf.mxu0
      %706 = vdwg.mxu0
      %707 = vmatprep.subr.mxu0 0.0
      %708 = vmatpush1.msra.mxu0 %v528
      %709 = vmatprep.subr.mxu0 0.0
      %710 = vmatpush1.msra.mxu0 %v527
      %711 = vmatprep.subr.mxu0 0.0
      %712 = vmatpush1.msra.mxu0 %v526
      %713 = vmatprep.subr.mxu0 0.0
      %714 = vmatpush1.msra.mxu0 %v525
      %715 = vmatprep.subr.mxu0 0.0
      %716 = vmatpush1.msra.mxu0 %v524
      %717 = vmatprep.subr.mxu0 0.0
      %718 = vmatpush1.msra.mxu0 %v523
      %719 = vmatprep.subr.mxu0 0.0
      %720 = vmatpush1.msra.mxu0 %v522
      %721 = vmatprep.subr.mxu0 0.0
      %722 = vmatpush1.msra.mxu0 %v521
      %723 = vmatprep.subr.mxu0 0.0
      %724 = vmatpush1.msra.mxu0 %v520
      %725 = vmatprep.subr.mxu0 0.0
      %726 = vmatpush1.msra.mxu0 %v519
      %727 = vmatprep.subr.mxu0 0.0
      %728 = vmatpush1.msra.mxu0 %v518
      %729 = vmatprep.subr.mxu0 0.0
      %730 = vmatpush1.msra.mxu0 %v517
      %731 = vmatprep.subr.mxu0 0.0
      %732 = vmatpush1.msra.mxu0 %v516
      %733 = vmatprep.subr.mxu0 0.0
      %734 = vmatpush1.msra.mxu0 %v515
      %735 = vmatprep.subr.mxu0 0.0
      %736 = vmatpush1.msra.mxu0 %v514
      %737 = vmatprep.subr.mxu0 0.0
      %738 = vmatpush1.msra.mxu0 %v513
      %739 = vmatprep.subr.mxu0 0.0
      %740 = vmatpush2.msra.mxu0 0.0
      %741 = vmatprep.subr.mxu0 0.0
      %742 = vmatpush2.msra.mxu0 0.0
      %743 = vmatprep.subr.mxu0 0.0
      %744 = vmatpush2.msra.mxu0 0.0
      %745 = vmatprep.subr.mxu0 0.0
      %746 = vmatpush2.msra.mxu0 0.0
      %747 = vmatprep.subr.mxu0 0.0
      %748 = vmatpush2.msra.mxu0 0.0
      %749 = vmatprep.subr.mxu0 0.0
      %750 = vmatpush2.msra.mxu0 0.0
      %751 = vmatprep.subr.mxu0 0.0
      %752 = vmatpush2.msra.mxu0 0.0
      %753 = vmatprep.subr.mxu0 0.0
      %754 = vmatpush2.msra.mxu0 0.0
      %755 = vmatprep.subr.mxu0 0.0
      %756 = vmatpush2.msra.mxu0 0.0
      %757 = vmatprep.subr.mxu0 0.0
      %758 = vmatpush2.msra.mxu0 0.0
      %759 = vmatprep.subr.mxu0 0.0
      %760 = vmatpush2.msra.mxu0 0.0
      %761 = vmatprep.subr.mxu0 0.0
      %762 = vmatpush2.msra.mxu0 0.0
      %763 = vmatprep.subr.mxu0 0.0
      %764 = vmatpush2.msra.mxu0 0.0
      %765 = vmatprep.subr.mxu0 0.0
      %766 = vmatpush2.msra.mxu0 0.0
      %767 = vmatprep.subr.mxu0 0.0
      %768 = vmatpush2.msra.mxu0 0.0
      %769 = vmatprep.subr.mxu0 0.0
      %770 = vmatpush2.msra.mxu0 0.0
      %771 = vmatprep.mubr.f32.mxu0 0.0
      %772 = vmatmul.mubr.f32.gmra.mxu0 %v497
      %v773 = vpop.f32.mrf.mxu0
      %v774 = vadd.f32 %v629, %v773
      %v775 = vpop.f32.mrf.mxu0
      %776 = vmatprep.mubr.f32.mxu0 0.0
      %777 = vmatmul.mubr.f32.gmra.mxu0 %v498
      %v778 = vpop.f32.mrf.mxu0
      %v779 = vadd.f32 %v634, %v778
      %v780 = vpop.f32.mrf.mxu0
      %781 = vmatprep.mubr.f32.mxu0 0.0
      %782 = vmatmul.mubr.f32.gmra.mxu0 %v499
      %v783 = vpop.f32.mrf.mxu0
      %v784 = vadd.f32 %v639, %v783
      %v785 = vpop.f32.mrf.mxu0
      %786 = vmatprep.mubr.f32.mxu0 0.0
      %787 = vmatmul.mubr.f32.gmra.mxu0 %v500
      %v788 = vpop.f32.mrf.mxu0
      %v789 = vadd.f32 %v644, %v788
      %v790 = vpop.f32.mrf.mxu0
      %791 = vmatprep.mubr.f32.mxu0 0.0
      %792 = vmatmul.mubr.f32.gmra.mxu0 %v501
      %v793 = vpop.f32.mrf.mxu0
      %v794 = vadd.f32 %v649, %v793
      %v795 = vpop.f32.mrf.mxu0
      %796 = vmatprep.mubr.f32.mxu0 0.0
      %797 = vmatmul.mubr.f32.gmra.mxu0 %v502
      %v798 = vpop.f32.mrf.mxu0
      %v799 = vadd.f32 %v654, %v798
      %v800 = vpop.f32.mrf.mxu0
      %801 = vmatprep.mubr.f32.mxu0 0.0
      %802 = vmatmul.mubr.f32.gmra.mxu0 %v503
      %v803 = vpop.f32.mrf.mxu0
      %v804 = vadd.f32 %v659, %v803
      %v805 = vpop.f32.mrf.mxu0
      %806 = vmatprep.mubr.f32.mxu0 0.0
      %807 = vmatmul.mubr.f32.gmra.mxu0 %v504
      %v808 = vpop.f32.mrf.mxu0
      %v809 = vadd.f32 %v664, %v808
      %v810 = vpop.f32.mrf.mxu0
      %811 = vmatprep.mubr.f32.mxu0 0.0
      %812 = vmatmul.mubr.f32.gmra.mxu0 %v505
      %v813 = vpop.f32.mrf.mxu0
      %v814 = vadd.f32 %v669, %v813
      %v815 = vpop.f32.mrf.mxu0
      %816 = vmatprep.mubr.f32.mxu0 0.0
      %817 = vmatmul.mubr.f32.gmra.mxu0 %v506
      %v818 = vpop.f32.mrf.mxu0
      %v819 = vadd.f32 %v674, %v818
      %v820 = vpop.f32.mrf.mxu0
      %821 = vmatprep.mubr.f32.mxu0 0.0
      %822 = vmatmul.mubr.f32.gmra.mxu0 %v507
      %v823 = vpop.f32.mrf.mxu0
      %v824 = vadd.f32 %v679, %v823
      %v825 = vpop.f32.mrf.mxu0
      %826 = vmatprep.mubr.f32.mxu0 0.0
      %827 = vmatmul.mubr.f32.gmra.mxu0 %v508
      %v828 = vpop.f32.mrf.mxu0
      %v829 = vadd.f32 %v684, %v828
      %v830 = vpop.f32.mrf.mxu0
      %831 = vmatprep.mubr.f32.mxu0 0.0
      %832 = vmatmul.mubr.f32.gmra.mxu0 %v509
      %v833 = vpop.f32.mrf.mxu0
      %v834 = vadd.f32 %v689, %v833
      %v835 = vpop.f32.mrf.mxu0
      %836 = vmatprep.mubr.f32.mxu0 0.0
      %837 = vmatmul.mubr.f32.gmra.mxu0 %v510
      %v838 = vpop.f32.mrf.mxu0
      %v839 = vadd.f32 %v694, %v838
      %v840 = vpop.f32.mrf.mxu0
      %841 = vmatprep.mubr.f32.mxu0 0.0
      %842 = vmatmul.mubr.f32.gmra.mxu0 %v511
      %v843 = vpop.f32.mrf.mxu0
      %v844 = vadd.f32 %v699, %v843
      %v845 = vpop.f32.mrf.mxu0
      %846 = vmatprep.mubr.f32.mxu0 0.0
      %847 = vmatmul.mubr.f32.gmra.mxu0 %v512
      %v848 = vpop.f32.mrf.mxu0
      %v849 = vadd.f32 %v704, %v848
      %v850 = vpop.f32.mrf.mxu0
      %851 = vdwg.mxu0
      %v852 = vld [vmem:[%s347 + $0x2] sm:$0xff]
      %v853 = vld [vmem:[%s347 + $0xa] sm:$0xff]
      %v854 = vld [vmem:[%s347 + $0x1a] sm:$0xff]
      %v855 = vld [vmem:[%s347 + $0x22] sm:$0xff]
      %v856 = vld [vmem:[%s347 + $0x32] sm:$0xff]
      %v857 = vld [vmem:[%s347 + $0x3a] sm:$0xff]
      %v858 = vld [vmem:[%s347 + $0x4a] sm:$0xff]
      %v859 = vld [vmem:[%s347 + $0x52] sm:$0xff]
      %v860 = vld [vmem:[%s347 + $0x62] sm:$0xff]
      %v861 = vld [vmem:[%s347 + $0x6a] sm:$0xff]
      %v862 = vld [vmem:[%s347 + $0x7a] sm:$0xff]
      %v863 = vld [vmem:[%s347 + $0x82] sm:$0xff]
      %v864 = vld [vmem:[%s347 + $0x92] sm:$0xff]
      %v865 = vld [vmem:[%s347 + $0x9a] sm:$0xff]
      %v866 = vld [vmem:[%s347 + $0xaa] sm:$0xff]
      %v867 = vld [vmem:[%s347 + $0xb2] sm:$0xff]
      %s868 = scalar_lea.vmem %s1, 256
      %v869 = vld [vmem:[%s868] sm:$0xff]
      %v870 = vld [vmem:[%s868 + $0x8] sm:$0xff]
      %v871 = vld [vmem:[%s868 + $0x10] sm:$0xff]
      %v872 = vld [vmem:[%s868 + $0x18] sm:$0xff]
      %v873 = vld [vmem:[%s868 + $0x20] sm:$0xff]
      %v874 = vld [vmem:[%s868 + $0x28] sm:$0xff]
      %v875 = vld [vmem:[%s868 + $0x30] sm:$0xff]
      %v876 = vld [vmem:[%s868 + $0x38] sm:$0xff]
      %v877 = vld [vmem:[%s868 + $0x40] sm:$0xff]
      %v878 = vld [vmem:[%s868 + $0x48] sm:$0xff]
      %v879 = vld [vmem:[%s868 + $0x50] sm:$0xff]
      %v880 = vld [vmem:[%s868 + $0x58] sm:$0xff]
      %v881 = vld [vmem:[%s868 + $0x60] sm:$0xff]
      %v882 = vld [vmem:[%s868 + $0x68] sm:$0xff]
      %v883 = vld [vmem:[%s868 + $0x70] sm:$0xff]
      %v884 = vld [vmem:[%s868 + $0x78] sm:$0xff]
      %885 = vmatprep.subr.mxu0 0.0
      %886 = vmatpush1.msra.mxu0 %v884
      %887 = vmatprep.subr.mxu0 0.0
      %888 = vmatpush1.msra.mxu0 %v883
      %889 = vmatprep.subr.mxu0 0.0
      %890 = vmatpush1.msra.mxu0 %v882
      %891 = vmatprep.subr.mxu0 0.0
      %892 = vmatpush1.msra.mxu0 %v881
      %893 = vmatprep.subr.mxu0 0.0
      %894 = vmatpush1.msra.mxu0 %v880
      %895 = vmatprep.subr.mxu0 0.0
      %896 = vmatpush1.msra.mxu0 %v879
      %897 = vmatprep.subr.mxu0 0.0
      %898 = vmatpush1.msra.mxu0 %v878
      %899 = vmatprep.subr.mxu0 0.0
      %900 = vmatpush1.msra.mxu0 %v877
      %901 = vmatprep.subr.mxu0 0.0
      %902 = vmatpush1.msra.mxu0 %v876
      %903 = vmatprep.subr.mxu0 0.0
      %904 = vmatpush1.msra.mxu0 %v875
      %905 = vmatprep.subr.mxu0 0.0
      %906 = vmatpush1.msra.mxu0 %v874
      %907 = vmatprep.subr.mxu0 0.0
      %908 = vmatpush1.msra.mxu0 %v873
      %909 = vmatprep.subr.mxu0 0.0
      %910 = vmatpush1.msra.mxu0 %v872
      %911 = vmatprep.subr.mxu0 0.0
      %912 = vmatpush1.msra.mxu0 %v871
      %913 = vmatprep.subr.mxu0 0.0
      %914 = vmatpush1.msra.mxu0 %v870
      %915 = vmatprep.subr.mxu0 0.0
      %916 = vmatpush1.msra.mxu0 %v869
      %917 = vmatprep.subr.mxu0 0.0
      %918 = vmatpush2.msra.mxu0 0.0
      %919 = vmatprep.subr.mxu0 0.0
      %920 = vmatpush2.msra.mxu0 0.0
      %921 = vmatprep.subr.mxu0 0.0
      %922 = vmatpush2.msra.mxu0 0.0
      %923 = vmatprep.subr.mxu0 0.0
      %924 = vmatpush2.msra.mxu0 0.0
      %925 = vmatprep.subr.mxu0 0.0
      %926 = vmatpush2.msra.mxu0 0.0
      %927 = vmatprep.subr.mxu0 0.0
      %928 = vmatpush2.msra.mxu0 0.0
      %929 = vmatprep.subr.mxu0 0.0
      %930 = vmatpush2.msra.mxu0 0.0
      %931 = vmatprep.subr.mxu0 0.0
      %932 = vmatpush2.msra.mxu0 0.0
      %933 = vmatprep.subr.mxu0 0.0
      %934 = vmatpush2.msra.mxu0 0.0
      %935 = vmatprep.subr.mxu0 0.0
      %936 = vmatpush2.msra.mxu0 0.0
      %937 = vmatprep.subr.mxu0 0.0
      %938 = vmatpush2.msra.mxu0 0.0
      %939 = vmatprep.subr.mxu0 0.0
      %940 = vmatpush2.msra.mxu0 0.0
      %941 = vmatprep.subr.mxu0 0.0
      %942 = vmatpush2.msra.mxu0 0.0
      %943 = vmatprep.subr.mxu0 0.0
      %944 = vmatpush2.msra.mxu0 0.0
      %945 = vmatprep.subr.mxu0 0.0
      %946 = vmatpush2.msra.mxu0 0.0
      %947 = vmatprep.subr.mxu0 0.0
      %948 = vmatpush2.msra.mxu0 0.0
      %949 = vmatprep.mubr.f32.mxu0 0.0
      %950 = vmatmul.mubr.f32.gmra.mxu0 %v852
      %v951 = vpop.f32.mrf.mxu0
      %v952 = vadd.f32 0.0, %v951
      %v953 = vpop.f32.mrf.mxu0
      %954 = vmatprep.mubr.f32.mxu0 0.0
      %955 = vmatmul.mubr.f32.gmra.mxu0 %v853
      %v956 = vpop.f32.mrf.mxu0
      %v957 = vadd.f32 0.0, %v956
      %v958 = vpop.f32.mrf.mxu0
      %959 = vmatprep.mubr.f32.mxu0 0.0
      %960 = vmatmul.mubr.f32.gmra.mxu0 %v854
      %v961 = vpop.f32.mrf.mxu0
      %v962 = vadd.f32 0.0, %v961
      %v963 = vpop.f32.mrf.mxu0
      %964 = vmatprep.mubr.f32.mxu0 0.0
      %965 = vmatmul.mubr.f32.gmra.mxu0 %v855
      %v966 = vpop.f32.mrf.mxu0
      %v967 = vadd.f32 0.0, %v966
      %v968 = vpop.f32.mrf.mxu0
      %969 = vmatprep.mubr.f32.mxu0 0.0
      %970 = vmatmul.mubr.f32.gmra.mxu0 %v856
      %v971 = vpop.f32.mrf.mxu0
      %v972 = vadd.f32 0.0, %v971
      %v973 = vpop.f32.mrf.mxu0
      %974 = vmatprep.mubr.f32.mxu0 0.0
      %975 = vmatmul.mubr.f32.gmra.mxu0 %v857
      %v976 = vpop.f32.mrf.mxu0
      %v977 = vadd.f32 0.0, %v976
      %v978 = vpop.f32.mrf.mxu0
      %979 = vmatprep.mubr.f32.mxu0 0.0
      %980 = vmatmul.mubr.f32.gmra.mxu0 %v858
      %v981 = vpop.f32.mrf.mxu0
      %v982 = vadd.f32 0.0, %v981
      %v983 = vpop.f32.mrf.mxu0
      %984 = vmatprep.mubr.f32.mxu0 0.0
      %985 = vmatmul.mubr.f32.gmra.mxu0 %v859
      %v986 = vpop.f32.mrf.mxu0
      %v987 = vadd.f32 0.0, %v986
      %v988 = vpop.f32.mrf.mxu0
      %989 = vmatprep.mubr.f32.mxu0 0.0
      %990 = vmatmul.mubr.f32.gmra.mxu0 %v860
      %v991 = vpop.f32.mrf.mxu0
      %v992 = vadd.f32 0.0, %v991
      %v993 = vpop.f32.mrf.mxu0
      %994 = vmatprep.mubr.f32.mxu0 0.0
      %995 = vmatmul.mubr.f32.gmra.mxu0 %v861
      %v996 = vpop.f32.mrf.mxu0
      %v997 = vadd.f32 0.0, %v996
      %v998 = vpop.f32.mrf.mxu0
      %999 = vmatprep.mubr.f32.mxu0 0.0
      %1000 = vmatmul.mubr.f32.gmra.mxu0 %v862
      %v1001 = vpop.f32.mrf.mxu0
      %v1002 = vadd.f32 0.0, %v1001
      %v1003 = vpop.f32.mrf.mxu0
      %1004 = vmatprep.mubr.f32.mxu0 0.0
      %1005 = vmatmul.mubr.f32.gmra.mxu0 %v863
      %v1006 = vpop.f32.mrf.mxu0
      %v1007 = vadd.f32 0.0, %v1006
      %v1008 = vpop.f32.mrf.mxu0
      %1009 = vmatprep.mubr.f32.mxu0 0.0
      %1010 = vmatmul.mubr.f32.gmra.mxu0 %v864
      %v1011 = vpop.f32.mrf.mxu0
      %v1012 = vadd.f32 0.0, %v1011
      %v1013 = vpop.f32.mrf.mxu0
      %1014 = vmatprep.mubr.f32.mxu0 0.0
      %1015 = vmatmul.mubr.f32.gmra.mxu0 %v865
      %v1016 = vpop.f32.mrf.mxu0
      %v1017 = vadd.f32 0.0, %v1016
      %v1018 = vpop.f32.mrf.mxu0
      %1019 = vmatprep.mubr.f32.mxu0 0.0
      %1020 = vmatmul.mubr.f32.gmra.mxu0 %v866
      %v1021 = vpop.f32.mrf.mxu0
      %v1022 = vadd.f32 0.0, %v1021
      %v1023 = vpop.f32.mrf.mxu0
      %1024 = vmatprep.mubr.f32.mxu0 0.0
      %1025 = vmatmul.mubr.f32.gmra.mxu0 %v867
      %v1026 = vpop.f32.mrf.mxu0
      %v1027 = vadd.f32 0.0, %v1026
      %v1028 = vpop.f32.mrf.mxu0
      %1029 = vdwg.mxu0
      %v1030 = vadd.f32 %v774, %v952
      %v1031 = vadd.f32 %v779, %v957
      %v1032 = vadd.f32 %v784, %v962
      %v1033 = vadd.f32 %v789, %v967
      %v1034 = vadd.f32 %v794, %v972
      %v1035 = vadd.f32 %v799, %v977
      %v1036 = vadd.f32 %v804, %v982
      %v1037 = vadd.f32 %v809, %v987
      %v1038 = vadd.f32 %v814, %v992
      %v1039 = vadd.f32 %v819, %v997
      %v1040 = vadd.f32 %v824, %v1002
      %v1041 = vadd.f32 %v829, %v1007
      %v1042 = vadd.f32 %v834, %v1012
      %v1043 = vadd.f32 %v839, %v1017
      %v1044 = vadd.f32 %v844, %v1022
      %v1045 = vadd.f32 %v849, %v1027
      %s1046 = scalar_lea.vmem %s347, 24 [#allocation2]
      %v1047 = vld [vmem:[%s1046] sm:$0xff]
      %v1048 = vld [vmem:[%s1046 + $0x8] sm:$0xff]
      %v1049 = vld [vmem:[%s1046 + $0x18] sm:$0xff]
      %v1050 = vld [vmem:[%s1046 + $0x20] sm:$0xff]
      %v1051 = vld [vmem:[%s1046 + $0x30] sm:$0xff]
      %v1052 = vld [vmem:[%s1046 + $0x38] sm:$0xff]
      %v1053 = vld [vmem:[%s1046 + $0x48] sm:$0xff]
      %v1054 = vld [vmem:[%s1046 + $0x50] sm:$0xff]
      %v1055 = vld [vmem:[%s1046 + $0x60] sm:$0xff]
      %v1056 = vld [vmem:[%s1046 + $0x68] sm:$0xff]
      %v1057 = vld [vmem:[%s1046 + $0x78] sm:$0xff]
      %v1058 = vld [vmem:[%s1046 + $0x80] sm:$0xff]
      %v1059 = vld [vmem:[%s1046 + $0x90] sm:$0xff]
      %v1060 = vld [vmem:[%s1046 + $0x98] sm:$0xff]
      %v1061 = vld [vmem:[%s1046 + $0xa8] sm:$0xff]
      %v1062 = vld [vmem:[%s1046 + $0xb0] sm:$0xff]
      %s1063 = scalar_lea.vmem %s1, 384
      %v1064 = vld [vmem:[%s1063] sm:$0xff]
      %v1065 = vld [vmem:[%s1063 + $0x8] sm:$0xff]
      %v1066 = vld [vmem:[%s1063 + $0x10] sm:$0xff]
      %v1067 = vld [vmem:[%s1063 + $0x18] sm:$0xff]
      %v1068 = vld [vmem:[%s1063 + $0x20] sm:$0xff]
      %v1069 = vld [vmem:[%s1063 + $0x28] sm:$0xff]
      %v1070 = vld [vmem:[%s1063 + $0x30] sm:$0xff]
      %v1071 = vld [vmem:[%s1063 + $0x38] sm:$0xff]
      %v1072 = vld [vmem:[%s1063 + $0x40] sm:$0xff]
      %v1073 = vld [vmem:[%s1063 + $0x48] sm:$0xff]
      %v1074 = vld [vmem:[%s1063 + $0x50] sm:$0xff]
      %v1075 = vld [vmem:[%s1063 + $0x58] sm:$0xff]
      %v1076 = vld [vmem:[%s1063 + $0x60] sm:$0xff]
      %v1077 = vld [vmem:[%s1063 + $0x68] sm:$0xff]
      %v1078 = vld [vmem:[%s1063 + $0x70] sm:$0xff]
      %v1079 = vld [vmem:[%s1063 + $0x78] sm:$0xff]
      %1080 = vmatprep.subr.mxu0 0.0
      %1081 = vmatpush1.msra.mxu0 %v1079
      %1082 = vmatprep.subr.mxu0 0.0
      %1083 = vmatpush1.msra.mxu0 %v1078
      %1084 = vmatprep.subr.mxu0 0.0
      %1085 = vmatpush1.msra.mxu0 %v1077
      %1086 = vmatprep.subr.mxu0 0.0
      %1087 = vmatpush1.msra.mxu0 %v1076
      %1088 = vmatprep.subr.mxu0 0.0
      %1089 = vmatpush1.msra.mxu0 %v1075
      %1090 = vmatprep.subr.mxu0 0.0
      %1091 = vmatpush1.msra.mxu0 %v1074
      %1092 = vmatprep.subr.mxu0 0.0
      %1093 = vmatpush1.msra.mxu0 %v1073
      %1094 = vmatprep.subr.mxu0 0.0
      %1095 = vmatpush1.msra.mxu0 %v1072
      %1096 = vmatprep.subr.mxu0 0.0
      %1097 = vmatpush1.msra.mxu0 %v1071
      %1098 = vmatprep.subr.mxu0 0.0
      %1099 = vmatpush1.msra.mxu0 %v1070
      %1100 = vmatprep.subr.mxu0 0.0
      %1101 = vmatpush1.msra.mxu0 %v1069
      %1102 = vmatprep.subr.mxu0 0.0
      %1103 = vmatpush1.msra.mxu0 %v1068
      %1104 = vmatprep.subr.mxu0 0.0
      %1105 = vmatpush1.msra.mxu0 %v1067
      %1106 = vmatprep.subr.mxu0 0.0
      %1107 = vmatpush1.msra.mxu0 %v1066
      %1108 = vmatprep.subr.mxu0 0.0
      %1109 = vmatpush1.msra.mxu0 %v1065
      %1110 = vmatprep.subr.mxu0 0.0
      %1111 = vmatpush1.msra.mxu0 %v1064
      %1112 = vmatprep.subr.mxu0 0.0
      %1113 = vmatpush2.msra.mxu0 0.0
      %1114 = vmatprep.subr.mxu0 0.0
      %1115 = vmatpush2.msra.mxu0 0.0
      %1116 = vmatprep.subr.mxu0 0.0
      %1117 = vmatpush2.msra.mxu0 0.0
      %1118 = vmatprep.subr.mxu0 0.0
      %1119 = vmatpush2.msra.mxu0 0.0
      %1120 = vmatprep.subr.mxu0 0.0
      %1121 = vmatpush2.msra.mxu0 0.0
      %1122 = vmatprep.subr.mxu0 0.0
      %1123 = vmatpush2.msra.mxu0 0.0
      %1124 = vmatprep.subr.mxu0 0.0
      %1125 = vmatpush2.msra.mxu0 0.0
      %1126 = vmatprep.subr.mxu0 0.0
      %1127 = vmatpush2.msra.mxu0 0.0
      %1128 = vmatprep.subr.mxu0 0.0
      %1129 = vmatpush2.msra.mxu0 0.0
      %1130 = vmatprep.subr.mxu0 0.0
      %1131 = vmatpush2.msra.mxu0 0.0
      %1132 = vmatprep.subr.mxu0 0.0
      %1133 = vmatpush2.msra.mxu0 0.0
      %1134 = vmatprep.subr.mxu0 0.0
      %1135 = vmatpush2.msra.mxu0 0.0
      %1136 = vmatprep.subr.mxu0 0.0
      %1137 = vmatpush2.msra.mxu0 0.0
      %1138 = vmatprep.subr.mxu0 0.0
      %1139 = vmatpush2.msra.mxu0 0.0
      %1140 = vmatprep.subr.mxu0 0.0
      %1141 = vmatpush2.msra.mxu0 0.0
      %1142 = vmatprep.subr.mxu0 0.0
      %1143 = vmatpush2.msra.mxu0 0.0
      %1144 = vmatprep.mubr.f32.mxu0 0.0
      %1145 = vmatmul.mubr.f32.gmra.mxu0 %v1047
      %v1146 = vpop.f32.mrf.mxu0
      %v1147 = vadd.f32 0.0, %v1146
      %v1148 = vpop.f32.mrf.mxu0
      %1149 = vmatprep.mubr.f32.mxu0 0.0
      %1150 = vmatmul.mubr.f32.gmra.mxu0 %v1048
      %v1151 = vpop.f32.mrf.mxu0
      %v1152 = vadd.f32 0.0, %v1151
      %v1153 = vpop.f32.mrf.mxu0
      %1154 = vmatprep.mubr.f32.mxu0 0.0
      %1155 = vmatmul.mubr.f32.gmra.mxu0 %v1049
      %v1156 = vpop.f32.mrf.mxu0
      %v1157 = vadd.f32 0.0, %v1156
      %v1158 = vpop.f32.mrf.mxu0
      %1159 = vmatprep.mubr.f32.mxu0 0.0
      %1160 = vmatmul.mubr.f32.gmra.mxu0 %v1050
      %v1161 = vpop.f32.mrf.mxu0
      %v1162 = vadd.f32 0.0, %v1161
      %v1163 = vpop.f32.mrf.mxu0
      %1164 = vmatprep.mubr.f32.mxu0 0.0
      %1165 = vmatmul.mubr.f32.gmra.mxu0 %v1051
      %v1166 = vpop.f32.mrf.mxu0
      %v1167 = vadd.f32 0.0, %v1166
      %v1168 = vpop.f32.mrf.mxu0
      %1169 = vmatprep.mubr.f32.mxu0 0.0
      %1170 = vmatmul.mubr.f32.gmra.mxu0 %v1052
      %v1171 = vpop.f32.mrf.mxu0
      %v1172 = vadd.f32 0.0, %v1171
      %v1173 = vpop.f32.mrf.mxu0
      %1174 = vmatprep.mubr.f32.mxu0 0.0
      %1175 = vmatmul.mubr.f32.gmra.mxu0 %v1053
      %v1176 = vpop.f32.mrf.mxu0
      %v1177 = vadd.f32 0.0, %v1176
      %v1178 = vpop.f32.mrf.mxu0
      %1179 = vmatprep.mubr.f32.mxu0 0.0
      %1180 = vmatmul.mubr.f32.gmra.mxu0 %v1054
      %v1181 = vpop.f32.mrf.mxu0
      %v1182 = vadd.f32 0.0, %v1181
      %v1183 = vpop.f32.mrf.mxu0
      %1184 = vmatprep.mubr.f32.mxu0 0.0
      %1185 = vmatmul.mubr.f32.gmra.mxu0 %v1055
      %v1186 = vpop.f32.mrf.mxu0
      %v1187 = vadd.f32 0.0, %v1186
      %v1188 = vpop.f32.mrf.mxu0
      %1189 = vmatprep.mubr.f32.mxu0 0.0
      %1190 = vmatmul.mubr.f32.gmra.mxu0 %v1056
      %v1191 = vpop.f32.mrf.mxu0
      %v1192 = vadd.f32 0.0, %v1191
      %v1193 = vpop.f32.mrf.mxu0
      %1194 = vmatprep.mubr.f32.mxu0 0.0
      %1195 = vmatmul.mubr.f32.gmra.mxu0 %v1057
      %v1196 = vpop.f32.mrf.mxu0
      %v1197 = vadd.f32 0.0, %v1196
      %v1198 = vpop.f32.mrf.mxu0
      %1199 = vmatprep.mubr.f32.mxu0 0.0
      %1200 = vmatmul.mubr.f32.gmra.mxu0 %v1058
      %v1201 = vpop.f32.mrf.mxu0
      %v1202 = vadd.f32 0.0, %v1201
      %v1203 = vpop.f32.mrf.mxu0
      %1204 = vmatprep.mubr.f32.mxu0 0.0
      %1205 = vmatmul.mubr.f32.gmra.mxu0 %v1059
      %v1206 = vpop.f32.mrf.mxu0
      %v1207 = vadd.f32 0.0, %v1206
      %v1208 = vpop.f32.mrf.mxu0
      %1209 = vmatprep.mubr.f32.mxu0 0.0
      %1210 = vmatmul.mubr.f32.gmra.mxu0 %v1060
      %v1211 = vpop.f32.mrf.mxu0
      %v1212 = vadd.f32 0.0, %v1211
      %v1213 = vpop.f32.mrf.mxu0
      %1214 = vmatprep.mubr.f32.mxu0 0.0
      %1215 = vmatmul.mubr.f32.gmra.mxu0 %v1061
      %v1216 = vpop.f32.mrf.mxu0
      %v1217 = vadd.f32 0.0, %v1216
      %v1218 = vpop.f32.mrf.mxu0
      %1219 = vmatprep.mubr.f32.mxu0 0.0
      %1220 = vmatmul.mubr.f32.gmra.mxu0 %v1062
      %v1221 = vpop.f32.mrf.mxu0
      %v1222 = vadd.f32 0.0, %v1221
      %v1223 = vpop.f32.mrf.mxu0
      %1224 = vdwg.mxu0
      %v1225 = vadd.f32 %v1030, %v1147
      %v1226 = vadd.f32 %v1031, %v1152
      %v1227 = vadd.f32 %v1032, %v1157
      %v1228 = vadd.f32 %v1033, %v1162
      %v1229 = vadd.f32 %v1034, %v1167
      %v1230 = vadd.f32 %v1035, %v1172
      %v1231 = vadd.f32 %v1036, %v1177
      %v1232 = vadd.f32 %v1037, %v1182
      %v1233 = vadd.f32 %v1038, %v1187
      %v1234 = vadd.f32 %v1039, %v1192
      %v1235 = vadd.f32 %v1040, %v1197
      %v1236 = vadd.f32 %v1041, %v1202
      %v1237 = vadd.f32 %v1042, %v1207
      %v1238 = vadd.f32 %v1043, %v1212
      %v1239 = vadd.f32 %v1044, %v1217
      %v1240 = vadd.f32 %v1045, %v1222
      %v1241 = vld [vmem:[%s1046 + $0x1] sm:$0xff]
      %v1242 = vld [vmem:[%s1046 + $0x9] sm:$0xff]
      %v1243 = vld [vmem:[%s1046 + $0x19] sm:$0xff]
      %v1244 = vld [vmem:[%s1046 + $0x21] sm:$0xff]
      %v1245 = vld [vmem:[%s1046 + $0x31] sm:$0xff]
      %v1246 = vld [vmem:[%s1046 + $0x39] sm:$0xff]
      %v1247 = vld [vmem:[%s1046 + $0x49] sm:$0xff]
      %v1248 = vld [vmem:[%s1046 + $0x51] sm:$0xff]
      %v1249 = vld [vmem:[%s1046 + $0x61] sm:$0xff]
      %v1250 = vld [vmem:[%s1046 + $0x69] sm:$0xff]
      %v1251 = vld [vmem:[%s1046 + $0x79] sm:$0xff]
      %v1252 = vld [vmem:[%s1046 + $0x81] sm:$0xff]
      %v1253 = vld [vmem:[%s1046 + $0x91] sm:$0xff]
      %v1254 = vld [vmem:[%s1046 + $0x99] sm:$0xff]
      %v1255 = vld [vmem:[%s1046 + $0xa9] sm:$0xff]
      %v1256 = vld [vmem:[%s1046 + $0xb1] sm:$0xff]
      %s1257 = scalar_lea.vmem %s1, 512
      %v1258 = vld [vmem:[%s1257] sm:$0xff]
      %v1259 = vld [vmem:[%s1257 + $0x8] sm:$0xff]
      %v1260 = vld [vmem:[%s1257 + $0x10] sm:$0xff]
      %v1261 = vld [vmem:[%s1257 + $0x18] sm:$0xff]
      %v1262 = vld [vmem:[%s1257 + $0x20] sm:$0xff]
      %v1263 = vld [vmem:[%s1257 + $0x28] sm:$0xff]
      %v1264 = vld [vmem:[%s1257 + $0x30] sm:$0xff]
      %v1265 = vld [vmem:[%s1257 + $0x38] sm:$0xff]
      %v1266 = vld [vmem:[%s1257 + $0x40] sm:$0xff]
      %v1267 = vld [vmem:[%s1257 + $0x48] sm:$0xff]
      %v1268 = vld [vmem:[%s1257 + $0x50] sm:$0xff]
      %v1269 = vld [vmem:[%s1257 + $0x58] sm:$0xff]
      %v1270 = vld [vmem:[%s1257 + $0x60] sm:$0xff]
      %v1271 = vld [vmem:[%s1257 + $0x68] sm:$0xff]
      %v1272 = vld [vmem:[%s1257 + $0x70] sm:$0xff]
      %v1273 = vld [vmem:[%s1257 + $0x78] sm:$0xff]
      %1274 = vmatprep.subr.mxu0 0.0
      %1275 = vmatpush1.msra.mxu0 %v1273
      %1276 = vmatprep.subr.mxu0 0.0
      %1277 = vmatpush1.msra.mxu0 %v1272
      %1278 = vmatprep.subr.mxu0 0.0
      %1279 = vmatpush1.msra.mxu0 %v1271
      %1280 = vmatprep.subr.mxu0 0.0
      %1281 = vmatpush1.msra.mxu0 %v1270
      %1282 = vmatprep.subr.mxu0 0.0
      %1283 = vmatpush1.msra.mxu0 %v1269
      %1284 = vmatprep.subr.mxu0 0.0
      %1285 = vmatpush1.msra.mxu0 %v1268
      %1286 = vmatprep.subr.mxu0 0.0
      %1287 = vmatpush1.msra.mxu0 %v1267
      %1288 = vmatprep.subr.mxu0 0.0
      %1289 = vmatpush1.msra.mxu0 %v1266
      %1290 = vmatprep.subr.mxu0 0.0
      %1291 = vmatpush1.msra.mxu0 %v1265
      %1292 = vmatprep.subr.mxu0 0.0
      %1293 = vmatpush1.msra.mxu0 %v1264
      %1294 = vmatprep.subr.mxu0 0.0
      %1295 = vmatpush1.msra.mxu0 %v1263
      %1296 = vmatprep.subr.mxu0 0.0
      %1297 = vmatpush1.msra.mxu0 %v1262
      %1298 = vmatprep.subr.mxu0 0.0
      %1299 = vmatpush1.msra.mxu0 %v1261
      %1300 = vmatprep.subr.mxu0 0.0
      %1301 = vmatpush1.msra.mxu0 %v1260
      %1302 = vmatprep.subr.mxu0 0.0
      %1303 = vmatpush1.msra.mxu0 %v1259
      %1304 = vmatprep.subr.mxu0 0.0
      %1305 = vmatpush1.msra.mxu0 %v1258
      %1306 = vmatprep.subr.mxu0 0.0
      %1307 = vmatpush2.msra.mxu0 0.0
      %1308 = vmatprep.subr.mxu0 0.0
      %1309 = vmatpush2.msra.mxu0 0.0
      %1310 = vmatprep.subr.mxu0 0.0
      %1311 = vmatpush2.msra.mxu0 0.0
      %1312 = vmatprep.subr.mxu0 0.0
      %1313 = vmatpush2.msra.mxu0 0.0
      %1314 = vmatprep.subr.mxu0 0.0
      %1315 = vmatpush2.msra.mxu0 0.0
      %1316 = vmatprep.subr.mxu0 0.0
      %1317 = vmatpush2.msra.mxu0 0.0
      %1318 = vmatprep.subr.mxu0 0.0
      %1319 = vmatpush2.msra.mxu0 0.0
      %1320 = vmatprep.subr.mxu0 0.0
      %1321 = vmatpush2.msra.mxu0 0.0
      %1322 = vmatprep.subr.mxu0 0.0
      %1323 = vmatpush2.msra.mxu0 0.0
      %1324 = vmatprep.subr.mxu0 0.0
      %1325 = vmatpush2.msra.mxu0 0.0
      %1326 = vmatprep.subr.mxu0 0.0
      %1327 = vmatpush2.msra.mxu0 0.0
      %1328 = vmatprep.subr.mxu0 0.0
      %1329 = vmatpush2.msra.mxu0 0.0
      %1330 = vmatprep.subr.mxu0 0.0
      %1331 = vmatpush2.msra.mxu0 0.0
      %1332 = vmatprep.subr.mxu0 0.0
      %1333 = vmatpush2.msra.mxu0 0.0
      %1334 = vmatprep.subr.mxu0 0.0
      %1335 = vmatpush2.msra.mxu0 0.0
      %1336 = vmatprep.subr.mxu0 0.0
      %1337 = vmatpush2.msra.mxu0 0.0
      %1338 = vmatprep.mubr.f32.mxu0 0.0
      %1339 = vmatmul.mubr.f32.gmra.mxu0 %v1241
      %v1340 = vpop.f32.mrf.mxu0
      %v1341 = vadd.f32 0.0, %v1340
      %v1342 = vpop.f32.mrf.mxu0
      %1343 = vmatprep.mubr.f32.mxu0 0.0
      %1344 = vmatmul.mubr.f32.gmra.mxu0 %v1242
      %v1345 = vpop.f32.mrf.mxu0
      %v1346 = vadd.f32 0.0, %v1345
      %v1347 = vpop.f32.mrf.mxu0
      %1348 = vmatprep.mubr.f32.mxu0 0.0
      %1349 = vmatmul.mubr.f32.gmra.mxu0 %v1243
      %v1350 = vpop.f32.mrf.mxu0
      %v1351 = vadd.f32 0.0, %v1350
      %v1352 = vpop.f32.mrf.mxu0
      %1353 = vmatprep.mubr.f32.mxu0 0.0
      %1354 = vmatmul.mubr.f32.gmra.mxu0 %v1244
      %v1355 = vpop.f32.mrf.mxu0
      %v1356 = vadd.f32 0.0, %v1355
      %v1357 = vpop.f32.mrf.mxu0
      %1358 = vmatprep.mubr.f32.mxu0 0.0
      %1359 = vmatmul.mubr.f32.gmra.mxu0 %v1245
      %v1360 = vpop.f32.mrf.mxu0
      %v1361 = vadd.f32 0.0, %v1360
      %v1362 = vpop.f32.mrf.mxu0
      %1363 = vmatprep.mubr.f32.mxu0 0.0
      %1364 = vmatmul.mubr.f32.gmra.mxu0 %v1246
      %v1365 = vpop.f32.mrf.mxu0
      %v1366 = vadd.f32 0.0, %v1365
      %v1367 = vpop.f32.mrf.mxu0
      %1368 = vmatprep.mubr.f32.mxu0 0.0
      %1369 = vmatmul.mubr.f32.gmra.mxu0 %v1247
      %v1370 = vpop.f32.mrf.mxu0
      %v1371 = vadd.f32 0.0, %v1370
      %v1372 = vpop.f32.mrf.mxu0
      %1373 = vmatprep.mubr.f32.mxu0 0.0
      %1374 = vmatmul.mubr.f32.gmra.mxu0 %v1248
      %v1375 = vpop.f32.mrf.mxu0
      %v1376 = vadd.f32 0.0, %v1375
      %v1377 = vpop.f32.mrf.mxu0
      %1378 = vmatprep.mubr.f32.mxu0 0.0
      %1379 = vmatmul.mubr.f32.gmra.mxu0 %v1249
      %v1380 = vpop.f32.mrf.mxu0
      %v1381 = vadd.f32 0.0, %v1380
      %v1382 = vpop.f32.mrf.mxu0
      %1383 = vmatprep.mubr.f32.mxu0 0.0
      %1384 = vmatmul.mubr.f32.gmra.mxu0 %v1250
      %v1385 = vpop.f32.mrf.mxu0
      %v1386 = vadd.f32 0.0, %v1385
      %v1387 = vpop.f32.mrf.mxu0
      %1388 = vmatprep.mubr.f32.mxu0 0.0
      %1389 = vmatmul.mubr.f32.gmra.mxu0 %v1251
      %v1390 = vpop.f32.mrf.mxu0
      %v1391 = vadd.f32 0.0, %v1390
      %v1392 = vpop.f32.mrf.mxu0
      %1393 = vmatprep.mubr.f32.mxu0 0.0
      %1394 = vmatmul.mubr.f32.gmra.mxu0 %v1252
      %v1395 = vpop.f32.mrf.mxu0
      %v1396 = vadd.f32 0.0, %v1395
      %v1397 = vpop.f32.mrf.mxu0
      %1398 = vmatprep.mubr.f32.mxu0 0.0
      %1399 = vmatmul.mubr.f32.gmra.mxu0 %v1253
      %v1400 = vpop.f32.mrf.mxu0
      %v1401 = vadd.f32 0.0, %v1400
      %v1402 = vpop.f32.mrf.mxu0
      %1403 = vmatprep.mubr.f32.mxu0 0.0
      %1404 = vmatmul.mubr.f32.gmra.mxu0 %v1254
      %v1405 = vpop.f32.mrf.mxu0
      %v1406 = vadd.f32 0.0, %v1405
      %v1407 = vpop.f32.mrf.mxu0
      %1408 = vmatprep.mubr.f32.mxu0 0.0
      %1409 = vmatmul.mubr.f32.gmra.mxu0 %v1255
      %v1410 = vpop.f32.mrf.mxu0
      %v1411 = vadd.f32 0.0, %v1410
      %v1412 = vpop.f32.mrf.mxu0
      %1413 = vmatprep.mubr.f32.mxu0 0.0
      %1414 = vmatmul.mubr.f32.gmra.mxu0 %v1256
      %v1415 = vpop.f32.mrf.mxu0
      %v1416 = vadd.f32 0.0, %v1415
      %v1417 = vpop.f32.mrf.mxu0
      %1418 = vdwg.mxu0
      %v1419 = vadd.f32 %v1225, %v1341
      %v1420 = vadd.f32 %v1226, %v1346
      %v1421 = vadd.f32 %v1227, %v1351
      %v1422 = vadd.f32 %v1228, %v1356
      %v1423 = vadd.f32 %v1229, %v1361
      %v1424 = vadd.f32 %v1230, %v1366
      %v1425 = vadd.f32 %v1231, %v1371
      %v1426 = vadd.f32 %v1232, %v1376
      %v1427 = vadd.f32 %v1233, %v1381
      %v1428 = vadd.f32 %v1234, %v1386
      %v1429 = vadd.f32 %v1235, %v1391
      %v1430 = vadd.f32 %v1236, %v1396
      %v1431 = vadd.f32 %v1237, %v1401
      %v1432 = vadd.f32 %v1238, %v1406
      %v1433 = vadd.f32 %v1239, %v1411
      %v1434 = vadd.f32 %v1240, %v1416
      %v1435 = vld [vmem:[%s1046 + $0x2] sm:$0xff]
      %v1436 = vld [vmem:[%s1046 + $0xa] sm:$0xff]
      %v1437 = vld [vmem:[%s1046 + $0x1a] sm:$0xff]
      %v1438 = vld [vmem:[%s1046 + $0x22] sm:$0xff]
      %v1439 = vld [vmem:[%s1046 + $0x32] sm:$0xff]
      %v1440 = vld [vmem:[%s1046 + $0x3a] sm:$0xff]
      %v1441 = vld [vmem:[%s1046 + $0x4a] sm:$0xff]
      %v1442 = vld [vmem:[%s1046 + $0x52] sm:$0xff]
      %v1443 = vld [vmem:[%s1046 + $0x62] sm:$0xff]
      %v1444 = vld [vmem:[%s1046 + $0x6a] sm:$0xff]
      %v1445 = vld [vmem:[%s1046 + $0x7a] sm:$0xff]
      %v1446 = vld [vmem:[%s1046 + $0x82] sm:$0xff]
      %v1447 = vld [vmem:[%s1046 + $0x92] sm:$0xff]
      %v1448 = vld [vmem:[%s1046 + $0x9a] sm:$0xff]
      %v1449 = vld [vmem:[%s1046 + $0xaa] sm:$0xff]
      %v1450 = vld [vmem:[%s1046 + $0xb2] sm:$0xff]
      %s1451 = scalar_lea.vmem %s1, 640
      %v1452 = vld [vmem:[%s1451] sm:$0xff]
      %v1453 = vld [vmem:[%s1451 + $0x8] sm:$0xff]
      %v1454 = vld [vmem:[%s1451 + $0x10] sm:$0xff]
      %v1455 = vld [vmem:[%s1451 + $0x18] sm:$0xff]
      %v1456 = vld [vmem:[%s1451 + $0x20] sm:$0xff]
      %v1457 = vld [vmem:[%s1451 + $0x28] sm:$0xff]
      %v1458 = vld [vmem:[%s1451 + $0x30] sm:$0xff]
      %v1459 = vld [vmem:[%s1451 + $0x38] sm:$0xff]
      %v1460 = vld [vmem:[%s1451 + $0x40] sm:$0xff]
      %v1461 = vld [vmem:[%s1451 + $0x48] sm:$0xff]
      %v1462 = vld [vmem:[%s1451 + $0x50] sm:$0xff]
      %v1463 = vld [vmem:[%s1451 + $0x58] sm:$0xff]
      %v1464 = vld [vmem:[%s1451 + $0x60] sm:$0xff]
      %v1465 = vld [vmem:[%s1451 + $0x68] sm:$0xff]
      %v1466 = vld [vmem:[%s1451 + $0x70] sm:$0xff]
      %v1467 = vld [vmem:[%s1451 + $0x78] sm:$0xff]
      %1468 = vmatprep.subr.mxu0 0.0
      %1469 = vmatpush1.msra.mxu0 %v1467
      %1470 = vmatprep.subr.mxu0 0.0
      %1471 = vmatpush1.msra.mxu0 %v1466
      %1472 = vmatprep.subr.mxu0 0.0
      %1473 = vmatpush1.msra.mxu0 %v1465
      %1474 = vmatprep.subr.mxu0 0.0
      %1475 = vmatpush1.msra.mxu0 %v1464
      %1476 = vmatprep.subr.mxu0 0.0
      %1477 = vmatpush1.msra.mxu0 %v1463
      %1478 = vmatprep.subr.mxu0 0.0
      %1479 = vmatpush1.msra.mxu0 %v1462
      %1480 = vmatprep.subr.mxu0 0.0
      %1481 = vmatpush1.msra.mxu0 %v1461
      %1482 = vmatprep.subr.mxu0 0.0
      %1483 = vmatpush1.msra.mxu0 %v1460
      %1484 = vmatprep.subr.mxu0 0.0
      %1485 = vmatpush1.msra.mxu0 %v1459
      %1486 = vmatprep.subr.mxu0 0.0
      %1487 = vmatpush1.msra.mxu0 %v1458
      %1488 = vmatprep.subr.mxu0 0.0
      %1489 = vmatpush1.msra.mxu0 %v1457
      %1490 = vmatprep.subr.mxu0 0.0
      %1491 = vmatpush1.msra.mxu0 %v1456
      %1492 = vmatprep.subr.mxu0 0.0
      %1493 = vmatpush1.msra.mxu0 %v1455
      %1494 = vmatprep.subr.mxu0 0.0
      %1495 = vmatpush1.msra.mxu0 %v1454
      %1496 = vmatprep.subr.mxu0 0.0
      %1497 = vmatpush1.msra.mxu0 %v1453
      %1498 = vmatprep.subr.mxu0 0.0
      %1499 = vmatpush1.msra.mxu0 %v1452
      %1500 = vmatprep.subr.mxu0 0.0
      %1501 = vmatpush2.msra.mxu0 0.0
      %1502 = vmatprep.subr.mxu0 0.0
      %1503 = vmatpush2.msra.mxu0 0.0
      %1504 = vmatprep.subr.mxu0 0.0
      %1505 = vmatpush2.msra.mxu0 0.0
      %1506 = vmatprep.subr.mxu0 0.0
      %1507 = vmatpush2.msra.mxu0 0.0
      %1508 = vmatprep.subr.mxu0 0.0
      %1509 = vmatpush2.msra.mxu0 0.0
      %1510 = vmatprep.subr.mxu0 0.0
      %1511 = vmatpush2.msra.mxu0 0.0
      %1512 = vmatprep.subr.mxu0 0.0
      %1513 = vmatpush2.msra.mxu0 0.0
      %1514 = vmatprep.subr.mxu0 0.0
      %1515 = vmatpush2.msra.mxu0 0.0
      %1516 = vmatprep.subr.mxu0 0.0
      %1517 = vmatpush2.msra.mxu0 0.0
      %1518 = vmatprep.subr.mxu0 0.0
      %1519 = vmatpush2.msra.mxu0 0.0
      %1520 = vmatprep.subr.mxu0 0.0
      %1521 = vmatpush2.msra.mxu0 0.0
      %1522 = vmatprep.subr.mxu0 0.0
      %1523 = vmatpush2.msra.mxu0 0.0
      %1524 = vmatprep.subr.mxu0 0.0
      %1525 = vmatpush2.msra.mxu0 0.0
      %1526 = vmatprep.subr.mxu0 0.0
      %1527 = vmatpush2.msra.mxu0 0.0
      %1528 = vmatprep.subr.mxu0 0.0
      %1529 = vmatpush2.msra.mxu0 0.0
      %1530 = vmatprep.subr.mxu0 0.0
      %1531 = vmatpush2.msra.mxu0 0.0
      %1532 = vmatprep.mubr.f32.mxu0 0.0
      %1533 = vmatmul.mubr.f32.gmra.mxu0 %v1435
      %v1534 = vpop.f32.mrf.mxu0
      %v1535 = vadd.f32 0.0, %v1534
      %v1536 = vpop.f32.mrf.mxu0
      %1537 = vmatprep.mubr.f32.mxu0 0.0
      %1538 = vmatmul.mubr.f32.gmra.mxu0 %v1436
      %v1539 = vpop.f32.mrf.mxu0
      %v1540 = vadd.f32 0.0, %v1539
      %v1541 = vpop.f32.mrf.mxu0
      %1542 = vmatprep.mubr.f32.mxu0 0.0
      %1543 = vmatmul.mubr.f32.gmra.mxu0 %v1437
      %v1544 = vpop.f32.mrf.mxu0
      %v1545 = vadd.f32 0.0, %v1544
      %v1546 = vpop.f32.mrf.mxu0
      %1547 = vmatprep.mubr.f32.mxu0 0.0
      %1548 = vmatmul.mubr.f32.gmra.mxu0 %v1438
      %v1549 = vpop.f32.mrf.mxu0
      %v1550 = vadd.f32 0.0, %v1549
      %v1551 = vpop.f32.mrf.mxu0
      %1552 = vmatprep.mubr.f32.mxu0 0.0
      %1553 = vmatmul.mubr.f32.gmra.mxu0 %v1439
      %v1554 = vpop.f32.mrf.mxu0
      %v1555 = vadd.f32 0.0, %v1554
      %v1556 = vpop.f32.mrf.mxu0
      %1557 = vmatprep.mubr.f32.mxu0 0.0
      %1558 = vmatmul.mubr.f32.gmra.mxu0 %v1440
      %v1559 = vpop.f32.mrf.mxu0
      %v1560 = vadd.f32 0.0, %v1559
      %v1561 = vpop.f32.mrf.mxu0
      %1562 = vmatprep.mubr.f32.mxu0 0.0
      %1563 = vmatmul.mubr.f32.gmra.mxu0 %v1441
      %v1564 = vpop.f32.mrf.mxu0
      %v1565 = vadd.f32 0.0, %v1564
      %v1566 = vpop.f32.mrf.mxu0
      %1567 = vmatprep.mubr.f32.mxu0 0.0
      %1568 = vmatmul.mubr.f32.gmra.mxu0 %v1442
      %v1569 = vpop.f32.mrf.mxu0
      %v1570 = vadd.f32 0.0, %v1569
      %v1571 = vpop.f32.mrf.mxu0
      %1572 = vmatprep.mubr.f32.mxu0 0.0
      %1573 = vmatmul.mubr.f32.gmra.mxu0 %v1443
      %v1574 = vpop.f32.mrf.mxu0
      %v1575 = vadd.f32 0.0, %v1574
      %v1576 = vpop.f32.mrf.mxu0
      %1577 = vmatprep.mubr.f32.mxu0 0.0
      %1578 = vmatmul.mubr.f32.gmra.mxu0 %v1444
      %v1579 = vpop.f32.mrf.mxu0
      %v1580 = vadd.f32 0.0, %v1579
      %v1581 = vpop.f32.mrf.mxu0
      %1582 = vmatprep.mubr.f32.mxu0 0.0
      %1583 = vmatmul.mubr.f32.gmra.mxu0 %v1445
      %v1584 = vpop.f32.mrf.mxu0
      %v1585 = vadd.f32 0.0, %v1584
      %v1586 = vpop.f32.mrf.mxu0
      %1587 = vmatprep.mubr.f32.mxu0 0.0
      %1588 = vmatmul.mubr.f32.gmra.mxu0 %v1446
      %v1589 = vpop.f32.mrf.mxu0
      %v1590 = vadd.f32 0.0, %v1589
      %v1591 = vpop.f32.mrf.mxu0
      %1592 = vmatprep.mubr.f32.mxu0 0.0
      %1593 = vmatmul.mubr.f32.gmra.mxu0 %v1447
      %v1594 = vpop.f32.mrf.mxu0
      %v1595 = vadd.f32 0.0, %v1594
      %v1596 = vpop.f32.mrf.mxu0
      %1597 = vmatprep.mubr.f32.mxu0 0.0
      %1598 = vmatmul.mubr.f32.gmra.mxu0 %v1448
      %v1599 = vpop.f32.mrf.mxu0
      %v1600 = vadd.f32 0.0, %v1599
      %v1601 = vpop.f32.mrf.mxu0
      %1602 = vmatprep.mubr.f32.mxu0 0.0
      %1603 = vmatmul.mubr.f32.gmra.mxu0 %v1449
      %v1604 = vpop.f32.mrf.mxu0
      %v1605 = vadd.f32 0.0, %v1604
      %v1606 = vpop.f32.mrf.mxu0
      %1607 = vmatprep.mubr.f32.mxu0 0.0
      %1608 = vmatmul.mubr.f32.gmra.mxu0 %v1450
      %v1609 = vpop.f32.mrf.mxu0
      %v1610 = vadd.f32 0.0, %v1609
      %v1611 = vpop.f32.mrf.mxu0
      %1612 = vdwg.mxu0
      %v1613 = vadd.f32 %v1419, %v1535
      %v1614 = vadd.f32 %v1420, %v1540
      %v1615 = vadd.f32 %v1421, %v1545
      %v1616 = vadd.f32 %v1422, %v1550
      %v1617 = vadd.f32 %v1423, %v1555
      %v1618 = vadd.f32 %v1424, %v1560
      %v1619 = vadd.f32 %v1425, %v1565
      %v1620 = vadd.f32 %v1426, %v1570
      %v1621 = vadd.f32 %v1427, %v1575
      %v1622 = vadd.f32 %v1428, %v1580
      %v1623 = vadd.f32 %v1429, %v1585
      %v1624 = vadd.f32 %v1430, %v1590
      %v1625 = vadd.f32 %v1431, %v1595
      %v1626 = vadd.f32 %v1432, %v1600
      %v1627 = vadd.f32 %v1433, %v1605
      %v1628 = vadd.f32 %v1434, %v1610
      %s1629 = scalar_lea.vmem %s347, 48 [#allocation2]
      %v1630 = vld [vmem:[%s1629] sm:$0xff]
      %v1631 = vld [vmem:[%s1629 + $0x8] sm:$0xff]
      %v1632 = vld [vmem:[%s1629 + $0x18] sm:$0xff]
      %v1633 = vld [vmem:[%s1629 + $0x20] sm:$0xff]
      %v1634 = vld [vmem:[%s1629 + $0x30] sm:$0xff]
      %v1635 = vld [vmem:[%s1629 + $0x38] sm:$0xff]
      %v1636 = vld [vmem:[%s1629 + $0x48] sm:$0xff]
      %v1637 = vld [vmem:[%s1629 + $0x50] sm:$0xff]
      %v1638 = vld [vmem:[%s1629 + $0x60] sm:$0xff]
      %v1639 = vld [vmem:[%s1629 + $0x68] sm:$0xff]
      %v1640 = vld [vmem:[%s1629 + $0x78] sm:$0xff]
      %v1641 = vld [vmem:[%s1629 + $0x80] sm:$0xff]
      %v1642 = vld [vmem:[%s1629 + $0x90] sm:$0xff]
      %v1643 = vld [vmem:[%s1629 + $0x98] sm:$0xff]
      %v1644 = vld [vmem:[%s1629 + $0xa8] sm:$0xff]
      %v1645 = vld [vmem:[%s1629 + $0xb0] sm:$0xff]
      %s1646 = scalar_lea.vmem %s1, 768
      %v1647 = vld [vmem:[%s1646] sm:$0xff]
      %v1648 = vld [vmem:[%s1646 + $0x8] sm:$0xff]
      %v1649 = vld [vmem:[%s1646 + $0x10] sm:$0xff]
      %v1650 = vld [vmem:[%s1646 + $0x18] sm:$0xff]
      %v1651 = vld [vmem:[%s1646 + $0x20] sm:$0xff]
      %v1652 = vld [vmem:[%s1646 + $0x28] sm:$0xff]
      %v1653 = vld [vmem:[%s1646 + $0x30] sm:$0xff]
      %v1654 = vld [vmem:[%s1646 + $0x38] sm:$0xff]
      %v1655 = vld [vmem:[%s1646 + $0x40] sm:$0xff]
      %v1656 = vld [vmem:[%s1646 + $0x48] sm:$0xff]
      %v1657 = vld [vmem:[%s1646 + $0x50] sm:$0xff]
      %v1658 = vld [vmem:[%s1646 + $0x58] sm:$0xff]
      %v1659 = vld [vmem:[%s1646 + $0x60] sm:$0xff]
      %v1660 = vld [vmem:[%s1646 + $0x68] sm:$0xff]
      %v1661 = vld [vmem:[%s1646 + $0x70] sm:$0xff]
      %v1662 = vld [vmem:[%s1646 + $0x78] sm:$0xff]
      %1663 = vmatprep.subr.mxu0 0.0
      %1664 = vmatpush1.msra.mxu0 %v1662
      %1665 = vmatprep.subr.mxu0 0.0
      %1666 = vmatpush1.msra.mxu0 %v1661
      %1667 = vmatprep.subr.mxu0 0.0
      %1668 = vmatpush1.msra.mxu0 %v1660
      %1669 = vmatprep.subr.mxu0 0.0
      %1670 = vmatpush1.msra.mxu0 %v1659
      %1671 = vmatprep.subr.mxu0 0.0
      %1672 = vmatpush1.msra.mxu0 %v1658
      %1673 = vmatprep.subr.mxu0 0.0
      %1674 = vmatpush1.msra.mxu0 %v1657
      %1675 = vmatprep.subr.mxu0 0.0
      %1676 = vmatpush1.msra.mxu0 %v1656
      %1677 = vmatprep.subr.mxu0 0.0
      %1678 = vmatpush1.msra.mxu0 %v1655
      %1679 = vmatprep.subr.mxu0 0.0
      %1680 = vmatpush1.msra.mxu0 %v1654
      %1681 = vmatprep.subr.mxu0 0.0
      %1682 = vmatpush1.msra.mxu0 %v1653
      %1683 = vmatprep.subr.mxu0 0.0
      %1684 = vmatpush1.msra.mxu0 %v1652
      %1685 = vmatprep.subr.mxu0 0.0
      %1686 = vmatpush1.msra.mxu0 %v1651
      %1687 = vmatprep.subr.mxu0 0.0
      %1688 = vmatpush1.msra.mxu0 %v1650
      %1689 = vmatprep.subr.mxu0 0.0
      %1690 = vmatpush1.msra.mxu0 %v1649
      %1691 = vmatprep.subr.mxu0 0.0
      %1692 = vmatpush1.msra.mxu0 %v1648
      %1693 = vmatprep.subr.mxu0 0.0
      %1694 = vmatpush1.msra.mxu0 %v1647
      %1695 = vmatprep.subr.mxu0 0.0
      %1696 = vmatpush2.msra.mxu0 0.0
      %1697 = vmatprep.subr.mxu0 0.0
      %1698 = vmatpush2.msra.mxu0 0.0
      %1699 = vmatprep.subr.mxu0 0.0
      %1700 = vmatpush2.msra.mxu0 0.0
      %1701 = vmatprep.subr.mxu0 0.0
      %1702 = vmatpush2.msra.mxu0 0.0
      %1703 = vmatprep.subr.mxu0 0.0
      %1704 = vmatpush2.msra.mxu0 0.0
      %1705 = vmatprep.subr.mxu0 0.0
      %1706 = vmatpush2.msra.mxu0 0.0
      %1707 = vmatprep.subr.mxu0 0.0
      %1708 = vmatpush2.msra.mxu0 0.0
      %1709 = vmatprep.subr.mxu0 0.0
      %1710 = vmatpush2.msra.mxu0 0.0
      %1711 = vmatprep.subr.mxu0 0.0
      %1712 = vmatpush2.msra.mxu0 0.0
      %1713 = vmatprep.subr.mxu0 0.0
      %1714 = vmatpush2.msra.mxu0 0.0
      %1715 = vmatprep.subr.mxu0 0.0
      %1716 = vmatpush2.msra.mxu0 0.0
      %1717 = vmatprep.subr.mxu0 0.0
      %1718 = vmatpush2.msra.mxu0 0.0
      %1719 = vmatprep.subr.mxu0 0.0
      %1720 = vmatpush2.msra.mxu0 0.0
      %1721 = vmatprep.subr.mxu0 0.0
      %1722 = vmatpush2.msra.mxu0 0.0
      %1723 = vmatprep.subr.mxu0 0.0
      %1724 = vmatpush2.msra.mxu0 0.0
      %1725 = vmatprep.subr.mxu0 0.0
      %1726 = vmatpush2.msra.mxu0 0.0
      %1727 = vmatprep.mubr.f32.mxu0 0.0
      %1728 = vmatmul.mubr.f32.gmra.mxu0 %v1630
      %v1729 = vpop.f32.mrf.mxu0
      %v1730 = vadd.f32 0.0, %v1729
      %v1731 = vpop.f32.mrf.mxu0
      %1732 = vmatprep.mubr.f32.mxu0 0.0
      %1733 = vmatmul.mubr.f32.gmra.mxu0 %v1631
      %v1734 = vpop.f32.mrf.mxu0
      %v1735 = vadd.f32 0.0, %v1734
      %v1736 = vpop.f32.mrf.mxu0
      %1737 = vmatprep.mubr.f32.mxu0 0.0
      %1738 = vmatmul.mubr.f32.gmra.mxu0 %v1632
      %v1739 = vpop.f32.mrf.mxu0
      %v1740 = vadd.f32 0.0, %v1739
      %v1741 = vpop.f32.mrf.mxu0
      %1742 = vmatprep.mubr.f32.mxu0 0.0
      %1743 = vmatmul.mubr.f32.gmra.mxu0 %v1633
      %v1744 = vpop.f32.mrf.mxu0
      %v1745 = vadd.f32 0.0, %v1744
      %v1746 = vpop.f32.mrf.mxu0
      %1747 = vmatprep.mubr.f32.mxu0 0.0
      %1748 = vmatmul.mubr.f32.gmra.mxu0 %v1634
      %v1749 = vpop.f32.mrf.mxu0
      %v1750 = vadd.f32 0.0, %v1749
      %v1751 = vpop.f32.mrf.mxu0
      %1752 = vmatprep.mubr.f32.mxu0 0.0
      %1753 = vmatmul.mubr.f32.gmra.mxu0 %v1635
      %v1754 = vpop.f32.mrf.mxu0
      %v1755 = vadd.f32 0.0, %v1754
      %v1756 = vpop.f32.mrf.mxu0
      %1757 = vmatprep.mubr.f32.mxu0 0.0
      %1758 = vmatmul.mubr.f32.gmra.mxu0 %v1636
      %v1759 = vpop.f32.mrf.mxu0
      %v1760 = vadd.f32 0.0, %v1759
      %v1761 = vpop.f32.mrf.mxu0
      %1762 = vmatprep.mubr.f32.mxu0 0.0
      %1763 = vmatmul.mubr.f32.gmra.mxu0 %v1637
      %v1764 = vpop.f32.mrf.mxu0
      %v1765 = vadd.f32 0.0, %v1764
      %v1766 = vpop.f32.mrf.mxu0
      %1767 = vmatprep.mubr.f32.mxu0 0.0
      %1768 = vmatmul.mubr.f32.gmra.mxu0 %v1638
      %v1769 = vpop.f32.mrf.mxu0
      %v1770 = vadd.f32 0.0, %v1769
      %v1771 = vpop.f32.mrf.mxu0
      %1772 = vmatprep.mubr.f32.mxu0 0.0
      %1773 = vmatmul.mubr.f32.gmra.mxu0 %v1639
      %v1774 = vpop.f32.mrf.mxu0
      %v1775 = vadd.f32 0.0, %v1774
      %v1776 = vpop.f32.mrf.mxu0
      %1777 = vmatprep.mubr.f32.mxu0 0.0
      %1778 = vmatmul.mubr.f32.gmra.mxu0 %v1640
      %v1779 = vpop.f32.mrf.mxu0
      %v1780 = vadd.f32 0.0, %v1779
      %v1781 = vpop.f32.mrf.mxu0
      %1782 = vmatprep.mubr.f32.mxu0 0.0
      %1783 = vmatmul.mubr.f32.gmra.mxu0 %v1641
      %v1784 = vpop.f32.mrf.mxu0
      %v1785 = vadd.f32 0.0, %v1784
      %v1786 = vpop.f32.mrf.mxu0
      %1787 = vmatprep.mubr.f32.mxu0 0.0
      %1788 = vmatmul.mubr.f32.gmra.mxu0 %v1642
      %v1789 = vpop.f32.mrf.mxu0
      %v1790 = vadd.f32 0.0, %v1789
      %v1791 = vpop.f32.mrf.mxu0
      %1792 = vmatprep.mubr.f32.mxu0 0.0
      %1793 = vmatmul.mubr.f32.gmra.mxu0 %v1643
      %v1794 = vpop.f32.mrf.mxu0
      %v1795 = vadd.f32 0.0, %v1794
      %v1796 = vpop.f32.mrf.mxu0
      %1797 = vmatprep.mubr.f32.mxu0 0.0
      %1798 = vmatmul.mubr.f32.gmra.mxu0 %v1644
      %v1799 = vpop.f32.mrf.mxu0
      %v1800 = vadd.f32 0.0, %v1799
      %v1801 = vpop.f32.mrf.mxu0
      %1802 = vmatprep.mubr.f32.mxu0 0.0
      %1803 = vmatmul.mubr.f32.gmra.mxu0 %v1645
      %v1804 = vpop.f32.mrf.mxu0
      %v1805 = vadd.f32 0.0, %v1804
      %v1806 = vpop.f32.mrf.mxu0
      %1807 = vdwg.mxu0
      %v1808 = vadd.f32 %v1613, %v1730
      %v1809 = vadd.f32 %v1614, %v1735
      %v1810 = vadd.f32 %v1615, %v1740
      %v1811 = vadd.f32 %v1616, %v1745
      %v1812 = vadd.f32 %v1617, %v1750
      %v1813 = vadd.f32 %v1618, %v1755
      %v1814 = vadd.f32 %v1619, %v1760
      %v1815 = vadd.f32 %v1620, %v1765
      %v1816 = vadd.f32 %v1621, %v1770
      %v1817 = vadd.f32 %v1622, %v1775
      %v1818 = vadd.f32 %v1623, %v1780
      %v1819 = vadd.f32 %v1624, %v1785
      %v1820 = vadd.f32 %v1625, %v1790
      %v1821 = vadd.f32 %v1626, %v1795
      %v1822 = vadd.f32 %v1627, %v1800
      %v1823 = vadd.f32 %v1628, %v1805
      %v1824 = vld [vmem:[%s1629 + $0x1] sm:$0xff]
      %v1825 = vld [vmem:[%s1629 + $0x9] sm:$0xff]
      %v1826 = vld [vmem:[%s1629 + $0x19] sm:$0xff]
      %v1827 = vld [vmem:[%s1629 + $0x21] sm:$0xff]
      %v1828 = vld [vmem:[%s1629 + $0x31] sm:$0xff]
      %v1829 = vld [vmem:[%s1629 + $0x39] sm:$0xff]
      %v1830 = vld [vmem:[%s1629 + $0x49] sm:$0xff]
      %v1831 = vld [vmem:[%s1629 + $0x51] sm:$0xff]
      %v1832 = vld [vmem:[%s1629 + $0x61] sm:$0xff]
      %v1833 = vld [vmem:[%s1629 + $0x69] sm:$0xff]
      %v1834 = vld [vmem:[%s1629 + $0x79] sm:$0xff]
      %v1835 = vld [vmem:[%s1629 + $0x81] sm:$0xff]
      %v1836 = vld [vmem:[%s1629 + $0x91] sm:$0xff]
      %v1837 = vld [vmem:[%s1629 + $0x99] sm:$0xff]
      %v1838 = vld [vmem:[%s1629 + $0xa9] sm:$0xff]
      %v1839 = vld [vmem:[%s1629 + $0xb1] sm:$0xff]
      %s1840 = scalar_lea.vmem %s1, 896
      %v1841 = vld [vmem:[%s1840] sm:$0xff]
      %v1842 = vld [vmem:[%s1840 + $0x8] sm:$0xff]
      %v1843 = vld [vmem:[%s1840 + $0x10] sm:$0xff]
      %v1844 = vld [vmem:[%s1840 + $0x18] sm:$0xff]
      %v1845 = vld [vmem:[%s1840 + $0x20] sm:$0xff]
      %v1846 = vld [vmem:[%s1840 + $0x28] sm:$0xff]
      %v1847 = vld [vmem:[%s1840 + $0x30] sm:$0xff]
      %v1848 = vld [vmem:[%s1840 + $0x38] sm:$0xff]
      %v1849 = vld [vmem:[%s1840 + $0x40] sm:$0xff]
      %v1850 = vld [vmem:[%s1840 + $0x48] sm:$0xff]
      %v1851 = vld [vmem:[%s1840 + $0x50] sm:$0xff]
      %v1852 = vld [vmem:[%s1840 + $0x58] sm:$0xff]
      %v1853 = vld [vmem:[%s1840 + $0x60] sm:$0xff]
      %v1854 = vld [vmem:[%s1840 + $0x68] sm:$0xff]
      %v1855 = vld [vmem:[%s1840 + $0x70] sm:$0xff]
      %v1856 = vld [vmem:[%s1840 + $0x78] sm:$0xff]
      %1857 = vmatprep.subr.mxu0 0.0
      %1858 = vmatpush1.msra.mxu0 %v1856
      %1859 = vmatprep.subr.mxu0 0.0
      %1860 = vmatpush1.msra.mxu0 %v1855
      %1861 = vmatprep.subr.mxu0 0.0
      %1862 = vmatpush1.msra.mxu0 %v1854
      %1863 = vmatprep.subr.mxu0 0.0
      %1864 = vmatpush1.msra.mxu0 %v1853
      %1865 = vmatprep.subr.mxu0 0.0
      %1866 = vmatpush1.msra.mxu0 %v1852
      %1867 = vmatprep.subr.mxu0 0.0
      %1868 = vmatpush1.msra.mxu0 %v1851
      %1869 = vmatprep.subr.mxu0 0.0
      %1870 = vmatpush1.msra.mxu0 %v1850
      %1871 = vmatprep.subr.mxu0 0.0
      %1872 = vmatpush1.msra.mxu0 %v1849
      %1873 = vmatprep.subr.mxu0 0.0
      %1874 = vmatpush1.msra.mxu0 %v1848
      %1875 = vmatprep.subr.mxu0 0.0
      %1876 = vmatpush1.msra.mxu0 %v1847
      %1877 = vmatprep.subr.mxu0 0.0
      %1878 = vmatpush1.msra.mxu0 %v1846
      %1879 = vmatprep.subr.mxu0 0.0
      %1880 = vmatpush1.msra.mxu0 %v1845
      %1881 = vmatprep.subr.mxu0 0.0
      %1882 = vmatpush1.msra.mxu0 %v1844
      %1883 = vmatprep.subr.mxu0 0.0
      %1884 = vmatpush1.msra.mxu0 %v1843
      %1885 = vmatprep.subr.mxu0 0.0
      %1886 = vmatpush1.msra.mxu0 %v1842
      %1887 = vmatprep.subr.mxu0 0.0
      %1888 = vmatpush1.msra.mxu0 %v1841
      %1889 = vmatprep.subr.mxu0 0.0
      %1890 = vmatpush2.msra.mxu0 0.0
      %1891 = vmatprep.subr.mxu0 0.0
      %1892 = vmatpush2.msra.mxu0 0.0
      %1893 = vmatprep.subr.mxu0 0.0
      %1894 = vmatpush2.msra.mxu0 0.0
      %1895 = vmatprep.subr.mxu0 0.0
      %1896 = vmatpush2.msra.mxu0 0.0
      %1897 = vmatprep.subr.mxu0 0.0
      %1898 = vmatpush2.msra.mxu0 0.0
      %1899 = vmatprep.subr.mxu0 0.0
      %1900 = vmatpush2.msra.mxu0 0.0
      %1901 = vmatprep.subr.mxu0 0.0
      %1902 = vmatpush2.msra.mxu0 0.0
      %1903 = vmatprep.subr.mxu0 0.0
      %1904 = vmatpush2.msra.mxu0 0.0
      %1905 = vmatprep.subr.mxu0 0.0
      %1906 = vmatpush2.msra.mxu0 0.0
      %1907 = vmatprep.subr.mxu0 0.0
      %1908 = vmatpush2.msra.mxu0 0.0
      %1909 = vmatprep.subr.mxu0 0.0
      %1910 = vmatpush2.msra.mxu0 0.0
      %1911 = vmatprep.subr.mxu0 0.0
      %1912 = vmatpush2.msra.mxu0 0.0
      %1913 = vmatprep.subr.mxu0 0.0
      %1914 = vmatpush2.msra.mxu0 0.0
      %1915 = vmatprep.subr.mxu0 0.0
      %1916 = vmatpush2.msra.mxu0 0.0
      %1917 = vmatprep.subr.mxu0 0.0
      %1918 = vmatpush2.msra.mxu0 0.0
      %1919 = vmatprep.subr.mxu0 0.0
      %1920 = vmatpush2.msra.mxu0 0.0
      %1921 = vmatprep.mubr.f32.mxu0 0.0
      %1922 = vmatmul.mubr.f32.gmra.mxu0 %v1824
      %v1923 = vpop.f32.mrf.mxu0
      %v1924 = vadd.f32 0.0, %v1923
      %v1925 = vpop.f32.mrf.mxu0
      %1926 = vmatprep.mubr.f32.mxu0 0.0
      %1927 = vmatmul.mubr.f32.gmra.mxu0 %v1825
      %v1928 = vpop.f32.mrf.mxu0
      %v1929 = vadd.f32 0.0, %v1928
      %v1930 = vpop.f32.mrf.mxu0
      %1931 = vmatprep.mubr.f32.mxu0 0.0
      %1932 = vmatmul.mubr.f32.gmra.mxu0 %v1826
      %v1933 = vpop.f32.mrf.mxu0
      %v1934 = vadd.f32 0.0, %v1933
      %v1935 = vpop.f32.mrf.mxu0
      %1936 = vmatprep.mubr.f32.mxu0 0.0
      %1937 = vmatmul.mubr.f32.gmra.mxu0 %v1827
      %v1938 = vpop.f32.mrf.mxu0
      %v1939 = vadd.f32 0.0, %v1938
      %v1940 = vpop.f32.mrf.mxu0
      %1941 = vmatprep.mubr.f32.mxu0 0.0
      %1942 = vmatmul.mubr.f32.gmra.mxu0 %v1828
      %v1943 = vpop.f32.mrf.mxu0
      %v1944 = vadd.f32 0.0, %v1943
      %v1945 = vpop.f32.mrf.mxu0
      %1946 = vmatprep.mubr.f32.mxu0 0.0
      %1947 = vmatmul.mubr.f32.gmra.mxu0 %v1829
      %v1948 = vpop.f32.mrf.mxu0
      %v1949 = vadd.f32 0.0, %v1948
      %v1950 = vpop.f32.mrf.mxu0
      %1951 = vmatprep.mubr.f32.mxu0 0.0
      %1952 = vmatmul.mubr.f32.gmra.mxu0 %v1830
      %v1953 = vpop.f32.mrf.mxu0
      %v1954 = vadd.f32 0.0, %v1953
      %v1955 = vpop.f32.mrf.mxu0
      %1956 = vmatprep.mubr.f32.mxu0 0.0
      %1957 = vmatmul.mubr.f32.gmra.mxu0 %v1831
      %v1958 = vpop.f32.mrf.mxu0
      %v1959 = vadd.f32 0.0, %v1958
      %v1960 = vpop.f32.mrf.mxu0
      %1961 = vmatprep.mubr.f32.mxu0 0.0
      %1962 = vmatmul.mubr.f32.gmra.mxu0 %v1832
      %v1963 = vpop.f32.mrf.mxu0
      %v1964 = vadd.f32 0.0, %v1963
      %v1965 = vpop.f32.mrf.mxu0
      %1966 = vmatprep.mubr.f32.mxu0 0.0
      %1967 = vmatmul.mubr.f32.gmra.mxu0 %v1833
      %v1968 = vpop.f32.mrf.mxu0
      %v1969 = vadd.f32 0.0, %v1968
      %v1970 = vpop.f32.mrf.mxu0
      %1971 = vmatprep.mubr.f32.mxu0 0.0
      %1972 = vmatmul.mubr.f32.gmra.mxu0 %v1834
      %v1973 = vpop.f32.mrf.mxu0
      %v1974 = vadd.f32 0.0, %v1973
      %v1975 = vpop.f32.mrf.mxu0
      %1976 = vmatprep.mubr.f32.mxu0 0.0
      %1977 = vmatmul.mubr.f32.gmra.mxu0 %v1835
      %v1978 = vpop.f32.mrf.mxu0
      %v1979 = vadd.f32 0.0, %v1978
      %v1980 = vpop.f32.mrf.mxu0
      %1981 = vmatprep.mubr.f32.mxu0 0.0
      %1982 = vmatmul.mubr.f32.gmra.mxu0 %v1836
      %v1983 = vpop.f32.mrf.mxu0
      %v1984 = vadd.f32 0.0, %v1983
      %v1985 = vpop.f32.mrf.mxu0
      %1986 = vmatprep.mubr.f32.mxu0 0.0
      %1987 = vmatmul.mubr.f32.gmra.mxu0 %v1837
      %v1988 = vpop.f32.mrf.mxu0
      %v1989 = vadd.f32 0.0, %v1988
      %v1990 = vpop.f32.mrf.mxu0
      %1991 = vmatprep.mubr.f32.mxu0 0.0
      %1992 = vmatmul.mubr.f32.gmra.mxu0 %v1838
      %v1993 = vpop.f32.mrf.mxu0
      %v1994 = vadd.f32 0.0, %v1993
      %v1995 = vpop.f32.mrf.mxu0
      %1996 = vmatprep.mubr.f32.mxu0 0.0
      %1997 = vmatmul.mubr.f32.gmra.mxu0 %v1839
      %v1998 = vpop.f32.mrf.mxu0
      %v1999 = vadd.f32 0.0, %v1998
      %v2000 = vpop.f32.mrf.mxu0
      %2001 = vdwg.mxu0
      %v2002 = vadd.f32 %v1808, %v1924
      %v2003 = vadd.f32 %v1809, %v1929
      %v2004 = vadd.f32 %v1810, %v1934
      %v2005 = vadd.f32 %v1811, %v1939
      %v2006 = vadd.f32 %v1812, %v1944
      %v2007 = vadd.f32 %v1813, %v1949
      %v2008 = vadd.f32 %v1814, %v1954
      %v2009 = vadd.f32 %v1815, %v1959
      %v2010 = vadd.f32 %v1816, %v1964
      %v2011 = vadd.f32 %v1817, %v1969
      %v2012 = vadd.f32 %v1818, %v1974
      %v2013 = vadd.f32 %v1819, %v1979
      %v2014 = vadd.f32 %v1820, %v1984
      %v2015 = vadd.f32 %v1821, %v1989
      %v2016 = vadd.f32 %v1822, %v1994
      %v2017 = vadd.f32 %v1823, %v1999
      %v2018 = vld [vmem:[%s1629 + $0x2] sm:$0xff]
      %v2019 = vld [vmem:[%s1629 + $0xa] sm:$0xff]
      %v2020 = vld [vmem:[%s1629 + $0x1a] sm:$0xff]
      %v2021 = vld [vmem:[%s1629 + $0x22] sm:$0xff]
      %v2022 = vld [vmem:[%s1629 + $0x32] sm:$0xff]
      %v2023 = vld [vmem:[%s1629 + $0x3a] sm:$0xff]
      %v2024 = vld [vmem:[%s1629 + $0x4a] sm:$0xff]
      %v2025 = vld [vmem:[%s1629 + $0x52] sm:$0xff]
      %v2026 = vld [vmem:[%s1629 + $0x62] sm:$0xff]
      %v2027 = vld [vmem:[%s1629 + $0x6a] sm:$0xff]
      %v2028 = vld [vmem:[%s1629 + $0x7a] sm:$0xff]
      %v2029 = vld [vmem:[%s1629 + $0x82] sm:$0xff]
      %v2030 = vld [vmem:[%s1629 + $0x92] sm:$0xff]
      %v2031 = vld [vmem:[%s1629 + $0x9a] sm:$0xff]
      %v2032 = vld [vmem:[%s1629 + $0xaa] sm:$0xff]
      %v2033 = vld [vmem:[%s1629 + $0xb2] sm:$0xff]
      %s2034 = scalar_lea.vmem %s1, 1024
      %v2035 = vld [vmem:[%s2034] sm:$0xff]
      %v2036 = vld [vmem:[%s2034 + $0x8] sm:$0xff]
      %v2037 = vld [vmem:[%s2034 + $0x10] sm:$0xff]
      %v2038 = vld [vmem:[%s2034 + $0x18] sm:$0xff]
      %v2039 = vld [vmem:[%s2034 + $0x20] sm:$0xff]
      %v2040 = vld [vmem:[%s2034 + $0x28] sm:$0xff]
      %v2041 = vld [vmem:[%s2034 + $0x30] sm:$0xff]
      %v2042 = vld [vmem:[%s2034 + $0x38] sm:$0xff]
      %v2043 = vld [vmem:[%s2034 + $0x40] sm:$0xff]
      %v2044 = vld [vmem:[%s2034 + $0x48] sm:$0xff]
      %v2045 = vld [vmem:[%s2034 + $0x50] sm:$0xff]
      %v2046 = vld [vmem:[%s2034 + $0x58] sm:$0xff]
      %v2047 = vld [vmem:[%s2034 + $0x60] sm:$0xff]
      %v2048 = vld [vmem:[%s2034 + $0x68] sm:$0xff]
      %v2049 = vld [vmem:[%s2034 + $0x70] sm:$0xff]
      %v2050 = vld [vmem:[%s2034 + $0x78] sm:$0xff]
      %2051 = vmatprep.subr.mxu0 0.0
      %2052 = vmatpush1.msra.mxu0 %v2050
      %2053 = vmatprep.subr.mxu0 0.0
      %2054 = vmatpush1.msra.mxu0 %v2049
      %2055 = vmatprep.subr.mxu0 0.0
      %2056 = vmatpush1.msra.mxu0 %v2048
      %2057 = vmatprep.subr.mxu0 0.0
      %2058 = vmatpush1.msra.mxu0 %v2047
      %2059 = vmatprep.subr.mxu0 0.0
      %2060 = vmatpush1.msra.mxu0 %v2046
      %2061 = vmatprep.subr.mxu0 0.0
      %2062 = vmatpush1.msra.mxu0 %v2045
      %2063 = vmatprep.subr.mxu0 0.0
      %2064 = vmatpush1.msra.mxu0 %v2044
      %2065 = vmatprep.subr.mxu0 0.0
      %2066 = vmatpush1.msra.mxu0 %v2043
      %2067 = vmatprep.subr.mxu0 0.0
      %2068 = vmatpush1.msra.mxu0 %v2042
      %2069 = vmatprep.subr.mxu0 0.0
      %2070 = vmatpush1.msra.mxu0 %v2041
      %2071 = vmatprep.subr.mxu0 0.0
      %2072 = vmatpush1.msra.mxu0 %v2040
      %2073 = vmatprep.subr.mxu0 0.0
      %2074 = vmatpush1.msra.mxu0 %v2039
      %2075 = vmatprep.subr.mxu0 0.0
      %2076 = vmatpush1.msra.mxu0 %v2038
      %2077 = vmatprep.subr.mxu0 0.0
      %2078 = vmatpush1.msra.mxu0 %v2037
      %2079 = vmatprep.subr.mxu0 0.0
      %2080 = vmatpush1.msra.mxu0 %v2036
      %2081 = vmatprep.subr.mxu0 0.0
      %2082 = vmatpush1.msra.mxu0 %v2035
      %2083 = vmatprep.subr.mxu0 0.0
      %2084 = vmatpush2.msra.mxu0 0.0
      %2085 = vmatprep.subr.mxu0 0.0
      %2086 = vmatpush2.msra.mxu0 0.0
      %2087 = vmatprep.subr.mxu0 0.0
      %2088 = vmatpush2.msra.mxu0 0.0
      %2089 = vmatprep.subr.mxu0 0.0
      %2090 = vmatpush2.msra.mxu0 0.0
      %2091 = vmatprep.subr.mxu0 0.0
      %2092 = vmatpush2.msra.mxu0 0.0
      %2093 = vmatprep.subr.mxu0 0.0
      %2094 = vmatpush2.msra.mxu0 0.0
      %2095 = vmatprep.subr.mxu0 0.0
      %2096 = vmatpush2.msra.mxu0 0.0
      %2097 = vmatprep.subr.mxu0 0.0
      %2098 = vmatpush2.msra.mxu0 0.0
      %2099 = vmatprep.subr.mxu0 0.0
      %2100 = vmatpush2.msra.mxu0 0.0
      %2101 = vmatprep.subr.mxu0 0.0
      %2102 = vmatpush2.msra.mxu0 0.0
      %2103 = vmatprep.subr.mxu0 0.0
      %2104 = vmatpush2.msra.mxu0 0.0
      %2105 = vmatprep.subr.mxu0 0.0
      %2106 = vmatpush2.msra.mxu0 0.0
      %2107 = vmatprep.subr.mxu0 0.0
      %2108 = vmatpush2.msra.mxu0 0.0
      %2109 = vmatprep.subr.mxu0 0.0
      %2110 = vmatpush2.msra.mxu0 0.0
      %2111 = vmatprep.subr.mxu0 0.0
      %2112 = vmatpush2.msra.mxu0 0.0
      %2113 = vmatprep.subr.mxu0 0.0
      %2114 = vmatpush2.msra.mxu0 0.0
      %2115 = vmatprep.mubr.f32.mxu0 0.0
      %2116 = vmatmul.mubr.f32.gmra.mxu0 %v2018
      %v2117 = vpop.f32.mrf.mxu0
      %v2118 = vadd.f32 0.0, %v2117
      %v2119 = vpop.f32.mrf.mxu0
      %2120 = vmatprep.mubr.f32.mxu0 0.0
      %2121 = vmatmul.mubr.f32.gmra.mxu0 %v2019
      %v2122 = vpop.f32.mrf.mxu0
      %v2123 = vadd.f32 0.0, %v2122
      %v2124 = vpop.f32.mrf.mxu0
      %2125 = vmatprep.mubr.f32.mxu0 0.0
      %2126 = vmatmul.mubr.f32.gmra.mxu0 %v2020
      %v2127 = vpop.f32.mrf.mxu0
      %v2128 = vadd.f32 0.0, %v2127
      %v2129 = vpop.f32.mrf.mxu0
      %2130 = vmatprep.mubr.f32.mxu0 0.0
      %2131 = vmatmul.mubr.f32.gmra.mxu0 %v2021
      %v2132 = vpop.f32.mrf.mxu0
      %v2133 = vadd.f32 0.0, %v2132
      %v2134 = vpop.f32.mrf.mxu0
      %2135 = vmatprep.mubr.f32.mxu0 0.0
      %2136 = vmatmul.mubr.f32.gmra.mxu0 %v2022
      %v2137 = vpop.f32.mrf.mxu0
      %v2138 = vadd.f32 0.0, %v2137
      %v2139 = vpop.f32.mrf.mxu0
      %2140 = vmatprep.mubr.f32.mxu0 0.0
      %2141 = vmatmul.mubr.f32.gmra.mxu0 %v2023
      %v2142 = vpop.f32.mrf.mxu0
      %v2143 = vadd.f32 0.0, %v2142
      %v2144 = vpop.f32.mrf.mxu0
      %2145 = vmatprep.mubr.f32.mxu0 0.0
      %2146 = vmatmul.mubr.f32.gmra.mxu0 %v2024
      %v2147 = vpop.f32.mrf.mxu0
      %v2148 = vadd.f32 0.0, %v2147
      %v2149 = vpop.f32.mrf.mxu0
      %2150 = vmatprep.mubr.f32.mxu0 0.0
      %2151 = vmatmul.mubr.f32.gmra.mxu0 %v2025
      %v2152 = vpop.f32.mrf.mxu0
      %v2153 = vadd.f32 0.0, %v2152
      %v2154 = vpop.f32.mrf.mxu0
      %2155 = vmatprep.mubr.f32.mxu0 0.0
      %2156 = vmatmul.mubr.f32.gmra.mxu0 %v2026
      %v2157 = vpop.f32.mrf.mxu0
      %v2158 = vadd.f32 0.0, %v2157
      %v2159 = vpop.f32.mrf.mxu0
      %2160 = vmatprep.mubr.f32.mxu0 0.0
      %2161 = vmatmul.mubr.f32.gmra.mxu0 %v2027
      %v2162 = vpop.f32.mrf.mxu0
      %v2163 = vadd.f32 0.0, %v2162
      %v2164 = vpop.f32.mrf.mxu0
      %2165 = vmatprep.mubr.f32.mxu0 0.0
      %2166 = vmatmul.mubr.f32.gmra.mxu0 %v2028
      %v2167 = vpop.f32.mrf.mxu0
      %v2168 = vadd.f32 0.0, %v2167
      %v2169 = vpop.f32.mrf.mxu0
      %2170 = vmatprep.mubr.f32.mxu0 0.0
      %2171 = vmatmul.mubr.f32.gmra.mxu0 %v2029
      %v2172 = vpop.f32.mrf.mxu0
      %v2173 = vadd.f32 0.0, %v2172
      %v2174 = vpop.f32.mrf.mxu0
      %2175 = vmatprep.mubr.f32.mxu0 0.0
      %2176 = vmatmul.mubr.f32.gmra.mxu0 %v2030
      %v2177 = vpop.f32.mrf.mxu0
      %v2178 = vadd.f32 0.0, %v2177
      %v2179 = vpop.f32.mrf.mxu0
      %2180 = vmatprep.mubr.f32.mxu0 0.0
      %2181 = vmatmul.mubr.f32.gmra.mxu0 %v2031
      %v2182 = vpop.f32.mrf.mxu0
      %v2183 = vadd.f32 0.0, %v2182
      %v2184 = vpop.f32.mrf.mxu0
      %2185 = vmatprep.mubr.f32.mxu0 0.0
      %2186 = vmatmul.mubr.f32.gmra.mxu0 %v2032
      %v2187 = vpop.f32.mrf.mxu0
      %v2188 = vadd.f32 0.0, %v2187
      %v2189 = vpop.f32.mrf.mxu0
      %2190 = vmatprep.mubr.f32.mxu0 0.0
      %2191 = vmatmul.mubr.f32.gmra.mxu0 %v2033
      %v2192 = vpop.f32.mrf.mxu0
      %v2193 = vadd.f32 0.0, %v2192
      %v2194 = vpop.f32.mrf.mxu0
      %2195 = vdwg.mxu0
      %v2196 = vadd.f32 %v2002, %v2118
      %v2197 = vadd.f32 %v2003, %v2123
      %v2198 = vadd.f32 %v2004, %v2128
      %v2199 = vadd.f32 %v2005, %v2133
      %v2200 = vadd.f32 %v2006, %v2138
      %v2201 = vadd.f32 %v2007, %v2143
      %v2202 = vadd.f32 %v2008, %v2148
      %v2203 = vadd.f32 %v2009, %v2153
      %v2204 = vadd.f32 %v2010, %v2158
      %v2205 = vadd.f32 %v2011, %v2163
      %v2206 = vadd.f32 %v2012, %v2168
      %v2207 = vadd.f32 %v2013, %v2173
      %v2208 = vadd.f32 %v2014, %v2178
      %v2209 = vadd.f32 %v2015, %v2183
      %v2210 = vadd.f32 %v2016, %v2188
      %v2211 = vadd.f32 %v2017, %v2193
      %v2212 = vld [vmem:[%s2] sm:$0x1]
      %v2214 = vlaneseq
      %v2215 = vshrl.u32 %v2214, 7
      %v2216 = vsub.s32 0, %v2215
      %v2217 = vrot.slane %v2212, %v2216
      %v2219 = vadd.f32 %v2196, %v2217
      %v2220 = vadd.f32 %v2197, %v2217
      %v2221 = vadd.f32 %v2198, %v2217
      %v2222 = vadd.f32 %v2199, %v2217
      %v2223 = vadd.f32 %v2200, %v2217
      %v2224 = vadd.f32 %v2201, %v2217
      %v2225 = vadd.f32 %v2202, %v2217
      %v2226 = vadd.f32 %v2203, %v2217
      %v2227 = vadd.f32 %v2204, %v2217
      %v2228 = vadd.f32 %v2205, %v2217
      %v2229 = vadd.f32 %v2206, %v2217
      %v2230 = vadd.f32 %v2207, %v2217
      %v2231 = vadd.f32 %v2208, %v2217
      %v2232 = vadd.f32 %v2209, %v2217
      %v2233 = vadd.f32 %v2210, %v2217
      %v2234 = vadd.f32 %v2211, %v2217
      %2235 = vst [vmem:[%s188] sm:$0xff] %v2219
      %2236 = vst [vmem:[%s188 + $0x8] sm:$0xff] %v2220
      %2237 = vst [vmem:[%s188 + $0x10] sm:$0xff] %v2221
      %2238 = vst [vmem:[%s188 + $0x18] sm:$0xff] %v2222
      %2239 = vst [vmem:[%s188 + $0x20] sm:$0xff] %v2223
      %2240 = vst [vmem:[%s188 + $0x28] sm:$0xff] %v2224
      %2241 = vst [vmem:[%s188 + $0x30] sm:$0xff] %v2225
      %2242 = vst [vmem:[%s188 + $0x38] sm:$0xff] %v2226
      %2243 = vst [vmem:[%s188 + $0x40] sm:$0xff] %v2227
      %2244 = vst [vmem:[%s188 + $0x48] sm:$0xff] %v2228
      %2245 = vst [vmem:[%s188 + $0x50] sm:$0xff] %v2229
      %2246 = vst [vmem:[%s188 + $0x58] sm:$0xff] %v2230
      %2247 = vst [vmem:[%s188 + $0x60] sm:$0xff] %v2231
      %2248 = vst [vmem:[%s188 + $0x68] sm:$0xff] %v2232
      %2249 = vst [vmem:[%s188 + $0x70] sm:$0xff] %v2233
      %2250 = vst [vmem:[%s188 + $0x78] sm:$0xff] %v2234
      %v2251 = vadd.f32 %v2219, %v2220
      %v2252 = vadd.f32 %v2251, %v2221
      %v2253 = vadd.f32 %v2252, %v2222
      %v2254 = vadd.f32 %v2253, %v2223
      %v2255 = vadd.f32 %v2254, %v2224
      %v2256 = vadd.f32 %v2255, %v2225
      %v2257 = vadd.f32 %v2256, %v2226
      %v2258 = vadd.f32 %v2257, %v2227
      %v2259 = vadd.f32 %v2258, %v2228
      %v2260 = vadd.f32 %v2259, %v2229
      %v2261 = vadd.f32 %v2260, %v2230
      %v2262 = vadd.f32 %v2261, %v2231
      %v2263 = vadd.f32 %v2262, %v2232
      %v2264 = vadd.f32 %v2263, %v2233
      %v2265 = vadd.f32 %v2264, %v2234
      %v2266 = vrot.slane %v2265, 4
      %v2267 = vadd.f32 %v2265, %v2266
      %v2268 = vrot.slane %v2267, 2
      %v2269 = vadd.f32 %v2267, %v2268
      %v2270 = vrot.slane %v2269, 1
      %v2271 = vadd.f32 %v2269, %v2270
      %v2272 = vmul.f32 %v2219, %v2219
      %v2273 = vmul.f32 %v2220, %v2220
      %v2274 = vmul.f32 %v2221, %v2221
      %v2275 = vmul.f32 %v2222, %v2222
      %v2276 = vmul.f32 %v2223, %v2223
      %v2277 = vmul.f32 %v2224, %v2224
      %v2278 = vmul.f32 %v2225, %v2225
      %v2279 = vmul.f32 %v2226, %v2226
      %v2280 = vmul.f32 %v2227, %v2227
      %v2281 = vmul.f32 %v2228, %v2228
      %v2282 = vmul.f32 %v2229, %v2229
      %v2283 = vmul.f32 %v2230, %v2230
      %v2284 = vmul.f32 %v2231, %v2231
      %v2285 = vmul.f32 %v2232, %v2232
      %v2286 = vmul.f32 %v2233, %v2233
      %v2287 = vmul.f32 %v2234, %v2234
      %v2288 = vadd.f32 %v2272, %v2273
      %v2289 = vadd.f32 %v2288, %v2274
      %v2290 = vadd.f32 %v2289, %v2275
      %v2291 = vadd.f32 %v2290, %v2276
      %v2292 = vadd.f32 %v2291, %v2277
      %v2293 = vadd.f32 %v2292, %v2278
      %v2294 = vadd.f32 %v2293, %v2279
      %v2295 = vadd.f32 %v2294, %v2280
      %v2296 = vadd.f32 %v2295, %v2281
      %v2297 = vadd.f32 %v2296, %v2282
      %v2298 = vadd.f32 %v2297, %v2283
      %v2299 = vadd.f32 %v2298, %v2284
      %v2300 = vadd.f32 %v2299, %v2285
      %v2301 = vadd.f32 %v2300, %v2286
      %v2302 = vadd.f32 %v2301, %v2287
      %v2303 = vrot.slane %v2302, 4
      %v2304 = vadd.f32 %v2302, %v2303
      %v2305 = vrot.slane %v2304, 2
      %v2306 = vadd.f32 %v2304, %v2305
      %v2307 = vrot.slane %v2306, 1
      %v2308 = vadd.f32 %v2306, %v2307
      %vm2309 = vcmask 1040384
      %v2310 = vsel %vm2309, %v2271, %v2308
      %2311 = vst [vmem:[%s197] sm:$0x3] %v2310
      %s2312 = smul.u32 8, %s21
      %p2313 = scmp.lt.s32.totalorder %s20, 1
      %s2314 = scalar_select %p2313, %s20, 1
      %p2315 = scmp.lt.s32.totalorder %s2312, 15
      %s2316 = scalar_select %p2315, %s2312, 15
      %s2317 = smul.addr %s2316, 2
      %s2318 = smul.addr %s2314, 32
      %s2319 = sadd.s32 %s2317, %s2318
      %s2320 = smul.addr %s2319, 8
      %s2321 = scalar_lea.vmem %s3, %s2320
      %p2322 = scmp.lt.s32.totalorder %s20, 1
      %s2323 = scalar_select %p2322, %s20, 1
      %p2324 = scmp.lt.s32.totalorder %s21, 1
      %s2325 = scalar_select %p2324, %s21, 1
      %s2326 = smul.addr %s2323, 2
      %s2327 = sadd.s32 %s2325, %s2326
      %s2328 = smul.addr %s2327, 2
      %s2329 = scalar_lea.vmem %s4, %s2328
      // Predicated region
      $region111: #{double_conv_pallas.4} parent=27 // pred_check
        %p2330 = pneg %p90
      $region112: #{double_conv_pallas.4} parent=27 // pred_check_branch
        %2332 = sbr.rel (%p2330) target = $region114
      $region113: #{double_conv_pallas.4} parent=27 // pred_region
        %s2333 = smul.u32 8, %s21
      $region114: #{double_conv_pallas.4} parent=27 // pred_fallthru
        _
      // Predicated region
      $region115: #{double_conv_pallas.4} parent=27 // pred_check
        %p2334 = pneg %p118
      $region116: #{double_conv_pallas.4} parent=27 // pred_check_branch
        %2336 = sbr.rel (%p2334) target = $region118
      $region117: #{double_conv_pallas.4} parent=27 // pred_region
        _
      $region118: #{double_conv_pallas.4} parent=27 // pred_fallthru
        _
    $region28: #{double_conv_pallas.4} parent=5 // pred_fallthru
      _
    %p2337 = scmp.le.s32.totalorder 2, %s11
    // Predicated region
    $region119: #{double_conv_pallas.4} parent=5 // pred_check
      %p2338 = pneg %p2337
    $region120: #{double_conv_pallas.4} parent=5 // pred_check_branch
      %2340 = sbr.rel (%p2338) target = $region122
    $region121: #{double_conv_pallas.4} parent=5 // pred_region
      %s2341 = ssub.s32 %s11, 2
      // Predicated region
      $region123: #{double_conv_pallas.4} parent=121 // pred_check
        %p2342 = pneg %p96
      $region124: #{double_conv_pallas.4} parent=121 // pred_check_branch
        %2344 = sbr.rel (%p2342) target = $region126
      $region125: #{double_conv_pallas.4} parent=121 // pred_region
        %s2345 = smul.u32 8, %s23
        %p2346 = scmp.lt.s32.totalorder %s22, 1
        %s2347 = scalar_select %p2346, %s22, 1
        %p2348 = scmp.lt.s32.totalorder %s2345, 15
        %s2349 = scalar_select %p2348, %s2345, 15
        %s2350 = smul.addr %s2349, 2
        %s2351 = smul.addr %s2347, 32
        %s2352 = sadd.s32 %s2350, %s2351
        %s2353 = smul.addr %s2352, 8
        %s2354 = scalar_lea.vmem %s3, %s2353
      $region126: #{double_conv_pallas.4} parent=121 // pred_fallthru
        _
      // Predicated region
      $region127: #{double_conv_pallas.4} parent=121 // pred_check
        %p2355 = pneg %p124
      $region128: #{double_conv_pallas.4} parent=121 // pred_check_branch
        %2357 = sbr.rel (%p2355) target = $region130
      $region129: #{double_conv_pallas.4} parent=121 // pred_region
        %p2358 = scmp.lt.s32.totalorder %s22, 1
        %s2359 = scalar_select %p2358, %s22, 1
        %p2360 = scmp.lt.s32.totalorder %s23, 1
        %s2361 = scalar_select %p2360, %s23, 1
        %s2362 = smul.addr %s2359, 2
        %s2363 = sadd.s32 %s2361, %s2362
        %s2364 = smul.addr %s2363, 2
        %s2365 = scalar_lea.vmem %s4, %s2364
      $region130: #{double_conv_pallas.4} parent=121 // pred_fallthru
        _
    $region122: #{double_conv_pallas.4} parent=5 // pred_fallthru
      _
  $region6: #{double_conv_pallas.4} parent=0 // loop_footer
    %s15 = sadd.s32 1, %s11
  $region7: #{double_conv_pallas.4} parent=0 // loop_footer_branch
    %10 = sbr.rel target = $region3
  $region8: #{double_conv_pallas.4} parent=0 // loop_exit
    _
  %2366 = vsyncmov [#allocation3]
  %s2367 = vpop.sfrf %2366
  %p2368 = scmp.eq.s32.totalorder %s2367, 0
  %p2369 = pneg %p2368
  %2371 = shalt.err (%p2369)
  %s2372 = scalar_lea.sflag [#allocation3], 1
  %2373 = vsyncmov %s2372
  %s2374 = vpop.sfrf %2373
  %p2375 = scmp.eq.s32.totalorder %s2374, 0
  %p2376 = pneg %p2375
  %2378 = shalt.err (%p2376)

</llo_original>
